<compile_context>
chip_gen: v5e
topology: v5e:2x2
jax: 0.10.0
libtpu: 0.0.40
codegen_flags: <defaults>
</compile_context>

<pallas_src>
import functools

import jax
import jax.numpy as jnp
from jax.experimental import pallas as pl
from jax.experimental.pallas import tpu as pltpu

LN_EPS = 1e-12                    # HF Roberta layer_norm_eps default
MATMUL_DTYPE = jnp.bfloat16       # set to jnp.float32 for bit-faithful f32 matmuls
ACT_STREAM_DTYPE = None           # set to jnp.bfloat16 to halve activation HBM traffic
MASK_MIN = -1e9

VEC_ROWS = ("bq", "bk", "bv", "bo", "ln1_g", "ln1_b", "bo2", "ln2_g", "ln2_b")
MAT_NAMES = ("wq", "wk", "wv", "wo", "wi", "wo2")


def _device_defaults():
    """(rows_target, vmem_limit_bytes) derived from this chip's VMEM capacity."""
    try:
        cap = getattr(pltpu.get_tpu_info(), "vmem_capacity_bytes", None)
    except Exception:  # query unavailable -> conservative (v7x-safe) budget
        cap = None
    if cap is None or cap <= 80 * 1024 * 1024:
        # v7x-class (64 MiB per TensorCore) or unknown.
        return 256, 48 * 1024 * 1024
    # v5e / v6e (128 MiB VMEM): larger row slabs amortize per-step overhead.
    return 512, 96 * 1024 * 1024


def _layer_norm(x, g, b):
    mu = jnp.mean(x, axis=-1, keepdims=True)
    var = jnp.mean((x - mu) ** 2, axis=-1, keepdims=True)
    return (x - mu) * jax.lax.rsqrt(var + LN_EPS) * g + b


def _gelu(x):
    # TODO(synk): HF Roberta default hidden_act is exact erf-GELU; the tanh
    # approximation is used to stay within guaranteed Mosaic lowerings.
    return 0.5 * x * (1.0 + jnp.tanh(0.7978845608028654 * (x + 0.044715 * x * x * x)))


def _transformer_layer_kernel(x_ref, kmask_ref, bdiag_ref,
                              wq, wk, wv, wo, wi, wo2,
                              vec_ref, bi_ref, out_ref, *, num_heads):
    """One full TransformerLayer for TS sequences flattened to a (R=TS*Lp, H) slab."""
    R, H = x_ref.shape
    dh = H // num_heads
    mm = wq.dtype                                   # matmul operand dtype (bf16 default)

    x = x_ref[...].astype(jnp.float32)              # (R, H) f32

    # Additive mask over the dense (R, R) score slab: grid-invariant block-diagonal
    # structure (row i attends only within its own sequence i // Lp) + per-step key
    # padding mask.  Built once per grid step, reused for all heads.
    mask = bdiag_ref[...] + kmask_ref[0]            # (R, R) + (1, R) broadcast

    vec = vec_ref[...]                              # (9, H) f32, packed small params
    bq, bk, bv, bo = vec[0:1], vec[1:2], vec[2:3], vec[3:4]
    g1, b1 = vec[4:5], vec[5:6]
    bo2 = vec[6:7]
    g2, b2 = vec[7:8], vec[8:9]
    bi = bi_ref[...]                                # (1, I) f32

    # --- self attention: QKV projections on the whole (R, H) slab -------------
    x_mm = x.astype(mm)
    # 1/sqrt(dh) is folded into wq / bq by the wrapper.
    q = jnp.dot(x_mm, wq[...], preferred_element_type=jnp.float32) + bq
    k = jnp.dot(x_mm, wk[...], preferred_element_type=jnp.float32) + bk
    v = jnp.dot(x_mm, wv[...], preferred_element_type=jnp.float32) + bv

    # --- per-head block-diagonal attention over the slab ----------------------
    wo_all = wo[...]                                # (H, H) bf16, loaded once
    attn = jnp.zeros((R, H), jnp.float32)
    for h in range(num_heads):
        cols = slice(h * dh, (h + 1) * dh)
        qh = q[:, cols].astype(mm)                  # (R, dh)
        kh = k[:, cols].astype(mm)
        vh = v[:, cols].astype(mm)
        # Dense scores over the whole slab: M = N = R (full MXU rows) instead of
        # TS tiny Lp x Lp matmuls.  Cross-sequence entries are masked to -1e9.
        s = jax.lax.dot_general(qh, kh, (((1,), (1,)), ((), ())),
                                preferred_element_type=jnp.float32) + mask   # (R, R)
        s = s - jnp.max(s, axis=-1, keepdims=True)
        p = jnp.exp(s)
        p = p * pl.reciprocal(jnp.sum(p, axis=-1, keepdims=True), approx=True)
        ctx_h = jnp.dot(p.astype(mm), vh, preferred_element_type=jnp.float32)  # (R, dh)
        # Accumulate the attention output projection per head (equivalent to
        # dense(concat_h ctx_h)); avoids lane-offset concat of dh(<128) pieces.
        attn = attn + jnp.dot(ctx_h.astype(mm), wo_all[cols, :],
                              preferred_element_type=jnp.float32)
    attn = attn + bo

    # --- RobertaSelfOutput: residual + LayerNorm -------------------------------
    y = _layer_norm(attn + x, g1, b1)

    # --- intermediate GELU + output dense + residual + LayerNorm ---------------
    hmid = _gelu(jnp.dot(y.astype(mm), wi[...], preferred_element_type=jnp.float32) + bi)
    o = jnp.dot(hmid.astype(mm), wo2[...], preferred_element_type=jnp.float32) + bo2
    z = _layer_norm(o + y, g2, b2)

    out_ref[...] = z.astype(out_ref.dtype)


def transformer_layer(x, add_mask, params, num_heads, seq_block=None):
    """x: (S, L, H); add_mask: (S, 1, L) additive mask. Returns (S, L, H)."""
    S, L, H = x.shape
    assert H % num_heads == 0
    dh = H // num_heads

    rows_target, vmem_limit = _device_defaults()

    # Pad per-sequence length to a sublane multiple (8); padded keys masked to -1e9.
    Lp = ((L + 7) // 8) * 8
    if seq_block is not None:
        TS = int(seq_block)
    else:
        TS = max(1, min(S, rows_target // Lp))
        # Keep >= 2 grid steps when possible so dimension_semantics=("parallel",)
        # can shard the grid across v7x's two TensorCores (neutral on v5e/v6e).
        if S > 1 and pl.cdiv(S, TS) < 2:
            TS = max(1, pl.cdiv(S, 2))
    Sp = pl.cdiv(S, TS) * TS
    nsteps = Sp // TS
    rows = TS * Lp

    # NOTE: fully-padded sequences (the Sp-S padding rows) have all keys masked,
    # yielding a uniform softmax rather than NaN; those rows are sliced off below.
    x_p = jnp.pad(x, ((0, Sp - S), (0, Lp - L), (0, 0)))
    m_p = jnp.pad(add_mask.astype(jnp.float32), ((0, Sp - S), (0, 0), (0, Lp - L)),
                  constant_values=MASK_MIN)

    act_dtype = ACT_STREAM_DTYPE if ACT_STREAM_DTYPE is not None else x.dtype
    x2 = x_p.reshape(Sp * Lp, H).astype(act_dtype)       # lane-dense 2-D activation slab
    kmask = m_p.reshape(nsteps, 1, rows)                 # per-step key padding mask

    # Grid-invariant block-diagonal mask for one (rows, rows) slab.
    seq_id = jnp.arange(rows, dtype=jnp.int32) // Lp
    bdiag = jnp.where(seq_id[:, None] == seq_id[None, :], 0.0, MASK_MIN).astype(jnp.float32)

    # Fold the 1/sqrt(dh) attention scale into wq / bq (weights-only prep cost).
    scale = 1.0 / (dh ** 0.5)
    mats = [(params["wq"] * scale).astype(MATMUL_DTYPE)] + \
           [params[n].astype(MATMUL_DTYPE) for n in MAT_NAMES[1:]]
    vec_rows = [params["bq"] * scale] + [params[n] for n in VEC_ROWS[1:]]
    vec_h = jnp.concatenate(vec_rows, axis=0).astype(jnp.float32)   # (9, H)
    bi = params["bi"].astype(jnp.float32)                            # (1, I)

    kernel = functools.partial(_transformer_layer_kernel, num_heads=num_heads)

    def run(single_buffer_weights):
        def resident(a):
            zmap = lambda s: (0,) * a.ndim
            if single_buffer_weights:
                # Constant index map -> the block is revisited every step; a single
                # pipeline buffer suffices and halves resident-weight VMEM.
                return pl.BlockSpec(a.shape, zmap, pipeline_mode=pl.Buffered(1))
            return pl.BlockSpec(a.shape, zmap)

        in_specs = ([pl.BlockSpec((rows, H), lambda s: (s, 0)),
                     pl.BlockSpec((1, 1, rows), lambda s: (s, 0, 0)),
                     resident(bdiag)]
                    + [resident(m) for m in mats]
                    + [resident(vec_h), resident(bi)])

        return pl.pallas_call(
            kernel,
            out_shape=jax.ShapeDtypeStruct((Sp * Lp, H), act_dtype),
            grid=(nsteps,),
            in_specs=in_specs,
            out_specs=pl.BlockSpec((rows, H), lambda s: (s, 0)),
            compiler_params=pltpu.CompilerParams(
                dimension_semantics=("parallel",),
                vmem_limit_bytes=vmem_limit),
        )(x2, kmask, bdiag, *mats, vec_h, bi)

    try:
        out2 = run(single_buffer_weights=True)
    except Exception:
        # pl.Buffered(1) unsupported on this jax/libtpu stack: fall back to the
        # default double-buffered resident blocks (identical numerics).
        out2 = run(single_buffer_weights=False)

    return out2.reshape(Sp, Lp, H)[:S, :L].astype(x.dtype)


def netfound_layer(hidden_states, attention_mask, params, *, num_bursts,
                   max_burst_length, num_heads):
    """hidden_states: (B, num_bursts*max_burst_length, H); attention_mask: (B,1,1,S) additive."""
    B, S, H = hidden_states.shape
    assert S == num_bursts * max_burst_length

    # transform_tokens2bursts / transform_masks2bursts
    burst_inputs = hidden_states.reshape(B * num_bursts, max_burst_length, H)
    burst_masks = attention_mask.reshape(B * num_bursts, 1, max_burst_length)

    burst_outputs = transformer_layer(burst_inputs, burst_masks,
                                      params["burst"], num_heads)

    # transform_bursts2tokens
    outputs = burst_outputs.reshape(B, S, H)

    burst_global_tokens = outputs[:, ::max_burst_length]                 # (B, nb, H)
    burst_attention_mask = attention_mask[:, :, :, ::max_burst_length]   # (B, 1, 1, nb)

    # NOTE: the PyTorch reference adds position_embeddings(burst_positions) to
    # outputs[:, ::max_burst_length] here, but (a) the flow encoder consumes
    # burst_global_tokens cloned BEFORE that add, and (b) the same strided slice is
    # fully overwritten by flow_outputs below — so the add is dead work and is
    # skipped here; the returned tensors are identical to the reference.

    flow_outputs = transformer_layer(
        burst_global_tokens,
        burst_attention_mask.reshape(B, 1, num_bursts),
        params["flow"], num_heads)

    outputs = outputs.at[:, ::max_burst_length].set(flow_outputs)
    return outputs, burst_outputs, flow_outputs


def init_transformer_params(key, hidden, intermediate):
    ks = jax.random.split(key, 6)
    std = 0.02

    def lin(k, i, o):
        return std * jax.random.normal(k, (i, o), jnp.float32)

    zeros = lambda d: jnp.zeros((1, d), jnp.float32)
    ones = lambda d: jnp.ones((1, d), jnp.float32)
    return {
        "wq": lin(ks[0], hidden, hidden), "bq": zeros(hidden),
        "wk": lin(ks[1], hidden, hidden), "bk": zeros(hidden),
        "wv": lin(ks[2], hidden, hidden), "bv": zeros(hidden),
        "wo": lin(ks[3], hidden, hidden), "bo": zeros(hidden),
        "ln1_g": ones(hidden), "ln1_b": zeros(hidden),
        "wi": lin(ks[4], hidden, intermediate), "bi": zeros(intermediate),
        "wo2": lin(ks[5], intermediate, hidden), "bo2": zeros(hidden),
        "ln2_g": ones(hidden), "ln2_b": zeros(hidden),
    }


if __name__ == "__main__":
    key = jax.random.PRNGKey(0)
    B = 2
    num_bursts = 4          # config.max_bursts
    max_burst_length = 8    # config.max_burst_length
    hidden = 32             # config.hidden_size
    intermediate = 64       # config.intermediate_size
    num_heads = 2
    pad_token_id = 0
    S = num_bursts * max_burst_length

    k_x, k_m, k_burst, k_flow, k_pos = jax.random.split(key, 5)
    hidden_states = jax.random.normal(k_x, (B, S, hidden), jnp.float32)
    keep = jax.random.bernoulli(k_m, 0.85, (B, 1, 1, S))
    attention_mask = jnp.where(keep, 0.0, -1e9).astype(jnp.float32)  # HF extended additive mask

    params = {
        "burst": init_transformer_params(k_burst, hidden, intermediate),
        "flow": init_transformer_params(k_flow, hidden, intermediate),
        # nn.Embedding(max_bursts + 1, hidden, padding_idx=pad_token_id).
        # Unused in the forward output (the reference's pos-emb add is dead work;
        # kept only for module-parameter parity).
        "pos_emb": (0.02 * jax.random.normal(k_pos, (num_bursts + 1, hidden), jnp.float32)
                    ).at[pad_token_id].set(0.0),
    }

    outputs, burst_outputs, flow_outputs = netfound_layer(
        hidden_states, attention_mask, params,
        num_bursts=num_bursts, max_burst_length=max_burst_length,
        num_heads=num_heads)

    jax.block_until_ready((outputs, burst_outputs, flow_outputs))
    assert outputs.shape == (B, S, hidden)
    assert burst_outputs.shape == (B * num_bursts, max_burst_length, hidden)
    assert flow_outputs.shape == (B, num_bursts, hidden)
    print("KERNEL_OK")
</pallas_src>

<mosaic_0001>
module attributes {stable_mosaic.version = 11 : i64} {
  func.func @_transformer_layer_kernel(%arg0: i32, %arg1: memref<32x32xf32, #tpu.memory_space<vmem>>, %arg2: memref<1x1x32xf32, #tpu.memory_space<vmem>>, %arg3: memref<32x32xf32, #tpu.memory_space<vmem>>, %arg4: memref<32x32xbf16, #tpu.memory_space<vmem>>, %arg5: memref<32x32xbf16, #tpu.memory_space<vmem>>, %arg6: memref<32x32xbf16, #tpu.memory_space<vmem>>, %arg7: memref<32x32xbf16, #tpu.memory_space<vmem>>, %arg8: memref<32x64xbf16, #tpu.memory_space<vmem>>, %arg9: memref<64x32xbf16, #tpu.memory_space<vmem>>, %arg10: memref<9x32xf32, #tpu.memory_space<vmem>>, %arg11: memref<1x64xf32, #tpu.memory_space<vmem>>, %arg12: memref<32x32xf32, #tpu.memory_space<vmem>>) attributes {dimension_semantics = [#tpu.dimension_semantics<parallel>], iteration_bounds = array<i64: 2>, scalar_prefetch = 0 : i64, scratch_operands = 0 : i64, tpu.core_type = #tpu.core_type<tc>, window_params = [{transform_indices = @transform_0, window_bounds = array<i64: 32, 32>}, {transform_indices = @transform_1, window_bounds = array<i64: 1, 1, 32>}, {pipeline_mode = #tpu.pipeline_mode<synchronous>, transform_indices = @transform_2, window_bounds = array<i64: 32, 32>}, {pipeline_mode = #tpu.pipeline_mode<synchronous>, transform_indices = @transform_3, window_bounds = array<i64: 32, 32>}, {pipeline_mode = #tpu.pipeline_mode<synchronous>, transform_indices = @transform_4, window_bounds = array<i64: 32, 32>}, {pipeline_mode = #tpu.pipeline_mode<synchronous>, transform_indices = @transform_5, window_bounds = array<i64: 32, 32>}, {pipeline_mode = #tpu.pipeline_mode<synchronous>, transform_indices = @transform_6, window_bounds = array<i64: 32, 32>}, {pipeline_mode = #tpu.pipeline_mode<synchronous>, transform_indices = @transform_7, window_bounds = array<i64: 32, 64>}, {pipeline_mode = #tpu.pipeline_mode<synchronous>, transform_indices = @transform_8, window_bounds = array<i64: 64, 32>}, {pipeline_mode = #tpu.pipeline_mode<synchronous>, transform_indices = @transform_9, window_bounds = array<i64: 9, 32>}, {pipeline_mode = #tpu.pipeline_mode<synchronous>, transform_indices = @transform_10, window_bounds = array<i64: 1, 64>}, {transform_indices = @transform_11, window_bounds = array<i64: 32, 32>}]} {
    %c0 = arith.constant 0 : index
    %c0_0 = arith.constant 0 : index
    %0 = vector.load %arg1[%c0, %c0_0] : memref<32x32xf32, #tpu.memory_space<vmem>>, vector<32x32xf32>
    %c0_1 = arith.constant 0 : index
    %c0_2 = arith.constant 0 : index
    %1 = vector.load %arg3[%c0_1, %c0_2] : memref<32x32xf32, #tpu.memory_space<vmem>>, vector<32x32xf32>
    %c0_3 = arith.constant 0 : index
    %c0_4 = arith.constant 0 : index
    %c0_5 = arith.constant 0 : index
    %2 = vector.load %arg2[%c0_3, %c0_4, %c0_5] : memref<1x1x32xf32, #tpu.memory_space<vmem>>, vector<1x1x32xf32>
    %3 = vector.shape_cast %2 : vector<1x1x32xf32> to vector<1x32xf32>
    %4 = vector.broadcast %3 : vector<1x32xf32> to vector<32x32xf32>
    %5 = arith.addf %1, %4 : vector<32x32xf32>
    %c0_6 = arith.constant 0 : index
    %c0_7 = arith.constant 0 : index
    %6 = vector.load %arg10[%c0_6, %c0_7] : memref<9x32xf32, #tpu.memory_space<vmem>>, vector<9x32xf32>
    %7 = vector.extract_strided_slice %6 {offsets = [0, 0], sizes = [1, 32], strides = [1, 1]} : vector<9x32xf32> to vector<1x32xf32>
    %8 = vector.extract_strided_slice %6 {offsets = [1, 0], sizes = [1, 32], strides = [1, 1]} : vector<9x32xf32> to vector<1x32xf32>
    %9 = vector.extract_strided_slice %6 {offsets = [2, 0], sizes = [1, 32], strides = [1, 1]} : vector<9x32xf32> to vector<1x32xf32>
    %10 = vector.extract_strided_slice %6 {offsets = [3, 0], sizes = [1, 32], strides = [1, 1]} : vector<9x32xf32> to vector<1x32xf32>
    %11 = vector.extract_strided_slice %6 {offsets = [4, 0], sizes = [1, 32], strides = [1, 1]} : vector<9x32xf32> to vector<1x32xf32>
    %12 = vector.extract_strided_slice %6 {offsets = [5, 0], sizes = [1, 32], strides = [1, 1]} : vector<9x32xf32> to vector<1x32xf32>
    %13 = vector.extract_strided_slice %6 {offsets = [6, 0], sizes = [1, 32], strides = [1, 1]} : vector<9x32xf32> to vector<1x32xf32>
    %14 = vector.extract_strided_slice %6 {offsets = [7, 0], sizes = [1, 32], strides = [1, 1]} : vector<9x32xf32> to vector<1x32xf32>
    %15 = vector.extract_strided_slice %6 {offsets = [8, 0], sizes = [1, 32], strides = [1, 1]} : vector<9x32xf32> to vector<1x32xf32>
    %c0_8 = arith.constant 0 : index
    %c0_9 = arith.constant 0 : index
    %16 = vector.load %arg11[%c0_8, %c0_9] : memref<1x64xf32, #tpu.memory_space<vmem>>, vector<1x64xf32>
    %17 = arith.truncf %0 : vector<32x32xf32> to vector<32x32xbf16>
    %c0_10 = arith.constant 0 : index
    %c0_11 = arith.constant 0 : index
    %18 = vector.load %arg4[%c0_10, %c0_11] : memref<32x32xbf16, #tpu.memory_space<vmem>>, vector<32x32xbf16>
    %cst = arith.constant dense<0.000000e+00> : vector<32x32xf32>
    %19 = tpu.matmul %17, %18, %cst {dimension_numbers = #tpu.dot_dimension_numbers<[1], [0], [0], [1], [0, 0, 1, 1], [], []>} : vector<32x32xbf16>, vector<32x32xbf16>, vector<32x32xf32> -> vector<32x32xf32>
    %20 = vector.broadcast %7 : vector<1x32xf32> to vector<32x32xf32>
    %21 = arith.addf %19, %20 : vector<32x32xf32>
    %c0_12 = arith.constant 0 : index
    %c0_13 = arith.constant 0 : index
    %22 = vector.load %arg5[%c0_12, %c0_13] : memref<32x32xbf16, #tpu.memory_space<vmem>>, vector<32x32xbf16>
    %cst_14 = arith.constant dense<0.000000e+00> : vector<32x32xf32>
    %23 = tpu.matmul %17, %22, %cst_14 {dimension_numbers = #tpu.dot_dimension_numbers<[1], [0], [0], [1], [0, 0, 1, 1], [], []>} : vector<32x32xbf16>, vector<32x32xbf16>, vector<32x32xf32> -> vector<32x32xf32>
    %24 = vector.broadcast %8 : vector<1x32xf32> to vector<32x32xf32>
    %25 = arith.addf %23, %24 : vector<32x32xf32>
    %c0_15 = arith.constant 0 : index
    %c0_16 = arith.constant 0 : index
    %26 = vector.load %arg6[%c0_15, %c0_16] : memref<32x32xbf16, #tpu.memory_space<vmem>>, vector<32x32xbf16>
    %cst_17 = arith.constant dense<0.000000e+00> : vector<32x32xf32>
    %27 = tpu.matmul %17, %26, %cst_17 {dimension_numbers = #tpu.dot_dimension_numbers<[1], [0], [0], [1], [0, 0, 1, 1], [], []>} : vector<32x32xbf16>, vector<32x32xbf16>, vector<32x32xf32> -> vector<32x32xf32>
    %28 = vector.broadcast %9 : vector<1x32xf32> to vector<32x32xf32>
    %29 = arith.addf %27, %28 : vector<32x32xf32>
    %c0_18 = arith.constant 0 : index
    %c0_19 = arith.constant 0 : index
    %30 = vector.load %arg7[%c0_18, %c0_19] : memref<32x32xbf16, #tpu.memory_space<vmem>>, vector<32x32xbf16>
    %cst_20 = arith.constant 0.000000e+00 : f32
    %31 = vector.broadcast %cst_20 : f32 to vector<32x32xf32>
    %32 = vector.extract_strided_slice %21 {offsets = [0, 0], sizes = [32, 16], strides = [1, 1]} : vector<32x32xf32> to vector<32x16xf32>
    %33 = arith.truncf %32 : vector<32x16xf32> to vector<32x16xbf16>
    %34 = vector.extract_strided_slice %25 {offsets = [0, 0], sizes = [32, 16], strides = [1, 1]} : vector<32x32xf32> to vector<32x16xf32>
    %35 = arith.truncf %34 : vector<32x16xf32> to vector<32x16xbf16>
    %36 = vector.extract_strided_slice %29 {offsets = [0, 0], sizes = [32, 16], strides = [1, 1]} : vector<32x32xf32> to vector<32x16xf32>
    %37 = arith.truncf %36 : vector<32x16xf32> to vector<32x16xbf16>
    %cst_21 = arith.constant dense<0.000000e+00> : vector<32x32xf32>
    %38 = tpu.matmul %33, %35, %cst_21 {dimension_numbers = #tpu.dot_dimension_numbers<[1], [1], [0], [0], [0, 0, 1, 0], [], []>} : vector<32x16xbf16>, vector<32x16xbf16>, vector<32x32xf32> -> vector<32x32xf32>
    %39 = arith.addf %38, %5 : vector<32x32xf32>
    %cst_22 = arith.constant dense<0xFF800000> : vector<32xf32>
    %40 = vector.multi_reduction <maximumf>, %39, %cst_22 [1] : vector<32x32xf32> to vector<32xf32>
    %41 = vector.shape_cast %40 : vector<32xf32> to vector<32x1xf32>
    %42 = vector.broadcast %41 : vector<32x1xf32> to vector<32x32xf32>
    %43 = arith.subf %39, %42 : vector<32x32xf32>
    %44 = math.exp %43 : vector<32x32xf32>
    %cst_23 = arith.constant dense<0.000000e+00> : vector<32xf32>
    %45 = vector.multi_reduction <add>, %44, %cst_23 [1] : vector<32x32xf32> to vector<32xf32>
    %46 = vector.shape_cast %45 : vector<32xf32> to vector<32x1xf32>
    %47 = tpu.reciprocal %46 {approx = true} : vector<32x1xf32> -> vector<32x1xf32>
    %48 = vector.broadcast %47 : vector<32x1xf32> to vector<32x32xf32>
    %49 = arith.mulf %44, %48 : vector<32x32xf32>
    %50 = arith.truncf %49 : vector<32x32xf32> to vector<32x32xbf16>
    %cst_24 = arith.constant dense<0.000000e+00> : vector<32x16xf32>
    %51 = tpu.matmul %50, %37, %cst_24 {dimension_numbers = #tpu.dot_dimension_numbers<[1], [0], [0], [1], [0, 0, 1, 1], [], []>} : vector<32x32xbf16>, vector<32x16xbf16>, vector<32x16xf32> -> vector<32x16xf32>
    %52 = arith.truncf %51 : vector<32x16xf32> to vector<32x16xbf16>
    %53 = vector.extract_strided_slice %30 {offsets = [0, 0], sizes = [16, 32], strides = [1, 1]} : vector<32x32xbf16> to vector<16x32xbf16>
    %cst_25 = arith.constant dense<0.000000e+00> : vector<32x32xf32>
    %54 = tpu.matmul %52, %53, %cst_25 {dimension_numbers = #tpu.dot_dimension_numbers<[1], [0], [0], [1], [0, 0, 1, 1], [], []>} : vector<32x16xbf16>, vector<16x32xbf16>, vector<32x32xf32> -> vector<32x32xf32>
    %55 = arith.addf %31, %54 : vector<32x32xf32>
    %56 = vector.extract_strided_slice %21 {offsets = [0, 16], sizes = [32, 16], strides = [1, 1]} : vector<32x32xf32> to vector<32x16xf32>
    %57 = arith.truncf %56 : vector<32x16xf32> to vector<32x16xbf16>
    %58 = vector.extract_strided_slice %25 {offsets = [0, 16], sizes = [32, 16], strides = [1, 1]} : vector<32x32xf32> to vector<32x16xf32>
    %59 = arith.truncf %58 : vector<32x16xf32> to vector<32x16xbf16>
    %60 = vector.extract_strided_slice %29 {offsets = [0, 16], sizes = [32, 16], strides = [1, 1]} : vector<32x32xf32> to vector<32x16xf32>
    %61 = arith.truncf %60 : vector<32x16xf32> to vector<32x16xbf16>
    %cst_26 = arith.constant dense<0.000000e+00> : vector<32x32xf32>
    %62 = tpu.matmul %57, %59, %cst_26 {dimension_numbers = #tpu.dot_dimension_numbers<[1], [1], [0], [0], [0, 0, 1, 0], [], []>} : vector<32x16xbf16>, vector<32x16xbf16>, vector<32x32xf32> -> vector<32x32xf32>
    %63 = arith.addf %62, %5 : vector<32x32xf32>
    %cst_27 = arith.constant dense<0xFF800000> : vector<32xf32>
    %64 = vector.multi_reduction <maximumf>, %63, %cst_27 [1] : vector<32x32xf32> to vector<32xf32>
    %65 = vector.shape_cast %64 : vector<32xf32> to vector<32x1xf32>
    %66 = vector.broadcast %65 : vector<32x1xf32> to vector<32x32xf32>
    %67 = arith.subf %63, %66 : vector<32x32xf32>
    %68 = math.exp %67 : vector<32x32xf32>
    %cst_28 = arith.constant dense<0.000000e+00> : vector<32xf32>
    %69 = vector.multi_reduction <add>, %68, %cst_28 [1] : vector<32x32xf32> to vector<32xf32>
    %70 = vector.shape_cast %69 : vector<32xf32> to vector<32x1xf32>
    %71 = tpu.reciprocal %70 {approx = true} : vector<32x1xf32> -> vector<32x1xf32>
    %72 = vector.broadcast %71 : vector<32x1xf32> to vector<32x32xf32>
    %73 = arith.mulf %68, %72 : vector<32x32xf32>
    %74 = arith.truncf %73 : vector<32x32xf32> to vector<32x32xbf16>
    %cst_29 = arith.constant dense<0.000000e+00> : vector<32x16xf32>
    %75 = tpu.matmul %74, %61, %cst_29 {dimension_numbers = #tpu.dot_dimension_numbers<[1], [0], [0], [1], [0, 0, 1, 1], [], []>} : vector<32x32xbf16>, vector<32x16xbf16>, vector<32x16xf32> -> vector<32x16xf32>
    %76 = arith.truncf %75 : vector<32x16xf32> to vector<32x16xbf16>
    %77 = vector.extract_strided_slice %30 {offsets = [16, 0], sizes = [16, 32], strides = [1, 1]} : vector<32x32xbf16> to vector<16x32xbf16>
    %cst_30 = arith.constant dense<0.000000e+00> : vector<32x32xf32>
    %78 = tpu.matmul %76, %77, %cst_30 {dimension_numbers = #tpu.dot_dimension_numbers<[1], [0], [0], [1], [0, 0, 1, 1], [], []>} : vector<32x16xbf16>, vector<16x32xbf16>, vector<32x32xf32> -> vector<32x32xf32>
    %79 = arith.addf %55, %78 : vector<32x32xf32>
    %80 = vector.broadcast %10 : vector<1x32xf32> to vector<32x32xf32>
    %81 = arith.addf %79, %80 : vector<32x32xf32>
    %82 = arith.addf %81, %0 : vector<32x32xf32>
    %cst_31 = arith.constant dense<0.000000e+00> : vector<32xf32>
    %83 = vector.multi_reduction <add>, %82, %cst_31 [1] : vector<32x32xf32> to vector<32xf32>
    %84 = vector.shape_cast %83 : vector<32xf32> to vector<32x1xf32>
    %cst_32 = arith.constant 3.200000e+01 : f32
    %85 = vector.broadcast %cst_32 : f32 to vector<32x1xf32>
    %86 = arith.divf %84, %85 : vector<32x1xf32>
    %87 = vector.broadcast %86 : vector<32x1xf32> to vector<32x32xf32>
    %88 = arith.subf %82, %87 : vector<32x32xf32>
    %89 = arith.mulf %88, %88 : vector<32x32xf32>
    %cst_33 = arith.constant dense<0.000000e+00> : vector<32xf32>
    %90 = vector.multi_reduction <add>, %89, %cst_33 [1] : vector<32x32xf32> to vector<32xf32>
    %91 = vector.shape_cast %90 : vector<32xf32> to vector<32x1xf32>
    %cst_34 = arith.constant 3.200000e+01 : f32
    %92 = vector.broadcast %cst_34 : f32 to vector<32x1xf32>
    %93 = arith.divf %91, %92 : vector<32x1xf32>
    %94 = vector.broadcast %86 : vector<32x1xf32> to vector<32x32xf32>
    %95 = arith.subf %82, %94 : vector<32x32xf32>
    %cst_35 = arith.constant 9.99999996E-13 : f32
    %96 = vector.broadcast %cst_35 : f32 to vector<32x1xf32>
    %97 = arith.addf %93, %96 : vector<32x1xf32>
    %98 = math.rsqrt %97 : vector<32x1xf32>
    %99 = vector.broadcast %98 : vector<32x1xf32> to vector<32x32xf32>
    %100 = arith.mulf %95, %99 : vector<32x32xf32>
    %101 = vector.broadcast %11 : vector<1x32xf32> to vector<32x32xf32>
    %102 = arith.mulf %100, %101 : vector<32x32xf32>
    %103 = vector.broadcast %12 : vector<1x32xf32> to vector<32x32xf32>
    %104 = arith.addf %102, %103 : vector<32x32xf32>
    %105 = arith.truncf %104 : vector<32x32xf32> to vector<32x32xbf16>
    %c0_36 = arith.constant 0 : index
    %c0_37 = arith.constant 0 : index
    %106 = vector.load %arg8[%c0_36, %c0_37] : memref<32x64xbf16, #tpu.memory_space<vmem>>, vector<32x64xbf16>
    %cst_38 = arith.constant dense<0.000000e+00> : vector<32x64xf32>
    %107 = tpu.matmul %105, %106, %cst_38 {dimension_numbers = #tpu.dot_dimension_numbers<[1], [0], [0], [1], [0, 0, 1, 1], [], []>} : vector<32x32xbf16>, vector<32x64xbf16>, vector<32x64xf32> -> vector<32x64xf32>
    %108 = vector.broadcast %16 : vector<1x64xf32> to vector<32x64xf32>
    %109 = arith.addf %107, %108 : vector<32x64xf32>
    %cst_39 = arith.constant 5.000000e-01 : f32
    %110 = vector.broadcast %cst_39 : f32 to vector<32x64xf32>
    %111 = arith.mulf %110, %109 : vector<32x64xf32>
    %cst_40 = arith.constant 4.471500e-02 : f32
    %112 = vector.broadcast %cst_40 : f32 to vector<32x64xf32>
    %113 = arith.mulf %112, %109 : vector<32x64xf32>
    %114 = arith.mulf %113, %109 : vector<32x64xf32>
    %115 = arith.mulf %114, %109 : vector<32x64xf32>
    %116 = arith.addf %109, %115 : vector<32x64xf32>
    %cst_41 = arith.constant 0.797884583 : f32
    %117 = vector.broadcast %cst_41 : f32 to vector<32x64xf32>
    %118 = arith.mulf %117, %116 : vector<32x64xf32>
    %119 = math.tanh %118 : vector<32x64xf32>
    %cst_42 = arith.constant 1.000000e+00 : f32
    %120 = vector.broadcast %cst_42 : f32 to vector<32x64xf32>
    %121 = arith.addf %120, %119 : vector<32x64xf32>
    %122 = arith.mulf %111, %121 : vector<32x64xf32>
    %123 = arith.truncf %122 : vector<32x64xf32> to vector<32x64xbf16>
    %c0_43 = arith.constant 0 : index
    %c0_44 = arith.constant 0 : index
    %124 = vector.load %arg9[%c0_43, %c0_44] : memref<64x32xbf16, #tpu.memory_space<vmem>>, vector<64x32xbf16>
    %cst_45 = arith.constant dense<0.000000e+00> : vector<32x32xf32>
    %125 = tpu.matmul %123, %124, %cst_45 {dimension_numbers = #tpu.dot_dimension_numbers<[1], [0], [0], [1], [0, 0, 1, 1], [], []>} : vector<32x64xbf16>, vector<64x32xbf16>, vector<32x32xf32> -> vector<32x32xf32>
    %126 = vector.broadcast %13 : vector<1x32xf32> to vector<32x32xf32>
    %127 = arith.addf %125, %126 : vector<32x32xf32>
    %128 = arith.addf %127, %104 : vector<32x32xf32>
    %cst_46 = arith.constant dense<0.000000e+00> : vector<32xf32>
    %129 = vector.multi_reduction <add>, %128, %cst_46 [1] : vector<32x32xf32> to vector<32xf32>
    %130 = vector.shape_cast %129 : vector<32xf32> to vector<32x1xf32>
    %cst_47 = arith.constant 3.200000e+01 : f32
    %131 = vector.broadcast %cst_47 : f32 to vector<32x1xf32>
    %132 = arith.divf %130, %131 : vector<32x1xf32>
    %133 = vector.broadcast %132 : vector<32x1xf32> to vector<32x32xf32>
    %134 = arith.subf %128, %133 : vector<32x32xf32>
    %135 = arith.mulf %134, %134 : vector<32x32xf32>
    %cst_48 = arith.constant dense<0.000000e+00> : vector<32xf32>
    %136 = vector.multi_reduction <add>, %135, %cst_48 [1] : vector<32x32xf32> to vector<32xf32>
    %137 = vector.shape_cast %136 : vector<32xf32> to vector<32x1xf32>
    %cst_49 = arith.constant 3.200000e+01 : f32
    %138 = vector.broadcast %cst_49 : f32 to vector<32x1xf32>
    %139 = arith.divf %137, %138 : vector<32x1xf32>
    %140 = vector.broadcast %132 : vector<32x1xf32> to vector<32x32xf32>
    %141 = arith.subf %128, %140 : vector<32x32xf32>
    %cst_50 = arith.constant 9.99999996E-13 : f32
    %142 = vector.broadcast %cst_50 : f32 to vector<32x1xf32>
    %143 = arith.addf %139, %142 : vector<32x1xf32>
    %144 = math.rsqrt %143 : vector<32x1xf32>
    %145 = vector.broadcast %144 : vector<32x1xf32> to vector<32x32xf32>
    %146 = arith.mulf %141, %145 : vector<32x32xf32>
    %147 = vector.broadcast %14 : vector<1x32xf32> to vector<32x32xf32>
    %148 = arith.mulf %146, %147 : vector<32x32xf32>
    %149 = vector.broadcast %15 : vector<1x32xf32> to vector<32x32xf32>
    %150 = arith.addf %148, %149 : vector<32x32xf32>
    %c0_51 = arith.constant 0 : index
    %c0_52 = arith.constant 0 : index
    %151 = vector.load %arg12[%c0_51, %c0_52] : memref<32x32xf32, #tpu.memory_space<vmem>>, vector<32x32xf32>
    tpu.vector_store %arg12[%c0_51, %c0_52], %150 {strides = array<i32>} : memref<32x32xf32, #tpu.memory_space<vmem>>, vector<32x32xf32>,
    return
  }
  func.func @transform_0(%arg0: i32) -> (i32, i32) {
    %c0_i32 = arith.constant 0 : i32
    %c0_i32_0 = arith.constant 0 : i32
    return %arg0, %c0_i32 : i32, i32
  }
  func.func @transform_1(%arg0: i32) -> (i32, i32, i32) {
    %c0_i32 = arith.constant 0 : i32
    %c0_i32_0 = arith.constant 0 : i32
    %c0_i32_1 = arith.constant 0 : i32
    return %arg0, %c0_i32, %c0_i32_0 : i32, i32, i32
  }
  func.func @transform_2(%arg0: i32) -> (i32, i32) {
    %c0_i32 = arith.constant 0 : i32
    %c0_i32_0 = arith.constant 0 : i32
    %c0_i32_1 = arith.constant 0 : i32
    return %c0_i32, %c0_i32_0 : i32, i32
  }
  func.func @transform_3(%arg0: i32) -> (i32, i32) {
    %c0_i32 = arith.constant 0 : i32
    %c0_i32_0 = arith.constant 0 : i32
    %c0_i32_1 = arith.constant 0 : i32
    return %c0_i32, %c0_i32_0 : i32, i32
  }
  func.func @transform_4(%arg0: i32) -> (i32, i32) {
    %c0_i32 = arith.constant 0 : i32
    %c0_i32_0 = arith.constant 0 : i32
    %c0_i32_1 = arith.constant 0 : i32
    return %c0_i32, %c0_i32_0 : i32, i32
  }
  func.func @transform_5(%arg0: i32) -> (i32, i32) {
    %c0_i32 = arith.constant 0 : i32
    %c0_i32_0 = arith.constant 0 : i32
    %c0_i32_1 = arith.constant 0 : i32
    return %c0_i32, %c0_i32_0 : i32, i32
  }
  func.func @transform_6(%arg0: i32) -> (i32, i32) {
    %c0_i32 = arith.constant 0 : i32
    %c0_i32_0 = arith.constant 0 : i32
    %c0_i32_1 = arith.constant 0 : i32
    return %c0_i32, %c0_i32_0 : i32, i32
  }
  func.func @transform_7(%arg0: i32) -> (i32, i32) {
    %c0_i32 = arith.constant 0 : i32
    %c0_i32_0 = arith.constant 0 : i32
    %c0_i32_1 = arith.constant 0 : i32
    return %c0_i32, %c0_i32_0 : i32, i32
  }
  func.func @transform_8(%arg0: i32) -> (i32, i32) {
    %c0_i32 = arith.constant 0 : i32
    %c0_i32_0 = arith.constant 0 : i32
    %c0_i32_1 = arith.constant 0 : i32
    return %c0_i32, %c0_i32_0 : i32, i32
  }
  func.func @transform_9(%arg0: i32) -> (i32, i32) {
    %c0_i32 = arith.constant 0 : i32
    %c0_i32_0 = arith.constant 0 : i32
    %c0_i32_1 = arith.constant 0 : i32
    return %c0_i32, %c0_i32_0 : i32, i32
  }
  func.func @transform_10(%arg0: i32) -> (i32, i32) {
    %c0_i32 = arith.constant 0 : i32
    %c0_i32_0 = arith.constant 0 : i32
    %c0_i32_1 = arith.constant 0 : i32
    return %c0_i32, %c0_i32_0 : i32, i32
  }
  func.func @transform_11(%arg0: i32) -> (i32, i32) {
    %c0_i32 = arith.constant 0 : i32
    %c0_i32_0 = arith.constant 0 : i32
    return %arg0, %c0_i32 : i32, i32
  }
}

module attributes {stable_mosaic.version = 11 : i64} {
  func.func @_transformer_layer_kernel(%arg0: i32, %arg1: memref<32x32xf32, #tpu.memory_space<vmem>>, %arg2: memref<1x1x32xf32, #tpu.memory_space<vmem>>, %arg3: memref<32x32xf32, #tpu.memory_space<vmem>>, %arg4: memref<32x32xbf16, #tpu.memory_space<vmem>>, %arg5: memref<32x32xbf16, #tpu.memory_space<vmem>>, %arg6: memref<32x32xbf16, #tpu.memory_space<vmem>>, %arg7: memref<32x32xbf16, #tpu.memory_space<vmem>>, %arg8: memref<32x64xbf16, #tpu.memory_space<vmem>>, %arg9: memref<64x32xbf16, #tpu.memory_space<vmem>>, %arg10: memref<9x32xf32, #tpu.memory_space<vmem>>, %arg11: memref<1x64xf32, #tpu.memory_space<vmem>>, %arg12: memref<32x32xf32, #tpu.memory_space<vmem>>) attributes {dimension_semantics = [#tpu.dimension_semantics<parallel>], iteration_bounds = array<i64: 2>, scalar_prefetch = 0 : i64, scratch_operands = 0 : i64, tpu.core_type = #tpu.core_type<tc>, window_params = [{transform_indices = @transform_0, window_bounds = array<i64: 32, 32>}, {transform_indices = @transform_1, window_bounds = array<i64: 1, 1, 32>}, {pipeline_mode = #tpu.pipeline_mode<synchronous>, transform_indices = @transform_2, window_bounds = array<i64: 32, 32>}, {pipeline_mode = #tpu.pipeline_mode<synchronous>, transform_indices = @transform_3, window_bounds = array<i64: 32, 32>}, {pipeline_mode = #tpu.pipeline_mode<synchronous>, transform_indices = @transform_4, window_bounds = array<i64: 32, 32>}, {pipeline_mode = #tpu.pipeline_mode<synchronous>, transform_indices = @transform_5, window_bounds = array<i64: 32, 32>}, {pipeline_mode = #tpu.pipeline_mode<synchronous>, transform_indices = @transform_6, window_bounds = array<i64: 32, 32>}, {pipeline_mode = #tpu.pipeline_mode<synchronous>, transform_indices = @transform_7, window_bounds = array<i64: 32, 64>}, {pipeline_mode = #tpu.pipeline_mode<synchronous>, transform_indices = @transform_8, window_bounds = array<i64: 64, 32>}, {pipeline_mode = #tpu.pipeline_mode<synchronous>, transform_indices = @transform_9, window_bounds = array<i64: 9, 32>}, {pipeline_mode = #tpu.pipeline_mode<synchronous>, transform_indices = @transform_10, window_bounds = array<i64: 1, 64>}, {transform_indices = @transform_11, window_bounds = array<i64: 32, 32>}]} {
    %c0 = arith.constant 0 : index
    %c0_0 = arith.constant 0 : index
    %0 = vector.load %arg1[%c0, %c0_0] : memref<32x32xf32, #tpu.memory_space<vmem>>, vector<32x32xf32>
    %c0_1 = arith.constant 0 : index
    %c0_2 = arith.constant 0 : index
    %1 = vector.load %arg3[%c0_1, %c0_2] : memref<32x32xf32, #tpu.memory_space<vmem>>, vector<32x32xf32>
    %c0_3 = arith.constant 0 : index
    %c0_4 = arith.constant 0 : index
    %c0_5 = arith.constant 0 : index
    %2 = vector.load %arg2[%c0_3, %c0_4, %c0_5] : memref<1x1x32xf32, #tpu.memory_space<vmem>>, vector<1x1x32xf32>
    %3 = vector.shape_cast %2 : vector<1x1x32xf32> to vector<1x32xf32>
    %4 = vector.broadcast %3 : vector<1x32xf32> to vector<32x32xf32>
    %5 = arith.addf %1, %4 : vector<32x32xf32>
    %c0_6 = arith.constant 0 : index
    %c0_7 = arith.constant 0 : index
    %6 = vector.load %arg10[%c0_6, %c0_7] : memref<9x32xf32, #tpu.memory_space<vmem>>, vector<9x32xf32>
    %7 = vector.extract_strided_slice %6 {offsets = [0, 0], sizes = [1, 32], strides = [1, 1]} : vector<9x32xf32> to vector<1x32xf32>
    %8 = vector.extract_strided_slice %6 {offsets = [1, 0], sizes = [1, 32], strides = [1, 1]} : vector<9x32xf32> to vector<1x32xf32>
    %9 = vector.extract_strided_slice %6 {offsets = [2, 0], sizes = [1, 32], strides = [1, 1]} : vector<9x32xf32> to vector<1x32xf32>
    %10 = vector.extract_strided_slice %6 {offsets = [3, 0], sizes = [1, 32], strides = [1, 1]} : vector<9x32xf32> to vector<1x32xf32>
    %11 = vector.extract_strided_slice %6 {offsets = [4, 0], sizes = [1, 32], strides = [1, 1]} : vector<9x32xf32> to vector<1x32xf32>
    %12 = vector.extract_strided_slice %6 {offsets = [5, 0], sizes = [1, 32], strides = [1, 1]} : vector<9x32xf32> to vector<1x32xf32>
    %13 = vector.extract_strided_slice %6 {offsets = [6, 0], sizes = [1, 32], strides = [1, 1]} : vector<9x32xf32> to vector<1x32xf32>
    %14 = vector.extract_strided_slice %6 {offsets = [7, 0], sizes = [1, 32], strides = [1, 1]} : vector<9x32xf32> to vector<1x32xf32>
    %15 = vector.extract_strided_slice %6 {offsets = [8, 0], sizes = [1, 32], strides = [1, 1]} : vector<9x32xf32> to vector<1x32xf32>
    %c0_8 = arith.constant 0 : index
    %c0_9 = arith.constant 0 : index
    %16 = vector.load %arg11[%c0_8, %c0_9] : memref<1x64xf32, #tpu.memory_space<vmem>>, vector<1x64xf32>
    %17 = arith.truncf %0 : vector<32x32xf32> to vector<32x32xbf16>
    %c0_10 = arith.constant 0 : index
    %c0_11 = arith.constant 0 : index
    %18 = vector.load %arg4[%c0_10, %c0_11] : memref<32x32xbf16, #tpu.memory_space<vmem>>, vector<32x32xbf16>
    %cst = arith.constant dense<0.000000e+00> : vector<32x32xf32>
    %19 = tpu.matmul %17, %18, %cst {dimension_numbers = #tpu.dot_dimension_numbers<[1], [0], [0], [1], [0, 0, 1, 1], [], []>} : vector<32x32xbf16>, vector<32x32xbf16>, vector<32x32xf32> -> vector<32x32xf32>
    %20 = vector.broadcast %7 : vector<1x32xf32> to vector<32x32xf32>
    %21 = arith.addf %19, %20 : vector<32x32xf32>
    %c0_12 = arith.constant 0 : index
    %c0_13 = arith.constant 0 : index
    %22 = vector.load %arg5[%c0_12, %c0_13] : memref<32x32xbf16, #tpu.memory_space<vmem>>, vector<32x32xbf16>
    %cst_14 = arith.constant dense<0.000000e+00> : vector<32x32xf32>
    %23 = tpu.matmul %17, %22, %cst_14 {dimension_numbers = #tpu.dot_dimension_numbers<[1], [0], [0], [1], [0, 0, 1, 1], [], []>} : vector<32x32xbf16>, vector<32x32xbf16>, vector<32x32xf32> -> vector<32x32xf32>
    %24 = vector.broadcast %8 : vector<1x32xf32> to vector<32x32xf32>
    %25 = arith.addf %23, %24 : vector<32x32xf32>
    %c0_15 = arith.constant 0 : index
    %c0_16 = arith.constant 0 : index
    %26 = vector.load %arg6[%c0_15, %c0_16] : memref<32x32xbf16, #tpu.memory_space<vmem>>, vector<32x32xbf16>
    %cst_17 = arith.constant dense<0.000000e+00> : vector<32x32xf32>
    %27 = tpu.matmul %17, %26, %cst_17 {dimension_numbers = #tpu.dot_dimension_numbers<[1], [0], [0], [1], [0, 0, 1, 1], [], []>} : vector<32x32xbf16>, vector<32x32xbf16>, vector<32x32xf32> -> vector<32x32xf32>
    %28 = vector.broadcast %9 : vector<1x32xf32> to vector<32x32xf32>
    %29 = arith.addf %27, %28 : vector<32x32xf32>
    %c0_18 = arith.constant 0 : index
    %c0_19 = arith.constant 0 : index
    %30 = vector.load %arg7[%c0_18, %c0_19] : memref<32x32xbf16, #tpu.memory_space<vmem>>, vector<32x32xbf16>
    %cst_20 = arith.constant 0.000000e+00 : f32
    %31 = vector.broadcast %cst_20 : f32 to vector<32x32xf32>
    %32 = vector.extract_strided_slice %21 {offsets = [0, 0], sizes = [32, 16], strides = [1, 1]} : vector<32x32xf32> to vector<32x16xf32>
    %33 = arith.truncf %32 : vector<32x16xf32> to vector<32x16xbf16>
    %34 = vector.extract_strided_slice %25 {offsets = [0, 0], sizes = [32, 16], strides = [1, 1]} : vector<32x32xf32> to vector<32x16xf32>
    %35 = arith.truncf %34 : vector<32x16xf32> to vector<32x16xbf16>
    %36 = vector.extract_strided_slice %29 {offsets = [0, 0], sizes = [32, 16], strides = [1, 1]} : vector<32x32xf32> to vector<32x16xf32>
    %37 = arith.truncf %36 : vector<32x16xf32> to vector<32x16xbf16>
    %cst_21 = arith.constant dense<0.000000e+00> : vector<32x32xf32>
    %38 = tpu.matmul %33, %35, %cst_21 {dimension_numbers = #tpu.dot_dimension_numbers<[1], [1], [0], [0], [0, 0, 1, 0], [], []>} : vector<32x16xbf16>, vector<32x16xbf16>, vector<32x32xf32> -> vector<32x32xf32>
    %39 = arith.addf %38, %5 : vector<32x32xf32>
    %cst_22 = arith.constant dense<0xFF800000> : vector<32xf32>
    %40 = vector.multi_reduction <maximumf>, %39, %cst_22 [1] : vector<32x32xf32> to vector<32xf32>
    %41 = vector.shape_cast %40 : vector<32xf32> to vector<32x1xf32>
    %42 = vector.broadcast %41 : vector<32x1xf32> to vector<32x32xf32>
    %43 = arith.subf %39, %42 : vector<32x32xf32>
    %44 = math.exp %43 : vector<32x32xf32>
    %cst_23 = arith.constant dense<0.000000e+00> : vector<32xf32>
    %45 = vector.multi_reduction <add>, %44, %cst_23 [1] : vector<32x32xf32> to vector<32xf32>
    %46 = vector.shape_cast %45 : vector<32xf32> to vector<32x1xf32>
    %47 = tpu.reciprocal %46 {approx = true} : vector<32x1xf32> -> vector<32x1xf32>
    %48 = vector.broadcast %47 : vector<32x1xf32> to vector<32x32xf32>
    %49 = arith.mulf %44, %48 : vector<32x32xf32>
    %50 = arith.truncf %49 : vector<32x32xf32> to vector<32x32xbf16>
    %cst_24 = arith.constant dense<0.000000e+00> : vector<32x16xf32>
    %51 = tpu.matmul %50, %37, %cst_24 {dimension_numbers = #tpu.dot_dimension_numbers<[1], [0], [0], [1], [0, 0, 1, 1], [], []>} : vector<32x32xbf16>, vector<32x16xbf16>, vector<32x16xf32> -> vector<32x16xf32>
    %52 = arith.truncf %51 : vector<32x16xf32> to vector<32x16xbf16>
    %53 = vector.extract_strided_slice %30 {offsets = [0, 0], sizes = [16, 32], strides = [1, 1]} : vector<32x32xbf16> to vector<16x32xbf16>
    %cst_25 = arith.constant dense<0.000000e+00> : vector<32x32xf32>
    %54 = tpu.matmul %52, %53, %cst_25 {dimension_numbers = #tpu.dot_dimension_numbers<[1], [0], [0], [1], [0, 0, 1, 1], [], []>} : vector<32x16xbf16>, vector<16x32xbf16>, vector<32x32xf32> -> vector<32x32xf32>
    %55 = arith.addf %31, %54 : vector<32x32xf32>
    %56 = vector.extract_strided_slice %21 {offsets = [0, 16], sizes = [32, 16], strides = [1, 1]} : vector<32x32xf32> to vector<32x16xf32>
    %57 = arith.truncf %56 : vector<32x16xf32> to vector<32x16xbf16>
    %58 = vector.extract_strided_slice %25 {offsets = [0, 16], sizes = [32, 16], strides = [1, 1]} : vector<32x32xf32> to vector<32x16xf32>
    %59 = arith.truncf %58 : vector<32x16xf32> to vector<32x16xbf16>
    %60 = vector.extract_strided_slice %29 {offsets = [0, 16], sizes = [32, 16], strides = [1, 1]} : vector<32x32xf32> to vector<32x16xf32>
    %61 = arith.truncf %60 : vector<32x16xf32> to vector<32x16xbf16>
    %cst_26 = arith.constant dense<0.000000e+00> : vector<32x32xf32>
    %62 = tpu.matmul %57, %59, %cst_26 {dimension_numbers = #tpu.dot_dimension_numbers<[1], [1], [0], [0], [0, 0, 1, 0], [], []>} : vector<32x16xbf16>, vector<32x16xbf16>, vector<32x32xf32> -> vector<32x32xf32>
    %63 = arith.addf %62, %5 : vector<32x32xf32>
    %cst_27 = arith.constant dense<0xFF800000> : vector<32xf32>
    %64 = vector.multi_reduction <maximumf>, %63, %cst_27 [1] : vector<32x32xf32> to vector<32xf32>
    %65 = vector.shape_cast %64 : vector<32xf32> to vector<32x1xf32>
    %66 = vector.broadcast %65 : vector<32x1xf32> to vector<32x32xf32>
    %67 = arith.subf %63, %66 : vector<32x32xf32>
    %68 = math.exp %67 : vector<32x32xf32>
    %cst_28 = arith.constant dense<0.000000e+00> : vector<32xf32>
    %69 = vector.multi_reduction <add>, %68, %cst_28 [1] : vector<32x32xf32> to vector<32xf32>
    %70 = vector.shape_cast %69 : vector<32xf32> to vector<32x1xf32>
    %71 = tpu.reciprocal %70 {approx = true} : vector<32x1xf32> -> vector<32x1xf32>
    %72 = vector.broadcast %71 : vector<32x1xf32> to vector<32x32xf32>
    %73 = arith.mulf %68, %72 : vector<32x32xf32>
    %74 = arith.truncf %73 : vector<32x32xf32> to vector<32x32xbf16>
    %cst_29 = arith.constant dense<0.000000e+00> : vector<32x16xf32>
    %75 = tpu.matmul %74, %61, %cst_29 {dimension_numbers = #tpu.dot_dimension_numbers<[1], [0], [0], [1], [0, 0, 1, 1], [], []>} : vector<32x32xbf16>, vector<32x16xbf16>, vector<32x16xf32> -> vector<32x16xf32>
    %76 = arith.truncf %75 : vector<32x16xf32> to vector<32x16xbf16>
    %77 = vector.extract_strided_slice %30 {offsets = [16, 0], sizes = [16, 32], strides = [1, 1]} : vector<32x32xbf16> to vector<16x32xbf16>
    %cst_30 = arith.constant dense<0.000000e+00> : vector<32x32xf32>
    %78 = tpu.matmul %76, %77, %cst_30 {dimension_numbers = #tpu.dot_dimension_numbers<[1], [0], [0], [1], [0, 0, 1, 1], [], []>} : vector<32x16xbf16>, vector<16x32xbf16>, vector<32x32xf32> -> vector<32x32xf32>
    %79 = arith.addf %55, %78 : vector<32x32xf32>
    %80 = vector.broadcast %10 : vector<1x32xf32> to vector<32x32xf32>
    %81 = arith.addf %79, %80 : vector<32x32xf32>
    %82 = arith.addf %81, %0 : vector<32x32xf32>
    %cst_31 = arith.constant dense<0.000000e+00> : vector<32xf32>
    %83 = vector.multi_reduction <add>, %82, %cst_31 [1] : vector<32x32xf32> to vector<32xf32>
    %84 = vector.shape_cast %83 : vector<32xf32> to vector<32x1xf32>
    %cst_32 = arith.constant 3.200000e+01 : f32
    %85 = vector.broadcast %cst_32 : f32 to vector<32x1xf32>
    %86 = arith.divf %84, %85 : vector<32x1xf32>
    %87 = vector.broadcast %86 : vector<32x1xf32> to vector<32x32xf32>
    %88 = arith.subf %82, %87 : vector<32x32xf32>
    %89 = arith.mulf %88, %88 : vector<32x32xf32>
    %cst_33 = arith.constant dense<0.000000e+00> : vector<32xf32>
    %90 = vector.multi_reduction <add>, %89, %cst_33 [1] : vector<32x32xf32> to vector<32xf32>
    %91 = vector.shape_cast %90 : vector<32xf32> to vector<32x1xf32>
    %cst_34 = arith.constant 3.200000e+01 : f32
    %92 = vector.broadcast %cst_34 : f32 to vector<32x1xf32>
    %93 = arith.divf %91, %92 : vector<32x1xf32>
    %94 = vector.broadcast %86 : vector<32x1xf32> to vector<32x32xf32>
    %95 = arith.subf %82, %94 : vector<32x32xf32>
    %cst_35 = arith.constant 9.99999996E-13 : f32
    %96 = vector.broadcast %cst_35 : f32 to vector<32x1xf32>
    %97 = arith.addf %93, %96 : vector<32x1xf32>
    %98 = math.rsqrt %97 : vector<32x1xf32>
    %99 = vector.broadcast %98 : vector<32x1xf32> to vector<32x32xf32>
    %100 = arith.mulf %95, %99 : vector<32x32xf32>
    %101 = vector.broadcast %11 : vector<1x32xf32> to vector<32x32xf32>
    %102 = arith.mulf %100, %101 : vector<32x32xf32>
    %103 = vector.broadcast %12 : vector<1x32xf32> to vector<32x32xf32>
    %104 = arith.addf %102, %103 : vector<32x32xf32>
    %105 = arith.truncf %104 : vector<32x32xf32> to vector<32x32xbf16>
    %c0_36 = arith.constant 0 : index
    %c0_37 = arith.constant 0 : index
    %106 = vector.load %arg8[%c0_36, %c0_37] : memref<32x64xbf16, #tpu.memory_space<vmem>>, vector<32x64xbf16>
    %cst_38 = arith.constant dense<0.000000e+00> : vector<32x64xf32>
    %107 = tpu.matmul %105, %106, %cst_38 {dimension_numbers = #tpu.dot_dimension_numbers<[1], [0], [0], [1], [0, 0, 1, 1], [], []>} : vector<32x32xbf16>, vector<32x64xbf16>, vector<32x64xf32> -> vector<32x64xf32>
    %108 = vector.broadcast %16 : vector<1x64xf32> to vector<32x64xf32>
    %109 = arith.addf %107, %108 : vector<32x64xf32>
    %cst_39 = arith.constant 5.000000e-01 : f32
    %110 = vector.broadcast %cst_39 : f32 to vector<32x64xf32>
    %111 = arith.mulf %110, %109 : vector<32x64xf32>
    %cst_40 = arith.constant 4.471500e-02 : f32
    %112 = vector.broadcast %cst_40 : f32 to vector<32x64xf32>
    %113 = arith.mulf %112, %109 : vector<32x64xf32>
    %114 = arith.mulf %113, %109 : vector<32x64xf32>
    %115 = arith.mulf %114, %109 : vector<32x64xf32>
    %116 = arith.addf %109, %115 : vector<32x64xf32>
    %cst_41 = arith.constant 0.797884583 : f32
    %117 = vector.broadcast %cst_41 : f32 to vector<32x64xf32>
    %118 = arith.mulf %117, %116 : vector<32x64xf32>
    %119 = math.tanh %118 : vector<32x64xf32>
    %cst_42 = arith.constant 1.000000e+00 : f32
    %120 = vector.broadcast %cst_42 : f32 to vector<32x64xf32>
    %121 = arith.addf %120, %119 : vector<32x64xf32>
    %122 = arith.mulf %111, %121 : vector<32x64xf32>
    %123 = arith.truncf %122 : vector<32x64xf32> to vector<32x64xbf16>
    %c0_43 = arith.constant 0 : index
    %c0_44 = arith.constant 0 : index
    %124 = vector.load %arg9[%c0_43, %c0_44] : memref<64x32xbf16, #tpu.memory_space<vmem>>, vector<64x32xbf16>
    %cst_45 = arith.constant dense<0.000000e+00> : vector<32x32xf32>
    %125 = tpu.matmul %123, %124, %cst_45 {dimension_numbers = #tpu.dot_dimension_numbers<[1], [0], [0], [1], [0, 0, 1, 1], [], []>} : vector<32x64xbf16>, vector<64x32xbf16>, vector<32x32xf32> -> vector<32x32xf32>
    %126 = vector.broadcast %13 : vector<1x32xf32> to vector<32x32xf32>
    %127 = arith.addf %125, %126 : vector<32x32xf32>
    %128 = arith.addf %127, %104 : vector<32x32xf32>
    %cst_46 = arith.constant dense<0.000000e+00> : vector<32xf32>
    %129 = vector.multi_reduction <add>, %128, %cst_46 [1] : vector<32x32xf32> to vector<32xf32>
    %130 = vector.shape_cast %129 : vector<32xf32> to vector<32x1xf32>
    %cst_47 = arith.constant 3.200000e+01 : f32
    %131 = vector.broadcast %cst_47 : f32 to vector<32x1xf32>
    %132 = arith.divf %130, %131 : vector<32x1xf32>
    %133 = vector.broadcast %132 : vector<32x1xf32> to vector<32x32xf32>
    %134 = arith.subf %128, %133 : vector<32x32xf32>
    %135 = arith.mulf %134, %134 : vector<32x32xf32>
    %cst_48 = arith.constant dense<0.000000e+00> : vector<32xf32>
    %136 = vector.multi_reduction <add>, %135, %cst_48 [1] : vector<32x32xf32> to vector<32xf32>
    %137 = vector.shape_cast %136 : vector<32xf32> to vector<32x1xf32>
    %cst_49 = arith.constant 3.200000e+01 : f32
    %138 = vector.broadcast %cst_49 : f32 to vector<32x1xf32>
    %139 = arith.divf %137, %138 : vector<32x1xf32>
    %140 = vector.broadcast %132 : vector<32x1xf32> to vector<32x32xf32>
    %141 = arith.subf %128, %140 : vector<32x32xf32>
    %cst_50 = arith.constant 9.99999996E-13 : f32
    %142 = vector.broadcast %cst_50 : f32 to vector<32x1xf32>
    %143 = arith.addf %139, %142 : vector<32x1xf32>
    %144 = math.rsqrt %143 : vector<32x1xf32>
    %145 = vector.broadcast %144 : vector<32x1xf32> to vector<32x32xf32>
    %146 = arith.mulf %141, %145 : vector<32x32xf32>
    %147 = vector.broadcast %14 : vector<1x32xf32> to vector<32x32xf32>
    %148 = arith.mulf %146, %147 : vector<32x32xf32>
    %149 = vector.broadcast %15 : vector<1x32xf32> to vector<32x32xf32>
    %150 = arith.addf %148, %149 : vector<32x32xf32>
    %c0_51 = arith.constant 0 : index
    %c0_52 = arith.constant 0 : index
    %151 = vector.load %arg12[%c0_51, %c0_52] : memref<32x32xf32, #tpu.memory_space<vmem>>, vector<32x32xf32>
    tpu.vector_store %arg12[%c0_51, %c0_52], %150 {strides = array<i32>} : memref<32x32xf32, #tpu.memory_space<vmem>>, vector<32x32xf32>,
    return
  }
  func.func @transform_0(%arg0: i32) -> (i32, i32) {
    %c0_i32 = arith.constant 0 : i32
    %c0_i32_0 = arith.constant 0 : i32
    return %arg0, %c0_i32 : i32, i32
  }
  func.func @transform_1(%arg0: i32) -> (i32, i32, i32) {
    %c0_i32 = arith.constant 0 : i32
    %c0_i32_0 = arith.constant 0 : i32
    %c0_i32_1 = arith.constant 0 : i32
    return %arg0, %c0_i32, %c0_i32_0 : i32, i32, i32
  }
  func.func @transform_2(%arg0: i32) -> (i32, i32) {
    %c0_i32 = arith.constant 0 : i32
    %c0_i32_0 = arith.constant 0 : i32
    %c0_i32_1 = arith.constant 0 : i32
    return %c0_i32, %c0_i32_0 : i32, i32
  }
  func.func @transform_3(%arg0: i32) -> (i32, i32) {
    %c0_i32 = arith.constant 0 : i32
    %c0_i32_0 = arith.constant 0 : i32
    %c0_i32_1 = arith.constant 0 : i32
    return %c0_i32, %c0_i32_0 : i32, i32
  }
  func.func @transform_4(%arg0: i32) -> (i32, i32) {
    %c0_i32 = arith.constant 0 : i32
    %c0_i32_0 = arith.constant 0 : i32
    %c0_i32_1 = arith.constant 0 : i32
    return %c0_i32, %c0_i32_0 : i32, i32
  }
  func.func @transform_5(%arg0: i32) -> (i32, i32) {
    %c0_i32 = arith.constant 0 : i32
    %c0_i32_0 = arith.constant 0 : i32
    %c0_i32_1 = arith.constant 0 : i32
    return %c0_i32, %c0_i32_0 : i32, i32
  }
  func.func @transform_6(%arg0: i32) -> (i32, i32) {
    %c0_i32 = arith.constant 0 : i32
    %c0_i32_0 = arith.constant 0 : i32
    %c0_i32_1 = arith.constant 0 : i32
    return %c0_i32, %c0_i32_0 : i32, i32
  }
  func.func @transform_7(%arg0: i32) -> (i32, i32) {
    %c0_i32 = arith.constant 0 : i32
    %c0_i32_0 = arith.constant 0 : i32
    %c0_i32_1 = arith.constant 0 : i32
    return %c0_i32, %c0_i32_0 : i32, i32
  }
  func.func @transform_8(%arg0: i32) -> (i32, i32) {
    %c0_i32 = arith.constant 0 : i32
    %c0_i32_0 = arith.constant 0 : i32
    %c0_i32_1 = arith.constant 0 : i32
    return %c0_i32, %c0_i32_0 : i32, i32
  }
  func.func @transform_9(%arg0: i32) -> (i32, i32) {
    %c0_i32 = arith.constant 0 : i32
    %c0_i32_0 = arith.constant 0 : i32
    %c0_i32_1 = arith.constant 0 : i32
    return %c0_i32, %c0_i32_0 : i32, i32
  }
  func.func @transform_10(%arg0: i32) -> (i32, i32) {
    %c0_i32 = arith.constant 0 : i32
    %c0_i32_0 = arith.constant 0 : i32
    %c0_i32_1 = arith.constant 0 : i32
    return %c0_i32, %c0_i32_0 : i32, i32
  }
  func.func @transform_11(%arg0: i32) -> (i32, i32) {
    %c0_i32 = arith.constant 0 : i32
    %c0_i32_0 = arith.constant 0 : i32
    return %arg0, %c0_i32 : i32, i32
  }
}

</mosaic_0001>

<llo_original>
// kernel: tpu_custom_call.1
$region0: #{tpu_custom_call.1}
  #allocation0 [shape = 'u32[]', space=smem, size = 0x4, offset = 0x4, fixed_abs, tag = 'smem constant byte address 0x4 - core index']
  #allocation1 [shape = 'u32[72,128]{1,0:T(1,128)}', space=vmem, size = 0x9000, scoped, tag = 'internal scratch']
  %s0 = inlined_call_operand.vmem [shape: f32[64,32], index: 0, kind: input, shape index: {}]
  %s1 = inlined_call_operand.hbm [shape: f32[2,1,32], index: 1, kind: input, shape index: {}]
  %s2 = inlined_call_operand.vmem [shape: f32[32,32], index: 2, kind: input, shape index: {}]
  %s3 = inlined_call_operand.vmem [shape: bf16[32,32], index: 3, kind: input, shape index: {}]
  %s4 = inlined_call_operand.vmem [shape: bf16[32,32], index: 4, kind: input, shape index: {}]
  %s5 = inlined_call_operand.vmem [shape: bf16[32,32], index: 5, kind: input, shape index: {}]
  %s6 = inlined_call_operand.vmem [shape: bf16[32,32], index: 6, kind: input, shape index: {}]
  %s7 = inlined_call_operand.vmem [shape: bf16[32,64], index: 7, kind: input, shape index: {}]
  %s8 = inlined_call_operand.vmem [shape: bf16[64,32], index: 8, kind: input, shape index: {}]
  %s9 = inlined_call_operand.hbm [shape: f32[9,32], index: 9, kind: input, shape index: {}]
  %s10 = inlined_call_operand.vmem [shape: f32[1,64], index: 10, kind: input, shape index: {}]
  %s11 = inlined_call_operand.vmem [shape: f32[64,32], index: 11, kind: output, shape index: {}]
  %s12 = sld [smem:[#allocation0]]
  $region85: #{tpu_custom_call.1} parent=0
    _
  %s14 = ssub.s32 1, %s12
  %s15 = scalar_select 0, %s14, %s12
  $region1: #{tpu_custom_call.1} parent=0
    #allocation2 [shape = 'u8[1024]{0}', space=vmem, size = 0x400, scoped, tag = 'input window, operand 1']
    #allocation3 [shape = 's32[2]{0}', space=sflag, size = 0x8, scoped, tag = 'scoped memory for tpu_custom_call.1']
    #allocation4 [shape = 'u8[8192]{0}', space=vmem, size = 0x2000, scoped, tag = 'input window, operand 9, single buffered']
    #allocation5 [shape = 's32[1]{0}', space=sflag, size = 0x4, scoped, tag = 'scoped memory for tpu_custom_call.1']
    %16 = vsyncpa [#allocation3], 0
    %s17 = scalar_lea.sflag [#allocation3], 1
    %18 = vsyncpa %s17, 0
    %19 = vsyncpa [#allocation5], 0
    loop: start=0, step=1, limit=4
    $region2: #{tpu_custom_call.1} parent=1 // loop_pre_header
      _
    $region3: #{tpu_custom_call.1} parent=1 // loop_header
      %s21 = sphi 0, %s25
      %p22 = scmp.ge.s32.totalorder %s21, 4
      %s31 = sphi 0, %s33
      %s34 = sphi 0, %s31
      %s35 = sphi 0, %s34
      %s51 = sphi 0, %s35
      %s57 = sphi 0, %s59
      %s60 = sphi 0, %s57
      %s61 = sphi 0, %s60
      %s77 = sphi 0, %s61
      %s81 = sphi 0, %s81
      %s83 = sphi 0, %s81
      %s84 = sphi 0, %s83
      %s98 = sphi 0, %s84
      %s102 = sphi 0, %s102
      %s104 = sphi 0, %s102
      %s105 = sphi 0, %s104
      %s119 = sphi 0, %s105
      %s123 = sphi 0, %s123
      %s125 = sphi 0, %s123
      %s126 = sphi 0, %s125
      %s140 = sphi 0, %s126
      %s144 = sphi 0, %s144
      %s146 = sphi 0, %s144
      %s147 = sphi 0, %s146
      %s161 = sphi 0, %s147
      %s165 = sphi 0, %s165
      %s167 = sphi 0, %s165
      %s168 = sphi 0, %s167
      %s182 = sphi 0, %s168
      %s186 = sphi 0, %s186
      %s188 = sphi 0, %s186
      %s189 = sphi 0, %s188
      %s203 = sphi 0, %s189
      %s207 = sphi 0, %s207
      %s209 = sphi 0, %s207
      %s210 = sphi 0, %s209
      %s224 = sphi 0, %s210
      %s228 = sphi 0, %s228
      %s230 = sphi 0, %s228
      %s231 = sphi 0, %s230
      %s245 = sphi 0, %s231
      %s249 = sphi 0, %s249
      %s251 = sphi 0, %s249
      %s252 = sphi 0, %s251
      %s266 = sphi 0, %s252
      %s272 = sphi 0, %s274
      %s275 = sphi 0, %s272
      %s276 = sphi 0, %s275
      %s292 = sphi 0, %s276
    $region4: #{tpu_custom_call.1} parent=1 // loop_header_branch
      %24 = sbr.rel (%p22) target = $region8
    $region5: #{tpu_custom_call.1} parent=1 // loop_body
      %s26 = ssub.s32 %s21, 1
      %s27 = ssub.s32 %s21, 2
      %s28 = sadd.s32 %s21, 1
      %s29 = ssub.s32 %s21, %s28
      %p30 = scmp.eq.s32.totalorder %s29, 0
      %s32 = sadd.s32 %s31, 1
      %s33 = scalar_select %p30, %s31, %s32
      %p36 = pneg %p30
      %p37 = scmp.eq.s32.totalorder %s21, 1
      %p38 = por %p36, %p37
      %p39 = scmp.ne.s32.totalorder %s31, %s34
      %p40 = scmp.eq.s32.totalorder %s21, 0
      %p41 = por %p39, %p40
      %p42 = scmp.ne.s32.totalorder %s31, %s34
      %p43 = scmp.eq.s32.totalorder %s26, 1
      %p44 = por %p42, %p43
      %p45 = scmp.ne.s32.totalorder %s34, %s35
      %p46 = scmp.eq.s32.totalorder %s26, 0
      %p47 = por %p45, %p46
      %p48 = scmp.ne.s32.totalorder %s34, %s35
      %p49 = scmp.eq.s32.totalorder %s27, 1
      %p50 = por %p48, %p49
      %p52 = scmp.ne.s32.totalorder %s35, %s51
      %p53 = scmp.eq.s32.totalorder %s27, 0
      %p54 = por %p52, %p53
      %s55 = ssub.s32 %s21, %s28
      %p56 = scmp.eq.s32.totalorder %s55, 0
      %s58 = sadd.s32 %s57, 1
      %s59 = scalar_select %p56, %s57, %s58
      %p62 = pneg %p56
      %p63 = scmp.eq.s32.totalorder %s21, 1
      %p64 = por %p62, %p63
      %p65 = scmp.ne.s32.totalorder %s57, %s60
      %p66 = scmp.eq.s32.totalorder %s21, 0
      %p67 = por %p65, %p66
      %p68 = scmp.ne.s32.totalorder %s57, %s60
      %p69 = scmp.eq.s32.totalorder %s26, 1
      %p70 = por %p68, %p69
      %p71 = scmp.ne.s32.totalorder %s60, %s61
      %p72 = scmp.eq.s32.totalorder %s26, 0
      %p73 = por %p71, %p72
      %p74 = scmp.ne.s32.totalorder %s60, %s61
      %p75 = scmp.eq.s32.totalorder %s27, 1
      %p76 = por %p74, %p75
      %p78 = scmp.ne.s32.totalorder %s61, %s77
      %p79 = scmp.eq.s32.totalorder %s27, 0
      %p80 = por %p78, %p79
      %s82 = sadd.s32 %s81, 1
      %p85 = scmp.eq.s32.totalorder %s21, 1
      %p86 = scmp.ne.s32.totalorder %s81, %s83
      %p87 = scmp.eq.s32.totalorder %s21, 0
      %p88 = por %p86, %p87
      %p89 = scmp.ne.s32.totalorder %s81, %s83
      %p90 = scmp.eq.s32.totalorder %s26, 1
      %p91 = por %p89, %p90
      %p92 = scmp.ne.s32.totalorder %s83, %s84
      %p93 = scmp.eq.s32.totalorder %s26, 0
      %p94 = por %p92, %p93
      %p95 = scmp.ne.s32.totalorder %s83, %s84
      %p96 = scmp.eq.s32.totalorder %s27, 1
      %p97 = por %p95, %p96
      %p99 = scmp.ne.s32.totalorder %s84, %s98
      %p100 = scmp.eq.s32.totalorder %s27, 0
      %p101 = por %p99, %p100
      %s103 = sadd.s32 %s102, 1
      %p106 = scmp.eq.s32.totalorder %s21, 1
      %p107 = scmp.ne.s32.totalorder %s102, %s104
      %p108 = scmp.eq.s32.totalorder %s21, 0
      %p109 = por %p107, %p108
      %p110 = scmp.ne.s32.totalorder %s102, %s104
      %p111 = scmp.eq.s32.totalorder %s26, 1
      %p112 = por %p110, %p111
      %p113 = scmp.ne.s32.totalorder %s104, %s105
      %p114 = scmp.eq.s32.totalorder %s26, 0
      %p115 = por %p113, %p114
      %p116 = scmp.ne.s32.totalorder %s104, %s105
      %p117 = scmp.eq.s32.totalorder %s27, 1
      %p118 = por %p116, %p117
      %p120 = scmp.ne.s32.totalorder %s105, %s119
      %p121 = scmp.eq.s32.totalorder %s27, 0
      %p122 = por %p120, %p121
      %s124 = sadd.s32 %s123, 1
      %p127 = scmp.eq.s32.totalorder %s21, 1
      %p128 = scmp.ne.s32.totalorder %s123, %s125
      %p129 = scmp.eq.s32.totalorder %s21, 0
      %p130 = por %p128, %p129
      %p131 = scmp.ne.s32.totalorder %s123, %s125
      %p132 = scmp.eq.s32.totalorder %s26, 1
      %p133 = por %p131, %p132
      %p134 = scmp.ne.s32.totalorder %s125, %s126
      %p135 = scmp.eq.s32.totalorder %s26, 0
      %p136 = por %p134, %p135
      %p137 = scmp.ne.s32.totalorder %s125, %s126
      %p138 = scmp.eq.s32.totalorder %s27, 1
      %p139 = por %p137, %p138
      %p141 = scmp.ne.s32.totalorder %s126, %s140
      %p142 = scmp.eq.s32.totalorder %s27, 0
      %p143 = por %p141, %p142
      %s145 = sadd.s32 %s144, 1
      %p148 = scmp.eq.s32.totalorder %s21, 1
      %p149 = scmp.ne.s32.totalorder %s144, %s146
      %p150 = scmp.eq.s32.totalorder %s21, 0
      %p151 = por %p149, %p150
      %p152 = scmp.ne.s32.totalorder %s144, %s146
      %p153 = scmp.eq.s32.totalorder %s26, 1
      %p154 = por %p152, %p153
      %p155 = scmp.ne.s32.totalorder %s146, %s147
      %p156 = scmp.eq.s32.totalorder %s26, 0
      %p157 = por %p155, %p156
      %p158 = scmp.ne.s32.totalorder %s146, %s147
      %p159 = scmp.eq.s32.totalorder %s27, 1
      %p160 = por %p158, %p159
      %p162 = scmp.ne.s32.totalorder %s147, %s161
      %p163 = scmp.eq.s32.totalorder %s27, 0
      %p164 = por %p162, %p163
      %s166 = sadd.s32 %s165, 1
      %p169 = scmp.eq.s32.totalorder %s21, 1
      %p170 = scmp.ne.s32.totalorder %s165, %s167
      %p171 = scmp.eq.s32.totalorder %s21, 0
      %p172 = por %p170, %p171
      %p173 = scmp.ne.s32.totalorder %s165, %s167
      %p174 = scmp.eq.s32.totalorder %s26, 1
      %p175 = por %p173, %p174
      %p176 = scmp.ne.s32.totalorder %s167, %s168
      %p177 = scmp.eq.s32.totalorder %s26, 0
      %p178 = por %p176, %p177
      %p179 = scmp.ne.s32.totalorder %s167, %s168
      %p180 = scmp.eq.s32.totalorder %s27, 1
      %p181 = por %p179, %p180
      %p183 = scmp.ne.s32.totalorder %s168, %s182
      %p184 = scmp.eq.s32.totalorder %s27, 0
      %p185 = por %p183, %p184
      %s187 = sadd.s32 %s186, 1
      %p190 = scmp.eq.s32.totalorder %s21, 1
      %p191 = scmp.ne.s32.totalorder %s186, %s188
      %p192 = scmp.eq.s32.totalorder %s21, 0
      %p193 = por %p191, %p192
      %p194 = scmp.ne.s32.totalorder %s186, %s188
      %p195 = scmp.eq.s32.totalorder %s26, 1
      %p196 = por %p194, %p195
      %p197 = scmp.ne.s32.totalorder %s188, %s189
      %p198 = scmp.eq.s32.totalorder %s26, 0
      %p199 = por %p197, %p198
      %p200 = scmp.ne.s32.totalorder %s188, %s189
      %p201 = scmp.eq.s32.totalorder %s27, 1
      %p202 = por %p200, %p201
      %p204 = scmp.ne.s32.totalorder %s189, %s203
      %p205 = scmp.eq.s32.totalorder %s27, 0
      %p206 = por %p204, %p205
      %s208 = sadd.s32 %s207, 1
      %p211 = scmp.eq.s32.totalorder %s21, 1
      %p212 = scmp.ne.s32.totalorder %s207, %s209
      %p213 = scmp.eq.s32.totalorder %s21, 0
      %p214 = por %p212, %p213
      %p215 = scmp.ne.s32.totalorder %s207, %s209
      %p216 = scmp.eq.s32.totalorder %s26, 1
      %p217 = por %p215, %p216
      %p218 = scmp.ne.s32.totalorder %s209, %s210
      %p219 = scmp.eq.s32.totalorder %s26, 0
      %p220 = por %p218, %p219
      %p221 = scmp.ne.s32.totalorder %s209, %s210
      %p222 = scmp.eq.s32.totalorder %s27, 1
      %p223 = por %p221, %p222
      %p225 = scmp.ne.s32.totalorder %s210, %s224
      %p226 = scmp.eq.s32.totalorder %s27, 0
      %p227 = por %p225, %p226
      %s229 = sadd.s32 %s228, 1
      %p232 = scmp.eq.s32.totalorder %s21, 1
      %p233 = scmp.ne.s32.totalorder %s228, %s230
      %p234 = scmp.eq.s32.totalorder %s21, 0
      %p235 = por %p233, %p234
      %p236 = scmp.ne.s32.totalorder %s228, %s230
      %p237 = scmp.eq.s32.totalorder %s26, 1
      %p238 = por %p236, %p237
      %p239 = scmp.ne.s32.totalorder %s230, %s231
      %p240 = scmp.eq.s32.totalorder %s26, 0
      %p241 = por %p239, %p240
      %p242 = scmp.ne.s32.totalorder %s230, %s231
      %p243 = scmp.eq.s32.totalorder %s27, 1
      %p244 = por %p242, %p243
      %p246 = scmp.ne.s32.totalorder %s231, %s245
      %p247 = scmp.eq.s32.totalorder %s27, 0
      %p248 = por %p246, %p247
      %s250 = sadd.s32 %s249, 1
      %p253 = scmp.eq.s32.totalorder %s21, 1
      %p254 = scmp.ne.s32.totalorder %s249, %s251
      %p255 = scmp.eq.s32.totalorder %s21, 0
      %p256 = por %p254, %p255
      %p257 = scmp.ne.s32.totalorder %s249, %s251
      %p258 = scmp.eq.s32.totalorder %s26, 1
      %p259 = por %p257, %p258
      %p260 = scmp.ne.s32.totalorder %s251, %s252
      %p261 = scmp.eq.s32.totalorder %s26, 0
      %p262 = por %p260, %p261
      %p263 = scmp.ne.s32.totalorder %s251, %s252
      %p264 = scmp.eq.s32.totalorder %s27, 1
      %p265 = por %p263, %p264
      %p267 = scmp.ne.s32.totalorder %s252, %s266
      %p268 = scmp.eq.s32.totalorder %s27, 0
      %p269 = por %p267, %p268
      %s270 = ssub.s32 %s21, %s28
      %p271 = scmp.eq.s32.totalorder %s270, 0
      %s273 = sadd.s32 %s272, 1
      %s274 = scalar_select %p271, %s272, %s273
      %p277 = pneg %p271
      %p278 = scmp.eq.s32.totalorder %s21, 1
      %p279 = por %p277, %p278
      %p280 = scmp.ne.s32.totalorder %s272, %s275
      %p281 = scmp.eq.s32.totalorder %s21, 0
      %p282 = por %p280, %p281
      %p283 = scmp.ne.s32.totalorder %s272, %s275
      %p284 = scmp.eq.s32.totalorder %s26, 1
      %p285 = por %p283, %p284
      %p286 = scmp.ne.s32.totalorder %s275, %s276
      %p287 = scmp.eq.s32.totalorder %s26, 0
      %p288 = por %p286, %p287
      %p289 = scmp.ne.s32.totalorder %s275, %s276
      %p290 = scmp.eq.s32.totalorder %s27, 1
      %p291 = por %p289, %p290
      %p293 = scmp.ne.s32.totalorder %s276, %s292
      %p294 = scmp.eq.s32.totalorder %s27, 0
      %p295 = por %p293, %p294
      %p296 = scmp.le.s32.totalorder 1, %s21
      %p297 = scmp.lt.s32.totalorder %s21, 3
      %p298 = pnand %p296, %p297
      %p299 = pneg %p298
      // Predicated region
      $region9: #{tpu_custom_call.1} parent=5 // pred_check
        _
      $region10: #{tpu_custom_call.1} parent=5 // pred_check_branch
        %301 = sbr.rel (%p298) target = $region12
      $region11: #{tpu_custom_call.1} parent=5 // pred_region
        %s302 = ssub.s32 %s21, 1
        // Predicated region
        $region13: #{tpu_custom_call.1} parent=11 // pred_check
          %p303 = pneg %p94
        $region14: #{tpu_custom_call.1} parent=11 // pred_check_branch
          %305 = sbr.rel (%p303) target = $region16
        $region15: #{tpu_custom_call.1} parent=11 // pred_region
          _
        $region16: #{tpu_custom_call.1} parent=11 // pred_fallthru
          _
        // Predicated region
        $region17: #{tpu_custom_call.1} parent=11 // pred_check
          %p306 = pneg %p115
        $region18: #{tpu_custom_call.1} parent=11 // pred_check_branch
          %308 = sbr.rel (%p306) target = $region20
        $region19: #{tpu_custom_call.1} parent=11 // pred_region
          _
        $region20: #{tpu_custom_call.1} parent=11 // pred_fallthru
          _
        // Predicated region
        $region21: #{tpu_custom_call.1} parent=11 // pred_check
          %p309 = pneg %p136
        $region22: #{tpu_custom_call.1} parent=11 // pred_check_branch
          %311 = sbr.rel (%p309) target = $region24
        $region23: #{tpu_custom_call.1} parent=11 // pred_region
          _
        $region24: #{tpu_custom_call.1} parent=11 // pred_fallthru
          _
        // Predicated region
        $region25: #{tpu_custom_call.1} parent=11 // pred_check
          %p312 = pneg %p157
        $region26: #{tpu_custom_call.1} parent=11 // pred_check_branch
          %314 = sbr.rel (%p312) target = $region28
        $region27: #{tpu_custom_call.1} parent=11 // pred_region
          _
        $region28: #{tpu_custom_call.1} parent=11 // pred_fallthru
          _
        // Predicated region
        $region29: #{tpu_custom_call.1} parent=11 // pred_check
          %p315 = pneg %p178
        $region30: #{tpu_custom_call.1} parent=11 // pred_check_branch
          %317 = sbr.rel (%p315) target = $region32
        $region31: #{tpu_custom_call.1} parent=11 // pred_region
          _
        $region32: #{tpu_custom_call.1} parent=11 // pred_fallthru
          _
        // Predicated region
        $region33: #{tpu_custom_call.1} parent=11 // pred_check
          %p318 = pneg %p199
        $region34: #{tpu_custom_call.1} parent=11 // pred_check_branch
          %320 = sbr.rel (%p318) target = $region36
        $region35: #{tpu_custom_call.1} parent=11 // pred_region
          _
        $region36: #{tpu_custom_call.1} parent=11 // pred_fallthru
          _
        // Predicated region
        $region37: #{tpu_custom_call.1} parent=11 // pred_check
          %p321 = pneg %p220
        $region38: #{tpu_custom_call.1} parent=11 // pred_check_branch
          %323 = sbr.rel (%p321) target = $region40
        $region39: #{tpu_custom_call.1} parent=11 // pred_region
          _
        $region40: #{tpu_custom_call.1} parent=11 // pred_fallthru
          _
        // Predicated region
        $region41: #{tpu_custom_call.1} parent=11 // pred_check
          %p324 = pneg %p241
        $region42: #{tpu_custom_call.1} parent=11 // pred_check_branch
          %326 = sbr.rel (%p324) target = $region44
        $region43: #{tpu_custom_call.1} parent=11 // pred_region
          %328 = vsyncadd [#allocation5], 0
          %s329 = sshll.u32 %s9, 4
          %s330 = int_to_ptr.hbm [resolvable:$true] %s329
          %s331 = sshll.u32 [#allocation4], 4
          %s332 = int_to_ptr.vmem [resolvable:$true] %s331
          %337 = dma.hbm_to_vmem [thread:$0]  %s330, 256, %s332, [#allocation5], 128, 128, 8
        $region44: #{tpu_custom_call.1} parent=11 // pred_fallthru
          _
        // Predicated region
        $region45: #{tpu_custom_call.1} parent=11 // pred_check
          %p338 = pneg %p262
        $region46: #{tpu_custom_call.1} parent=11 // pred_check_branch
          %340 = sbr.rel (%p338) target = $region48
        $region47: #{tpu_custom_call.1} parent=11 // pred_region
          _
        $region48: #{tpu_custom_call.1} parent=11 // pred_fallthru
          _
      $region12: #{tpu_custom_call.1} parent=5 // pred_fallthru
        _
      %p341 = scmp.lt.s32.totalorder %s21, 2
      // Predicated region
      $region49: #{tpu_custom_call.1} parent=5 // pred_check
        %p342 = pneg %p341
      $region50: #{tpu_custom_call.1} parent=5 // pred_check_branch
        %344 = sbr.rel (%p342) target = $region52
      $region51: #{tpu_custom_call.1} parent=5 // pred_region
        // Predicated region
        $region53: #{tpu_custom_call.1} parent=51 // pred_check
          %p345 = pneg %p41
        $region54: #{tpu_custom_call.1} parent=51 // pred_check_branch
          %347 = sbr.rel (%p345) target = $region56
        $region55: #{tpu_custom_call.1} parent=51 // pred_region
          %s348 = smul.u32 4, %s21
          %p349 = scmp.lt.s32.totalorder %s348, 7
          %s350 = scalar_select %p349, %s348, 7
          %s351 = smul.addr %s350, 8
          %s352 = scalar_lea.vmem %s0, %s351
          %s353 = smul.u32 4, %s21
        $region56: #{tpu_custom_call.1} parent=51 // pred_fallthru
          _
        // Predicated region
        $region57: #{tpu_custom_call.1} parent=51 // pred_check
          %p354 = pneg %p67
        $region58: #{tpu_custom_call.1} parent=51 // pred_check_branch
          %356 = sbr.rel (%p354) target = $region60
        $region59: #{tpu_custom_call.1} parent=51 // pred_region
          %s357 = sand.u32 %s57, 1
          %s358 = scalar_lea.sflag [#allocation3], %s357
          %s359 = sand.u32 %s57, 1
          %s360 = scalar_lea.vmem [#allocation2], %s359
          %362 = vsyncadd %s358, 0
          %s363 = scalar_lea.hbm %s1, %s21
          %s365 = sshll.u32 %s363, 4
          %s366 = int_to_ptr.hbm [resolvable:$true] %s365
          %s367 = sshll.u32 %s360, 4
          %s368 = int_to_ptr.vmem [resolvable:$true] %s367
          %370 = dma.hbm_to_vmem [thread:$0]  %s366, 16, %s368, %s358
        $region60: #{tpu_custom_call.1} parent=51 // pred_fallthru
          _
      $region52: #{tpu_custom_call.1} parent=5 // pred_fallthru
        _
      %p371 = scmp.le.s32.totalorder 1, %s21
      %p372 = scmp.lt.s32.totalorder %s21, 3
      %p373 = pnand %p371, %p372
      %p374 = pneg %p373
      // Predicated region
      $region61: #{tpu_custom_call.1} parent=5 // pred_check
        _
      $region62: #{tpu_custom_call.1} parent=5 // pred_check_branch
        %376 = sbr.rel (%p373) target = $region64
      $region63: #{tpu_custom_call.1} parent=5 // pred_region
        %s377 = ssub.s32 %s21, 1
        %s378 = sand.u32 %s60, 1
        %s379 = scalar_lea.sflag [#allocation3], %s378
        %s380 = sand.u32 %s60, 1
        %s381 = scalar_lea.vmem [#allocation2], %s380
        // Predicated region
        $region65: #{tpu_custom_call.1} parent=63 // pred_check
          %p382 = pneg %p73
        $region66: #{tpu_custom_call.1} parent=63 // pred_check_branch
          %384 = sbr.rel (%p382) target = $region68
        $region67: #{tpu_custom_call.1} parent=63 // pred_region
          %386 = dma.done %s379, 16
        $region68: #{tpu_custom_call.1} parent=63 // pred_fallthru
          _
        // Predicated region
        $region69: #{tpu_custom_call.1} parent=63 // pred_check
          %p387 = pneg %p241
        $region70: #{tpu_custom_call.1} parent=63 // pred_check_branch
          %389 = sbr.rel (%p387) target = $region72
        $region71: #{tpu_custom_call.1} parent=63 // pred_region
          %391 = dma.done [#allocation5], 256
        $region72: #{tpu_custom_call.1} parent=63 // pred_fallthru
          _
        %s392 = smul.u32 4, %s26
        %p393 = scmp.lt.s32.totalorder %s392, 7
        %s394 = scalar_select %p393, %s392, 7
        %s395 = smul.addr %s394, 8
        %s396 = scalar_lea.vmem %s0, %s395
        %p397 = pneg %p47
        %p398 = pneg %p44
        %s399 = sand.u32 %s60, 1
        %s400 = scalar_lea.sflag [#allocation3], %s399
        %s401 = sand.u32 %s60, 1
        %s402 = scalar_lea.vmem [#allocation2], %s401
        %p403 = pneg %p73
        %p404 = pneg %p70
        %p405 = pneg %p94
        %p406 = pneg %p91
        %p407 = pneg %p115
        %p408 = pneg %p112
        %p409 = pneg %p136
        %p410 = pneg %p133
        %p411 = pneg %p157
        %p412 = pneg %p154
        %p413 = pneg %p178
        %p414 = pneg %p175
        %p415 = pneg %p199
        %p416 = pneg %p196
        %p417 = pneg %p220
        %p418 = pneg %p217
        %p419 = pneg %p241
        %p420 = pneg %p238
        %p421 = pneg %p262
        %p422 = pneg %p259
        %p423 = pneg %p288
        %p424 = pneg %p285
        %s425 = smul.u32 4, %s26
        %p426 = scmp.lt.s32.totalorder %s425, 7
        %s427 = scalar_select %p426, %s425, 7
        %s428 = smul.addr %s427, 8
        %s429 = scalar_lea.vmem %s11, %s428
        %s430 = smul.u32 4, %s26
        %p431 = scmp.lt.s32.totalorder %s430, 7
        %s432 = scalar_select %p431, %s430, 7
        %s433 = smul.addr %s432, 8
        %s434 = scalar_lea.vmem %s0, %s433
        %s435 = smul.u32 4, %s26
        %s436 = smul.u32 4, %s26
        %p437 = scmp.lt.s32.totalorder %s436, 7
        %s438 = scalar_select %p437, %s436, 7
        %s439 = smul.addr %s438, 8
        %s440 = scalar_lea.vmem %s11, %s439
        %s441 = smul.u32 4, %s26
        %v443 = vld [vmem:[%s434] sm:$0xff]
        %v444 = vld [vmem:[%s434 + $0x8] sm:$0xff]
        %v445 = vld [vmem:[%s434 + $0x10] sm:$0xff]
        %v446 = vld [vmem:[%s434 + $0x18] sm:$0xff]
        %v447 = vld [vmem:[%s2] sm:$0xff]
        %v448 = vld [vmem:[%s2 + $0x8] sm:$0xff]
        %v449 = vld [vmem:[%s2 + $0x10] sm:$0xff]
        %v450 = vld [vmem:[%s2 + $0x18] sm:$0xff]
        %v451 = vld [vmem:[%s381] sm:$0x1]
        %v453 = vperm.slane %v451, 0
        %v455 = vadd.f32 %v447, %v453
        %v456 = vadd.f32 %v448, %v453
        %v457 = vadd.f32 %v449, %v453
        %v458 = vadd.f32 %v450, %v453
        %v459 = vld [vmem:[#allocation4] sm:$0xff]
        %v460 = vld [vmem:[#allocation4 + $0x8] sm:$0x1]
        %v461 = vld [vmem:[%s10] sm:$0x1]
        %v462 = vpack.c.bf16 %v444, %v443
        %v463 = vpack.c.bf16 %v446, %v445
        %v464 = vld [vmem:[%s3] sm:$0xf]
        %v465 = vld [vmem:[%s3 + $0x4] sm:$0xf]
        %v466 = vld [vmem:[%s3 + $0x8] sm:$0xf]
        %v467 = vld [vmem:[%s3 + $0xc] sm:$0xf]
        %v468 = vperm.slane %v459, 0
        %v473 = vunpack.c.l.b16 %v464
        %v474 = vunpack.c.l.b16 %v465
        %v475 = vunpack.c.l.b16 %v466
        %v476 = vunpack.c.l.b16 %v467
        %v477 = vpack.c.b16 %v474, %v473
        %v478 = vpack.c.b16 %v476, %v475
        %vm481 = vcmask 261120
        %v483 = vsel %vm481, %v462, 0
        %v486 = vsel %vm481, %v463, 0
        %488 = vmatpush.bf16.msra.mxu0 0
        %489 = vmatpush.bf16.msra.mxu0 0
        %490 = vmatpush.bf16.msra.mxu0 0
        %491 = vmatpush.bf16.msra.mxu0 0
        %492 = vmatpush.bf16.msra.mxu0 0
        %493 = vmatpush.bf16.msra.mxu0 0
        %494 = vmatpush.bf16.msra.mxu0 %v478
        %495 = vmatpush.bf16.msra.mxu0 %v477
        %496 = vmatmul.bf16.gmra.mxu0 %v483
        %v497 = vpop.f32.mrf.mxu0
        %v498 = vadd.f32 %v468, %v497
        %v499 = vpop.f32.mrf.mxu0
        %v500 = vadd.f32 %v468, %v499
        %501 = vmatmul.bf16.gmra.mxu0 %v486
        %v502 = vpop.f32.mrf.mxu0
        %v503 = vadd.f32 %v468, %v502
        %v504 = vpop.f32.mrf.mxu0
        %v505 = vadd.f32 %v468, %v504
        %506 = vdwg.mxu0
        %v507 = vld [vmem:[%s4] sm:$0xf]
        %v508 = vld [vmem:[%s4 + $0x4] sm:$0xf]
        %v509 = vld [vmem:[%s4 + $0x8] sm:$0xf]
        %v510 = vld [vmem:[%s4 + $0xc] sm:$0xf]
        %v511 = vperm.slane %v459, 1
        %v516 = vunpack.c.l.b16 %v507
        %v517 = vunpack.c.l.b16 %v508
        %v518 = vunpack.c.l.b16 %v509
        %v519 = vunpack.c.l.b16 %v510
        %v520 = vpack.c.b16 %v517, %v516
        %v521 = vpack.c.b16 %v519, %v518
        %524 = vmatpush.bf16.msra.mxu0 0
        %525 = vmatpush.bf16.msra.mxu0 0
        %526 = vmatpush.bf16.msra.mxu0 0
        %527 = vmatpush.bf16.msra.mxu0 0
        %528 = vmatpush.bf16.msra.mxu0 0
        %529 = vmatpush.bf16.msra.mxu0 0
        %530 = vmatpush.bf16.msra.mxu0 %v521
        %531 = vmatpush.bf16.msra.mxu0 %v520
        %532 = vmatmul.bf16.gmra.mxu0 %v483
        %v533 = vpop.f32.mrf.mxu0
        %v534 = vadd.f32 %v511, %v533
        %v535 = vpop.f32.mrf.mxu0
        %v536 = vadd.f32 %v511, %v535
        %537 = vmatmul.bf16.gmra.mxu0 %v486
        %v538 = vpop.f32.mrf.mxu0
        %v539 = vadd.f32 %v511, %v538
        %v540 = vpop.f32.mrf.mxu0
        %v541 = vadd.f32 %v511, %v540
        %542 = vdwg.mxu0
        %v543 = vld [vmem:[%s5] sm:$0xf]
        %v544 = vld [vmem:[%s5 + $0x4] sm:$0xf]
        %v545 = vld [vmem:[%s5 + $0x8] sm:$0xf]
        %v546 = vld [vmem:[%s5 + $0xc] sm:$0xf]
        %v547 = vperm.slane %v459, 2
        %v552 = vunpack.c.l.b16 %v543
        %v553 = vunpack.c.l.b16 %v544
        %v554 = vunpack.c.l.b16 %v545
        %v555 = vunpack.c.l.b16 %v546
        %v556 = vpack.c.b16 %v553, %v552
        %v557 = vpack.c.b16 %v555, %v554
        %560 = vmatpush.bf16.msra.mxu0 0
        %561 = vmatpush.bf16.msra.mxu0 0
        %562 = vmatpush.bf16.msra.mxu0 0
        %563 = vmatpush.bf16.msra.mxu0 0
        %564 = vmatpush.bf16.msra.mxu0 0
        %565 = vmatpush.bf16.msra.mxu0 0
        %566 = vmatpush.bf16.msra.mxu0 %v557
        %567 = vmatpush.bf16.msra.mxu0 %v556
        %568 = vmatmul.bf16.gmra.mxu0 %v483
        %v569 = vpop.f32.mrf.mxu0
        %v570 = vadd.f32 %v547, %v569
        %v571 = vpop.f32.mrf.mxu0
        %v572 = vadd.f32 %v547, %v571
        %573 = vmatmul.bf16.gmra.mxu0 %v486
        %v574 = vpop.f32.mrf.mxu0
        %v575 = vadd.f32 %v547, %v574
        %v576 = vpop.f32.mrf.mxu0
        %v577 = vadd.f32 %v547, %v576
        %578 = vdwg.mxu0
        %v579 = vld [vmem:[%s6] sm:$0xf]
        %v580 = vld [vmem:[%s6 + $0x4] sm:$0xf]
        %v581 = vld [vmem:[%s6 + $0x8] sm:$0xf]
        %v582 = vld [vmem:[%s6 + $0xc] sm:$0xf]
        %v583 = vpack.c.bf16 %v500, %v498
        %v584 = vpack.c.bf16 %v505, %v503
        %v585 = vpack.c.bf16 %v536, %v534
        %v586 = vpack.c.bf16 %v541, %v539
        %v587 = vpack.c.bf16 %v572, %v570
        %v588 = vpack.c.bf16 %v577, %v575
        %vm589 = vcmask 130048
        %v591 = vsel %vm589, %v583, 0
        %v594 = vsel %vm589, %v584, 0
        %v597 = vsel %vm589, %v585, 0
        %v600 = vsel %vm589, %v586, 0
        %602 = vmatpush.bf16.xpose.msra.mxu0 0
        %603 = vmatpush.bf16.xpose.msra.mxu0 0
        %604 = vmatpush.bf16.xpose.msra.mxu0 0
        %605 = vmatpush.bf16.xpose.msra.mxu0 0
        %606 = vmatpush.bf16.xpose.msra.mxu0 0
        %607 = vmatpush.bf16.xpose.msra.mxu0 0
        %608 = vmatpush.bf16.xpose.msra.mxu0 %v600
        %609 = vmatpush.bf16.xpose.msra.mxu0 %v597
        %610 = vmatmul.bf16.gmra.mxu0 %v591
        %v611 = vpop.f32.mrf.mxu0
        %v612 = vadd.f32 %v455, %v611
        %v613 = vpop.f32.mrf.mxu0
        %v614 = vadd.f32 %v456, %v613
        %615 = vmatmul.bf16.gmra.mxu0 %v594
        %v616 = vpop.f32.mrf.mxu0
        %v617 = vadd.f32 %v457, %v616
        %v618 = vpop.f32.mrf.mxu0
        %v619 = vadd.f32 %v458, %v618
        %620 = vdwg.mxu0
        %v621 = vsel %vm481, %v612, -inf
        %622 = vmax.xlane.f32.xlu0 %v621
        %v623 = vpop.xlane.xlu0 %622
        %v624 = vsel %vm481, %v614, -inf
        %625 = vmax.xlane.f32.xlu0 %v624
        %v626 = vpop.xlane.xlu0 %625
        %v627 = vsel %vm481, %v617, -inf
        %628 = vmax.xlane.f32.xlu0 %v627
        %v629 = vpop.xlane.xlu0 %628
        %v630 = vsel %vm481, %v619, -inf
        %631 = vmax.xlane.f32.xlu0 %v630
        %v632 = vpop.xlane.xlu0 %631
        %v633 = vsub.f32 %v612, %v623
        %v634 = vsub.f32 %v614, %v626
        %v635 = vsub.f32 %v617, %v629
        %v636 = vsub.f32 %v619, %v632
        %v637 = vmul.f32 %v633, 1.442695
        %v638 = vpow.pop %v637
        %v639 = vmul.f32 %v634, 1.442695
        %v640 = vpow.pop %v639
        %v641 = vmul.f32 %v635, 1.442695
        %v642 = vpow.pop %v641
        %v643 = vmul.f32 %v636, 1.442695
        %v644 = vpow.pop %v643
        %v645 = vsel %vm481, %v638, 0.0
        %646 = vadd.xlane.f32.xlu0 %v645
        %v647 = vpop.xlane.xlu0 %646
        %v648 = vsel %vm481, %v640, 0.0
        %649 = vadd.xlane.f32.xlu0 %v648
        %v650 = vpop.xlane.xlu0 %649
        %v651 = vsel %vm481, %v642, 0.0
        %652 = vadd.xlane.f32.xlu0 %v651
        %v653 = vpop.xlane.xlu0 %652
        %v654 = vsel %vm481, %v644, 0.0
        %655 = vadd.xlane.f32.xlu0 %v654
        %v656 = vpop.xlane.xlu0 %655
        %v657 = vrcp.pop %v647
        %v658 = vrcp.pop %v650
        %v659 = vrcp.pop %v653
        %v660 = vrcp.pop %v656
        %v661 = vmul.f32 %v638, %v657
        %v662 = vmul.f32 %v640, %v658
        %v663 = vmul.f32 %v642, %v659
        %v664 = vmul.f32 %v644, %v660
        %v665 = vpack.c.bf16 %v662, %v661
        %v666 = vpack.c.bf16 %v664, %v663
        %v668 = vsel %vm481, %v665, 0
        %v671 = vsel %vm481, %v666, 0
        %673 = vmatpush.bf16.msra.mxu0 0
        %674 = vmatpush.bf16.msra.mxu0 0
        %675 = vmatpush.bf16.msra.mxu0 0
        %676 = vmatpush.bf16.msra.mxu0 0
        %677 = vmatpush.bf16.msra.mxu0 0
        %678 = vmatpush.bf16.msra.mxu0 0
        %679 = vmatpush.bf16.msra.mxu0 %v588
        %680 = vmatpush.bf16.msra.mxu0 %v587
        %681 = vmatmul.bf16.gmra.mxu0 %v668
        %v682 = vpop.f32.mrf.mxu0
        %v683 = vadd.f32 0.0, %v682
        %v684 = vpop.f32.mrf.mxu0
        %v685 = vadd.f32 0.0, %v684
        %686 = vmatmul.bf16.gmra.mxu0 %v671
        %v687 = vpop.f32.mrf.mxu0
        %v688 = vadd.f32 0.0, %v687
        %v689 = vpop.f32.mrf.mxu0
        %v690 = vadd.f32 0.0, %v689
        %691 = vdwg.mxu0
        %v692 = vpack.c.bf16 %v685, %v683
        %v693 = vpack.c.bf16 %v690, %v688
        %696 = vrot.lane.b32.xlu0 %v583, 112
        %v697 = vpop.permute.xlu0 %696
        %698 = vrot.lane.b32.xlu0 %v584, 112
        %v699 = vpop.permute.xlu0 %698
        %702 = vrot.lane.b32.xlu0 %v585, 112
        %v703 = vpop.permute.xlu0 %702
        %704 = vrot.lane.b32.xlu0 %v586, 112
        %v705 = vpop.permute.xlu0 %704
        %v707 = vsel %vm589, %v697, 0
        %v710 = vsel %vm589, %v699, 0
        %v713 = vsel %vm589, %v703, 0
        %v716 = vsel %vm589, %v705, 0
        %718 = vmatpush.bf16.xpose.msra.mxu0 0
        %719 = vmatpush.bf16.xpose.msra.mxu0 0
        %720 = vmatpush.bf16.xpose.msra.mxu0 0
        %721 = vmatpush.bf16.xpose.msra.mxu0 0
        %722 = vmatpush.bf16.xpose.msra.mxu0 0
        %723 = vmatpush.bf16.xpose.msra.mxu0 0
        %724 = vmatpush.bf16.xpose.msra.mxu0 %v716
        %725 = vmatpush.bf16.xpose.msra.mxu0 %v713
        %726 = vmatmul.bf16.gmra.mxu0 %v707
        %v727 = vpop.f32.mrf.mxu0
        %v728 = vadd.f32 %v455, %v727
        %v729 = vpop.f32.mrf.mxu0
        %v730 = vadd.f32 %v456, %v729
        %731 = vmatmul.bf16.gmra.mxu0 %v710
        %v732 = vpop.f32.mrf.mxu0
        %v733 = vadd.f32 %v457, %v732
        %v734 = vpop.f32.mrf.mxu0
        %v735 = vadd.f32 %v458, %v734
        %736 = vdwg.mxu0
        %v737 = vsel %vm481, %v728, -inf
        %738 = vmax.xlane.f32.xlu0 %v737
        %v739 = vpop.xlane.xlu0 %738
        %v740 = vsel %vm481, %v730, -inf
        %741 = vmax.xlane.f32.xlu0 %v740
        %v742 = vpop.xlane.xlu0 %741
        %v743 = vsel %vm481, %v733, -inf
        %744 = vmax.xlane.f32.xlu0 %v743
        %v745 = vpop.xlane.xlu0 %744
        %v746 = vsel %vm481, %v735, -inf
        %747 = vmax.xlane.f32.xlu0 %v746
        %v748 = vpop.xlane.xlu0 %747
        %v749 = vsub.f32 %v728, %v739
        %v750 = vsub.f32 %v730, %v742
        %v751 = vsub.f32 %v733, %v745
        %v752 = vsub.f32 %v735, %v748
        %v753 = vmul.f32 %v749, 1.442695
        %v754 = vpow.pop %v753
        %v755 = vmul.f32 %v750, 1.442695
        %v756 = vpow.pop %v755
        %v757 = vmul.f32 %v751, 1.442695
        %v758 = vpow.pop %v757
        %v759 = vmul.f32 %v752, 1.442695
        %v760 = vpow.pop %v759
        %v761 = vsel %vm481, %v754, 0.0
        %762 = vadd.xlane.f32.xlu0 %v761
        %v763 = vpop.xlane.xlu0 %762
        %v764 = vsel %vm481, %v756, 0.0
        %765 = vadd.xlane.f32.xlu0 %v764
        %v766 = vpop.xlane.xlu0 %765
        %v767 = vsel %vm481, %v758, 0.0
        %768 = vadd.xlane.f32.xlu0 %v767
        %v769 = vpop.xlane.xlu0 %768
        %v770 = vsel %vm481, %v760, 0.0
        %771 = vadd.xlane.f32.xlu0 %v770
        %v772 = vpop.xlane.xlu0 %771
        %v773 = vrcp.pop %v763
        %v774 = vrcp.pop %v766
        %v775 = vrcp.pop %v769
        %v776 = vrcp.pop %v772
        %v777 = vmul.f32 %v754, %v773
        %v778 = vmul.f32 %v756, %v774
        %v779 = vmul.f32 %v758, %v775
        %v780 = vmul.f32 %v760, %v776
        %v781 = vpack.c.bf16 %v778, %v777
        %v782 = vpack.c.bf16 %v780, %v779
        %785 = vrot.lane.b32.xlu0 %v587, 112
        %v786 = vpop.permute.xlu0 %785
        %787 = vrot.lane.b32.xlu0 %v588, 112
        %v788 = vpop.permute.xlu0 %787
        %v792 = vsel %vm481, %v781, 0
        %v795 = vsel %vm481, %v782, 0
        %797 = vmatpush.bf16.msra.mxu0 0
        %798 = vmatpush.bf16.msra.mxu0 0
        %799 = vmatpush.bf16.msra.mxu0 0
        %800 = vmatpush.bf16.msra.mxu0 0
        %801 = vmatpush.bf16.msra.mxu0 0
        %802 = vmatpush.bf16.msra.mxu0 0
        %803 = vmatpush.bf16.msra.mxu0 %v788
        %804 = vmatpush.bf16.msra.mxu0 %v786
        %805 = vmatmul.bf16.gmra.mxu0 %v792
        %v806 = vpop.f32.mrf.mxu0
        %v807 = vadd.f32 0.0, %v806
        %v808 = vpop.f32.mrf.mxu0
        %v809 = vadd.f32 0.0, %v808
        %810 = vmatmul.bf16.gmra.mxu0 %v795
        %v811 = vpop.f32.mrf.mxu0
        %v812 = vadd.f32 0.0, %v811
        %v813 = vpop.f32.mrf.mxu0
        %v814 = vadd.f32 0.0, %v813
        %815 = vdwg.mxu0
        %v816 = vpack.c.bf16 %v809, %v807
        %v817 = vpack.c.bf16 %v814, %v812
        %v820 = vunpack.c.l.b16 %v581
        %v821 = vunpack.c.l.b16 %v582
        %v822 = vpack.c.b16 %v821, %v820
        %v825 = vsel %vm589, %v816, 0
        %v828 = vsel %vm589, %v817, 0
        %830 = vmatpush.bf16.msra.mxu0 0
        %831 = vmatpush.bf16.msra.mxu0 0
        %832 = vmatpush.bf16.msra.mxu0 0
        %833 = vmatpush.bf16.msra.mxu0 0
        %834 = vmatpush.bf16.msra.mxu0 0
        %835 = vmatpush.bf16.msra.mxu0 0
        %836 = vmatpush.bf16.msra.mxu0 0
        %837 = vmatpush.bf16.msra.mxu0 %v822
        %838 = vmatmul.bf16.gmra.mxu0 %v825
        %v839 = vpop.f32.mrf.mxu0
        %v840 = vadd.f32 0.0, %v839
        %v841 = vpop.f32.mrf.mxu0
        %v842 = vadd.f32 0.0, %v841
        %843 = vmatmul.bf16.gmra.mxu0 %v828
        %v844 = vpop.f32.mrf.mxu0
        %v845 = vadd.f32 0.0, %v844
        %v846 = vpop.f32.mrf.mxu0
        %v847 = vadd.f32 0.0, %v846
        %848 = vdwg.mxu0
        %v851 = vunpack.c.l.b16 %v579
        %v852 = vunpack.c.l.b16 %v580
        %v853 = vpack.c.b16 %v852, %v851
        %v856 = vsel %vm589, %v692, 0
        %v859 = vsel %vm589, %v693, 0
        %861 = vmatpush.bf16.msra.mxu0 0
        %862 = vmatpush.bf16.msra.mxu0 0
        %863 = vmatpush.bf16.msra.mxu0 0
        %864 = vmatpush.bf16.msra.mxu0 0
        %865 = vmatpush.bf16.msra.mxu0 0
        %866 = vmatpush.bf16.msra.mxu0 0
        %867 = vmatpush.bf16.msra.mxu0 0
        %868 = vmatpush.bf16.msra.mxu0 %v853
        %869 = vmatmul.bf16.gmra.mxu0 %v856
        %v870 = vpop.f32.mrf.mxu0
        %v871 = vadd.f32 %v840, %v870
        %v872 = vpop.f32.mrf.mxu0
        %v873 = vadd.f32 %v842, %v872
        %874 = vmatmul.bf16.gmra.mxu0 %v859
        %v875 = vpop.f32.mrf.mxu0
        %v876 = vadd.f32 %v845, %v875
        %v877 = vpop.f32.mrf.mxu0
        %v878 = vadd.f32 %v847, %v877
        %879 = vdwg.mxu0
        %v880 = vperm.slane %v459, 3
        %v881 = vadd.f32 %v871, %v880
        %v882 = vadd.f32 %v873, %v880
        %v883 = vadd.f32 %v876, %v880
        %v884 = vadd.f32 %v878, %v880
        %v885 = vadd.f32 %v881, %v443
        %v886 = vadd.f32 %v882, %v444
        %v887 = vadd.f32 %v883, %v445
        %v888 = vadd.f32 %v884, %v446
        %v889 = vsel %vm481, %v885, 0.0
        %890 = vadd.xlane.f32.xlu0 %v889
        %v891 = vpop.xlane.xlu0 %890
        %v892 = vsel %vm481, %v886, 0.0
        %893 = vadd.xlane.f32.xlu0 %v892
        %v894 = vpop.xlane.xlu0 %893
        %v895 = vsel %vm481, %v887, 0.0
        %896 = vadd.xlane.f32.xlu0 %v895
        %v897 = vpop.xlane.xlu0 %896
        %v898 = vsel %vm481, %v888, 0.0
        %899 = vadd.xlane.f32.xlu0 %v898
        %v900 = vpop.xlane.xlu0 %899
        %v901 = vrcp.pop 32.0
        %v902 = vmul.f32 32.0, %v901
        %v903 = vsub.f32 1.0, %v902
        %v904 = vmul.f32 %v901, %v903
        %v905 = vadd.f32 %v901, %v904
        %vm906 = vweird.f32 %v901
        %v907 = vsel %vm906, %v901, %v905
        %v908 = vmul.f32 %v891, %v907
        %v909 = vmul.f32 %v894, %v907
        %v910 = vmul.f32 %v897, %v907
        %v911 = vmul.f32 %v900, %v907
        %v912 = vsub.f32 %v885, %v908
        %v913 = vsub.f32 %v886, %v909
        %v914 = vsub.f32 %v887, %v910
        %v915 = vsub.f32 %v888, %v911
        %v916 = vmul.f32 %v912, %v912
        %v917 = vmul.f32 %v913, %v913
        %v918 = vmul.f32 %v914, %v914
        %v919 = vmul.f32 %v915, %v915
        %v920 = vsel %vm481, %v916, 0.0
        %921 = vadd.xlane.f32.xlu0 %v920
        %v922 = vpop.xlane.xlu0 %921
        %v923 = vsel %vm481, %v917, 0.0
        %924 = vadd.xlane.f32.xlu0 %v923
        %v925 = vpop.xlane.xlu0 %924
        %v926 = vsel %vm481, %v918, 0.0
        %927 = vadd.xlane.f32.xlu0 %v926
        %v928 = vpop.xlane.xlu0 %927
        %v929 = vsel %vm481, %v919, 0.0
        %930 = vadd.xlane.f32.xlu0 %v929
        %v931 = vpop.xlane.xlu0 %930
        %v932 = vmul.f32 %v922, %v907
        %v933 = vmul.f32 %v925, %v907
        %v934 = vmul.f32 %v928, %v907
        %v935 = vmul.f32 %v931, %v907
        %v936 = vadd.f32 %v932, 1e-12
        %v937 = vadd.f32 %v933, 1e-12
        %v938 = vadd.f32 %v934, 1e-12
        %v939 = vadd.f32 %v935, 1e-12
        %v940 = vrsqrt.pop %v936
        %v941 = vmul.f32 %v940, %v936
        %v942 = vmul.f32 %v941, %v940
        %v943 = vmul.f32 0.5, %v942
        %v944 = vsub.f32 1.5, %v943
        %v945 = vmul.f32 %v940, %v944
        %vm946 = vweird.f32 %v936
        %vm947 = vweird.f32 %v940
        %vm948 = vmor %vm946, %vm947
        %v949 = vsel %vm948, %v940, %v945
        %v950 = vrsqrt.pop %v937
        %v951 = vmul.f32 %v950, %v937
        %v952 = vmul.f32 %v951, %v950
        %v953 = vmul.f32 0.5, %v952
        %v954 = vsub.f32 1.5, %v953
        %v955 = vmul.f32 %v950, %v954
        %vm956 = vweird.f32 %v937
        %vm957 = vweird.f32 %v950
        %vm958 = vmor %vm956, %vm957
        %v959 = vsel %vm958, %v950, %v955
        %v960 = vrsqrt.pop %v938
        %v961 = vmul.f32 %v960, %v938
        %v962 = vmul.f32 %v961, %v960
        %v963 = vmul.f32 0.5, %v962
        %v964 = vsub.f32 1.5, %v963
        %v965 = vmul.f32 %v960, %v964
        %vm966 = vweird.f32 %v938
        %vm967 = vweird.f32 %v960
        %vm968 = vmor %vm966, %vm967
        %v969 = vsel %vm968, %v960, %v965
        %v970 = vrsqrt.pop %v939
        %v971 = vmul.f32 %v970, %v939
        %v972 = vmul.f32 %v971, %v970
        %v973 = vmul.f32 0.5, %v972
        %v974 = vsub.f32 1.5, %v973
        %v975 = vmul.f32 %v970, %v974
        %vm976 = vweird.f32 %v939
        %vm977 = vweird.f32 %v970
        %vm978 = vmor %vm976, %vm977
        %v979 = vsel %vm978, %v970, %v975
        %v980 = vmul.f32 %v912, %v949
        %v981 = vmul.f32 %v913, %v959
        %v982 = vmul.f32 %v914, %v969
        %v983 = vmul.f32 %v915, %v979
        %v984 = vperm.slane %v459, 4
        %v985 = vmul.f32 %v980, %v984
        %v986 = vmul.f32 %v981, %v984
        %v987 = vmul.f32 %v982, %v984
        %v988 = vmul.f32 %v983, %v984
        %v989 = vperm.slane %v459, 5
        %v990 = vadd.f32 %v985, %v989
        %v991 = vadd.f32 %v986, %v989
        %v992 = vadd.f32 %v987, %v989
        %v993 = vadd.f32 %v988, %v989
        %v994 = vpack.c.bf16 %v991, %v990
        %v995 = vpack.c.bf16 %v993, %v992
        %v996 = vld [vmem:[%s7] sm:$0xf]
        %v997 = vld [vmem:[%s7 + $0x4] sm:$0xf]
        %v998 = vld [vmem:[%s7 + $0x8] sm:$0xf]
        %v999 = vld [vmem:[%s7 + $0xc] sm:$0xf]
        %v1001 = vperm.slane %v461, 0
        %v1007 = vunpack.c.l.b16 %v996
        %v1008 = vunpack.c.l.b16 %v997
        %v1009 = vunpack.c.l.b16 %v998
        %v1010 = vunpack.c.l.b16 %v999
        %v1011 = vpack.c.b16 %v1008, %v1007
        %v1012 = vpack.c.b16 %v1010, %v1009
        %v1016 = vsel %vm481, %v994, 0
        %v1019 = vsel %vm481, %v995, 0
        %1021 = vmatpush.bf16.msra.mxu0 0
        %1022 = vmatpush.bf16.msra.mxu0 0
        %1023 = vmatpush.bf16.msra.mxu0 0
        %1024 = vmatpush.bf16.msra.mxu0 0
        %1025 = vmatpush.bf16.msra.mxu0 0
        %1026 = vmatpush.bf16.msra.mxu0 0
        %1027 = vmatpush.bf16.msra.mxu0 %v1012
        %1028 = vmatpush.bf16.msra.mxu0 %v1011
        %1029 = vmatmul.bf16.gmra.mxu0 %v1016
        %v1030 = vpop.f32.mrf.mxu0
        %v1031 = vadd.f32 %v1001, %v1030
        %v1032 = vpop.f32.mrf.mxu0
        %v1033 = vadd.f32 %v1001, %v1032
        %1034 = vmatmul.bf16.gmra.mxu0 %v1019
        %v1035 = vpop.f32.mrf.mxu0
        %v1036 = vadd.f32 %v1001, %v1035
        %v1037 = vpop.f32.mrf.mxu0
        %v1038 = vadd.f32 %v1001, %v1037
        %1039 = vdwg.mxu0
        %v1040 = vmul.f32 %v1031, 0.5
        %v1041 = vmul.f32 %v1033, 0.5
        %v1042 = vmul.f32 %v1036, 0.5
        %v1043 = vmul.f32 %v1038, 0.5
        %v1044 = vmul.f32 %v1031, 0.044715
        %v1045 = vmul.f32 %v1033, 0.044715
        %v1046 = vmul.f32 %v1036, 0.044715
        %v1047 = vmul.f32 %v1038, 0.044715
        %v1048 = vmul.f32 %v1044, %v1031
        %v1049 = vmul.f32 %v1045, %v1033
        %v1050 = vmul.f32 %v1046, %v1036
        %v1051 = vmul.f32 %v1047, %v1038
        %v1052 = vmul.f32 %v1048, %v1031
        %v1053 = vmul.f32 %v1049, %v1033
        %v1054 = vmul.f32 %v1050, %v1036
        %v1055 = vmul.f32 %v1051, %v1038
        %v1056 = vadd.f32 %v1031, %v1052
        %v1057 = vadd.f32 %v1033, %v1053
        %v1058 = vadd.f32 %v1036, %v1054
        %v1059 = vadd.f32 %v1038, %v1055
        %v1060 = vmul.f32 %v1056, 0.7978846
        %v1061 = vmul.f32 %v1057, 0.7978846
        %v1062 = vmul.f32 %v1058, 0.7978846
        %v1063 = vmul.f32 %v1059, 0.7978846
        %v1064 = vtanh.pop %v1060
        %v1065 = vtanh.pop %v1061
        %v1066 = vtanh.pop %v1062
        %v1067 = vtanh.pop %v1063
        %v1068 = vadd.f32 %v1064, 1.0
        %v1069 = vadd.f32 %v1065, 1.0
        %v1070 = vadd.f32 %v1066, 1.0
        %v1071 = vadd.f32 %v1067, 1.0
        %v1072 = vmul.f32 %v1040, %v1068
        %v1073 = vmul.f32 %v1041, %v1069
        %v1074 = vmul.f32 %v1042, %v1070
        %v1075 = vmul.f32 %v1043, %v1071
        %v1076 = vpack.c.bf16 %v1073, %v1072
        %v1077 = vpack.c.bf16 %v1075, %v1074
        %v1078 = vld [vmem:[%s8] sm:$0xf]
        %v1079 = vld [vmem:[%s8 + $0x4] sm:$0xf]
        %v1080 = vld [vmem:[%s8 + $0x8] sm:$0xf]
        %v1081 = vld [vmem:[%s8 + $0xc] sm:$0xf]
        %v1082 = vld [vmem:[%s8 + $0x10] sm:$0xf]
        %v1083 = vld [vmem:[%s8 + $0x14] sm:$0xf]
        %v1084 = vld [vmem:[%s8 + $0x18] sm:$0xf]
        %v1085 = vld [vmem:[%s8 + $0x1c] sm:$0xf]
        %v1086 = vperm.slane %v459, 6
        %v1095 = vunpack.c.l.b16 %v1078
        %v1096 = vunpack.c.l.b16 %v1079
        %v1097 = vunpack.c.l.b16 %v1080
        %v1098 = vunpack.c.l.b16 %v1081
        %v1099 = vunpack.c.l.b16 %v1082
        %v1100 = vunpack.c.l.b16 %v1083
        %v1101 = vunpack.c.l.b16 %v1084
        %v1102 = vunpack.c.l.b16 %v1085
        %v1103 = vpack.c.b16 %v1096, %v1095
        %v1104 = vpack.c.b16 %v1098, %v1097
        %v1105 = vpack.c.b16 %v1100, %v1099
        %v1106 = vpack.c.b16 %v1102, %v1101
        %vm1111 = vcmask 523264
        %v1113 = vsel %vm1111, %v1076, 0
        %v1116 = vsel %vm1111, %v1077, 0
        %1118 = vmatpush.bf16.msra.mxu0 0
        %1119 = vmatpush.bf16.msra.mxu0 0
        %1120 = vmatpush.bf16.msra.mxu0 0
        %1121 = vmatpush.bf16.msra.mxu0 0
        %1122 = vmatpush.bf16.msra.mxu0 %v1106
        %1123 = vmatpush.bf16.msra.mxu0 %v1105
        %1124 = vmatpush.bf16.msra.mxu0 %v1104
        %1125 = vmatpush.bf16.msra.mxu0 %v1103
        %1126 = vmatmul.bf16.gmra.mxu0 %v1113
        %v1127 = vpop.f32.mrf.mxu0
        %v1128 = vadd.f32 %v1086, %v1127
        %v1129 = vpop.f32.mrf.mxu0
        %v1130 = vadd.f32 %v1086, %v1129
        %1131 = vmatmul.bf16.gmra.mxu0 %v1116
        %v1132 = vpop.f32.mrf.mxu0
        %v1133 = vadd.f32 %v1086, %v1132
        %v1134 = vpop.f32.mrf.mxu0
        %v1135 = vadd.f32 %v1086, %v1134
        %1136 = vdwg.mxu0
        %v1137 = vadd.f32 %v1128, %v990
        %v1138 = vadd.f32 %v1130, %v991
        %v1139 = vadd.f32 %v1133, %v992
        %v1140 = vadd.f32 %v1135, %v993
        %v1141 = vsel %vm481, %v1137, 0.0
        %1142 = vadd.xlane.f32.xlu0 %v1141
        %v1143 = vpop.xlane.xlu0 %1142
        %v1144 = vsel %vm481, %v1138, 0.0
        %1145 = vadd.xlane.f32.xlu0 %v1144
        %v1146 = vpop.xlane.xlu0 %1145
        %v1147 = vsel %vm481, %v1139, 0.0
        %1148 = vadd.xlane.f32.xlu0 %v1147
        %v1149 = vpop.xlane.xlu0 %1148
        %v1150 = vsel %vm481, %v1140, 0.0
        %1151 = vadd.xlane.f32.xlu0 %v1150
        %v1152 = vpop.xlane.xlu0 %1151
        %v1153 = vmul.f32 %v1143, %v907
        %v1154 = vmul.f32 %v1146, %v907
        %v1155 = vmul.f32 %v1149, %v907
        %v1156 = vmul.f32 %v1152, %v907
        %v1157 = vsub.f32 %v1137, %v1153
        %v1158 = vsub.f32 %v1138, %v1154
        %v1159 = vsub.f32 %v1139, %v1155
        %v1160 = vsub.f32 %v1140, %v1156
        %v1161 = vmul.f32 %v1157, %v1157
        %v1162 = vmul.f32 %v1158, %v1158
        %v1163 = vmul.f32 %v1159, %v1159
        %v1164 = vmul.f32 %v1160, %v1160
        %v1165 = vsel %vm481, %v1161, 0.0
        %1166 = vadd.xlane.f32.xlu0 %v1165
        %v1167 = vpop.xlane.xlu0 %1166
        %v1168 = vsel %vm481, %v1162, 0.0
        %1169 = vadd.xlane.f32.xlu0 %v1168
        %v1170 = vpop.xlane.xlu0 %1169
        %v1171 = vsel %vm481, %v1163, 0.0
        %1172 = vadd.xlane.f32.xlu0 %v1171
        %v1173 = vpop.xlane.xlu0 %1172
        %v1174 = vsel %vm481, %v1164, 0.0
        %1175 = vadd.xlane.f32.xlu0 %v1174
        %v1176 = vpop.xlane.xlu0 %1175
        %v1177 = vmul.f32 %v1167, %v907
        %v1178 = vmul.f32 %v1170, %v907
        %v1179 = vmul.f32 %v1173, %v907
        %v1180 = vmul.f32 %v1176, %v907
        %v1181 = vadd.f32 %v1177, 1e-12
        %v1182 = vadd.f32 %v1178, 1e-12
        %v1183 = vadd.f32 %v1179, 1e-12
        %v1184 = vadd.f32 %v1180, 1e-12
        %v1185 = vrsqrt.pop %v1181
        %v1186 = vmul.f32 %v1185, %v1181
        %v1187 = vmul.f32 %v1186, %v1185
        %v1188 = vmul.f32 0.5, %v1187
        %v1189 = vsub.f32 1.5, %v1188
        %v1190 = vmul.f32 %v1185, %v1189
        %vm1191 = vweird.f32 %v1181
        %vm1192 = vweird.f32 %v1185
        %vm1193 = vmor %vm1191, %vm1192
        %v1194 = vsel %vm1193, %v1185, %v1190
        %v1195 = vrsqrt.pop %v1182
        %v1196 = vmul.f32 %v1195, %v1182
        %v1197 = vmul.f32 %v1196, %v1195
        %v1198 = vmul.f32 0.5, %v1197
        %v1199 = vsub.f32 1.5, %v1198
        %v1200 = vmul.f32 %v1195, %v1199
        %vm1201 = vweird.f32 %v1182
        %vm1202 = vweird.f32 %v1195
        %vm1203 = vmor %vm1201, %vm1202
        %v1204 = vsel %vm1203, %v1195, %v1200
        %v1205 = vrsqrt.pop %v1183
        %v1206 = vmul.f32 %v1205, %v1183
        %v1207 = vmul.f32 %v1206, %v1205
        %v1208 = vmul.f32 0.5, %v1207
        %v1209 = vsub.f32 1.5, %v1208
        %v1210 = vmul.f32 %v1205, %v1209
        %vm1211 = vweird.f32 %v1183
        %vm1212 = vweird.f32 %v1205
        %vm1213 = vmor %vm1211, %vm1212
        %v1214 = vsel %vm1213, %v1205, %v1210
        %v1215 = vrsqrt.pop %v1184
        %v1216 = vmul.f32 %v1215, %v1184
        %v1217 = vmul.f32 %v1216, %v1215
        %v1218 = vmul.f32 0.5, %v1217
        %v1219 = vsub.f32 1.5, %v1218
        %v1220 = vmul.f32 %v1215, %v1219
        %vm1221 = vweird.f32 %v1184
        %vm1222 = vweird.f32 %v1215
        %vm1223 = vmor %vm1221, %vm1222
        %v1224 = vsel %vm1223, %v1215, %v1220
        %v1225 = vmul.f32 %v1157, %v1194
        %v1226 = vmul.f32 %v1158, %v1204
        %v1227 = vmul.f32 %v1159, %v1214
        %v1228 = vmul.f32 %v1160, %v1224
        %v1229 = vperm.slane %v459, 7
        %v1230 = vmul.f32 %v1225, %v1229
        %v1231 = vmul.f32 %v1226, %v1229
        %v1232 = vmul.f32 %v1227, %v1229
        %v1233 = vmul.f32 %v1228, %v1229
        %v1234 = vperm.slane %v460, 0
        %v1235 = vadd.f32 %v1230, %v1234
        %v1236 = vadd.f32 %v1231, %v1234
        %v1237 = vadd.f32 %v1232, %v1234
        %v1238 = vadd.f32 %v1233, %v1234
        %1239 = vst.msk [vmem:[%s440] sm:$0xff] %vm481, %v1235
        %1240 = vst.msk [vmem:[%s440 + $0x8] sm:$0xff] %vm481, %v1236
        %1241 = vst.msk [vmem:[%s440 + $0x10] sm:$0xff] %vm481, %v1237
        %1242 = vst.msk [vmem:[%s440 + $0x18] sm:$0xff] %vm481, %v1238
        %s1243 = smul.u32 4, %s26
        %p1244 = scmp.lt.s32.totalorder %s1243, 7
        %s1245 = scalar_select %p1244, %s1243, 7
        %s1246 = smul.addr %s1245, 8
        %s1247 = scalar_lea.vmem %s11, %s1246
        // Predicated region
        $region73: #{tpu_custom_call.1} parent=63 // pred_check
          %p1248 = pneg %p285
        $region74: #{tpu_custom_call.1} parent=63 // pred_check_branch
          %1250 = sbr.rel (%p1248) target = $region76
        $region75: #{tpu_custom_call.1} parent=63 // pred_region
          %s1251 = smul.u32 4, %s26
        $region76: #{tpu_custom_call.1} parent=63 // pred_fallthru
          _
      $region64: #{tpu_custom_call.1} parent=5 // pred_fallthru
        _
      %p1252 = scmp.le.s32.totalorder 2, %s21
      // Predicated region
      $region77: #{tpu_custom_call.1} parent=5 // pred_check
        %p1253 = pneg %p1252
      $region78: #{tpu_custom_call.1} parent=5 // pred_check_branch
        %1255 = sbr.rel (%p1253) target = $region80
      $region79: #{tpu_custom_call.1} parent=5 // pred_region
        %s1256 = ssub.s32 %s21, 2
        // Predicated region
        $region81: #{tpu_custom_call.1} parent=79 // pred_check
          %p1257 = pneg %p291
        $region82: #{tpu_custom_call.1} parent=79 // pred_check_branch
          %1259 = sbr.rel (%p1257) target = $region84
        $region83: #{tpu_custom_call.1} parent=79 // pred_region
          %s1260 = smul.u32 4, %s27
          %p1261 = scmp.lt.s32.totalorder %s1260, 7
          %s1262 = scalar_select %p1261, %s1260, 7
          %s1263 = smul.addr %s1262, 8
          %s1264 = scalar_lea.vmem %s11, %s1263
        $region84: #{tpu_custom_call.1} parent=79 // pred_fallthru
          _
      $region80: #{tpu_custom_call.1} parent=5 // pred_fallthru
        _
    $region6: #{tpu_custom_call.1} parent=1 // loop_footer
      %s25 = sadd.s32 1, %s21
    $region7: #{tpu_custom_call.1} parent=1 // loop_footer_branch
      %20 = sbr.rel target = $region3
    $region8: #{tpu_custom_call.1} parent=1 // loop_exit
      _
    %1265 = vsyncpa [#allocation3], 1
    %s1266 = scalar_lea.sflag [#allocation3], 1
    %1267 = vsyncpa %s1266, 1
    %1268 = vsyncpa [#allocation5], 1

// kernel: tpu_custom_call.1
$region0: #{tpu_custom_call.1}
  #allocation0 [shape = 'u32[]', space=smem, size = 0x4, offset = 0x4, fixed_abs, tag = 'smem constant byte address 0x4 - core index']
  #allocation1 [shape = 'u32[72,128]{1,0:T(1,128)}', space=vmem, size = 0x9000, scoped, tag = 'internal scratch']
  %s0 = inlined_call_operand.vmem [shape: f32[64,32], index: 0, kind: input, shape index: {}]
  %s1 = inlined_call_operand.hbm [shape: f32[2,1,32], index: 1, kind: input, shape index: {}]
  %s2 = inlined_call_operand.vmem [shape: f32[32,32], index: 2, kind: input, shape index: {}]
  %s3 = inlined_call_operand.vmem [shape: bf16[32,32], index: 3, kind: input, shape index: {}]
  %s4 = inlined_call_operand.vmem [shape: bf16[32,32], index: 4, kind: input, shape index: {}]
  %s5 = inlined_call_operand.vmem [shape: bf16[32,32], index: 5, kind: input, shape index: {}]
  %s6 = inlined_call_operand.vmem [shape: bf16[32,32], index: 6, kind: input, shape index: {}]
  %s7 = inlined_call_operand.vmem [shape: bf16[32,64], index: 7, kind: input, shape index: {}]
  %s8 = inlined_call_operand.vmem [shape: bf16[64,32], index: 8, kind: input, shape index: {}]
  %s9 = inlined_call_operand.hbm [shape: f32[9,32], index: 9, kind: input, shape index: {}]
  %s10 = inlined_call_operand.vmem [shape: f32[1,64], index: 10, kind: input, shape index: {}]
  %s11 = inlined_call_operand.vmem [shape: f32[64,32], index: 11, kind: output, shape index: {}]
  %s12 = sld [smem:[#allocation0]]
  $region85: #{tpu_custom_call.1} parent=0
    _
  %s14 = ssub.s32 1, %s12
  %s15 = scalar_select 0, %s14, %s12
  $region1: #{tpu_custom_call.1} parent=0
    #allocation2 [shape = 'u8[1024]{0}', space=vmem, size = 0x400, scoped, tag = 'input window, operand 1']
    #allocation3 [shape = 's32[2]{0}', space=sflag, size = 0x8, scoped, tag = 'scoped memory for tpu_custom_call.1']
    #allocation4 [shape = 'u8[8192]{0}', space=vmem, size = 0x2000, scoped, tag = 'input window, operand 9, single buffered']
    #allocation5 [shape = 's32[1]{0}', space=sflag, size = 0x4, scoped, tag = 'scoped memory for tpu_custom_call.1']
    %16 = vsyncpa [#allocation3], 0
    %s17 = scalar_lea.sflag [#allocation3], 1
    %18 = vsyncpa %s17, 0
    %19 = vsyncpa [#allocation5], 0
    loop: start=0, step=1, limit=4
    $region2: #{tpu_custom_call.1} parent=1 // loop_pre_header
      _
    $region3: #{tpu_custom_call.1} parent=1 // loop_header
      %s21 = sphi 0, %s25
      %p22 = scmp.ge.s32.totalorder %s21, 4
      %s31 = sphi 0, %s33
      %s34 = sphi 0, %s31
      %s35 = sphi 0, %s34
      %s51 = sphi 0, %s35
      %s57 = sphi 0, %s59
      %s60 = sphi 0, %s57
      %s61 = sphi 0, %s60
      %s77 = sphi 0, %s61
      %s81 = sphi 0, %s81
      %s83 = sphi 0, %s81
      %s84 = sphi 0, %s83
      %s98 = sphi 0, %s84
      %s102 = sphi 0, %s102
      %s104 = sphi 0, %s102
      %s105 = sphi 0, %s104
      %s119 = sphi 0, %s105
      %s123 = sphi 0, %s123
      %s125 = sphi 0, %s123
      %s126 = sphi 0, %s125
      %s140 = sphi 0, %s126
      %s144 = sphi 0, %s144
      %s146 = sphi 0, %s144
      %s147 = sphi 0, %s146
      %s161 = sphi 0, %s147
      %s165 = sphi 0, %s165
      %s167 = sphi 0, %s165
      %s168 = sphi 0, %s167
      %s182 = sphi 0, %s168
      %s186 = sphi 0, %s186
      %s188 = sphi 0, %s186
      %s189 = sphi 0, %s188
      %s203 = sphi 0, %s189
      %s207 = sphi 0, %s207
      %s209 = sphi 0, %s207
      %s210 = sphi 0, %s209
      %s224 = sphi 0, %s210
      %s228 = sphi 0, %s228
      %s230 = sphi 0, %s228
      %s231 = sphi 0, %s230
      %s245 = sphi 0, %s231
      %s249 = sphi 0, %s249
      %s251 = sphi 0, %s249
      %s252 = sphi 0, %s251
      %s266 = sphi 0, %s252
      %s272 = sphi 0, %s274
      %s275 = sphi 0, %s272
      %s276 = sphi 0, %s275
      %s292 = sphi 0, %s276
    $region4: #{tpu_custom_call.1} parent=1 // loop_header_branch
      %24 = sbr.rel (%p22) target = $region8
    $region5: #{tpu_custom_call.1} parent=1 // loop_body
      %s26 = ssub.s32 %s21, 1
      %s27 = ssub.s32 %s21, 2
      %s28 = sadd.s32 %s21, 1
      %s29 = ssub.s32 %s21, %s28
      %p30 = scmp.eq.s32.totalorder %s29, 0
      %s32 = sadd.s32 %s31, 1
      %s33 = scalar_select %p30, %s31, %s32
      %p36 = pneg %p30
      %p37 = scmp.eq.s32.totalorder %s21, 1
      %p38 = por %p36, %p37
      %p39 = scmp.ne.s32.totalorder %s31, %s34
      %p40 = scmp.eq.s32.totalorder %s21, 0
      %p41 = por %p39, %p40
      %p42 = scmp.ne.s32.totalorder %s31, %s34
      %p43 = scmp.eq.s32.totalorder %s26, 1
      %p44 = por %p42, %p43
      %p45 = scmp.ne.s32.totalorder %s34, %s35
      %p46 = scmp.eq.s32.totalorder %s26, 0
      %p47 = por %p45, %p46
      %p48 = scmp.ne.s32.totalorder %s34, %s35
      %p49 = scmp.eq.s32.totalorder %s27, 1
      %p50 = por %p48, %p49
      %p52 = scmp.ne.s32.totalorder %s35, %s51
      %p53 = scmp.eq.s32.totalorder %s27, 0
      %p54 = por %p52, %p53
      %s55 = ssub.s32 %s21, %s28
      %p56 = scmp.eq.s32.totalorder %s55, 0
      %s58 = sadd.s32 %s57, 1
      %s59 = scalar_select %p56, %s57, %s58
      %p62 = pneg %p56
      %p63 = scmp.eq.s32.totalorder %s21, 1
      %p64 = por %p62, %p63
      %p65 = scmp.ne.s32.totalorder %s57, %s60
      %p66 = scmp.eq.s32.totalorder %s21, 0
      %p67 = por %p65, %p66
      %p68 = scmp.ne.s32.totalorder %s57, %s60
      %p69 = scmp.eq.s32.totalorder %s26, 1
      %p70 = por %p68, %p69
      %p71 = scmp.ne.s32.totalorder %s60, %s61
      %p72 = scmp.eq.s32.totalorder %s26, 0
      %p73 = por %p71, %p72
      %p74 = scmp.ne.s32.totalorder %s60, %s61
      %p75 = scmp.eq.s32.totalorder %s27, 1
      %p76 = por %p74, %p75
      %p78 = scmp.ne.s32.totalorder %s61, %s77
      %p79 = scmp.eq.s32.totalorder %s27, 0
      %p80 = por %p78, %p79
      %s82 = sadd.s32 %s81, 1
      %p85 = scmp.eq.s32.totalorder %s21, 1
      %p86 = scmp.ne.s32.totalorder %s81, %s83
      %p87 = scmp.eq.s32.totalorder %s21, 0
      %p88 = por %p86, %p87
      %p89 = scmp.ne.s32.totalorder %s81, %s83
      %p90 = scmp.eq.s32.totalorder %s26, 1
      %p91 = por %p89, %p90
      %p92 = scmp.ne.s32.totalorder %s83, %s84
      %p93 = scmp.eq.s32.totalorder %s26, 0
      %p94 = por %p92, %p93
      %p95 = scmp.ne.s32.totalorder %s83, %s84
      %p96 = scmp.eq.s32.totalorder %s27, 1
      %p97 = por %p95, %p96
      %p99 = scmp.ne.s32.totalorder %s84, %s98
      %p100 = scmp.eq.s32.totalorder %s27, 0
      %p101 = por %p99, %p100
      %s103 = sadd.s32 %s102, 1
      %p106 = scmp.eq.s32.totalorder %s21, 1
      %p107 = scmp.ne.s32.totalorder %s102, %s104
      %p108 = scmp.eq.s32.totalorder %s21, 0
      %p109 = por %p107, %p108
      %p110 = scmp.ne.s32.totalorder %s102, %s104
      %p111 = scmp.eq.s32.totalorder %s26, 1
      %p112 = por %p110, %p111
      %p113 = scmp.ne.s32.totalorder %s104, %s105
      %p114 = scmp.eq.s32.totalorder %s26, 0
      %p115 = por %p113, %p114
      %p116 = scmp.ne.s32.totalorder %s104, %s105
      %p117 = scmp.eq.s32.totalorder %s27, 1
      %p118 = por %p116, %p117
      %p120 = scmp.ne.s32.totalorder %s105, %s119
      %p121 = scmp.eq.s32.totalorder %s27, 0
      %p122 = por %p120, %p121
      %s124 = sadd.s32 %s123, 1
      %p127 = scmp.eq.s32.totalorder %s21, 1
      %p128 = scmp.ne.s32.totalorder %s123, %s125
      %p129 = scmp.eq.s32.totalorder %s21, 0
      %p130 = por %p128, %p129
      %p131 = scmp.ne.s32.totalorder %s123, %s125
      %p132 = scmp.eq.s32.totalorder %s26, 1
      %p133 = por %p131, %p132
      %p134 = scmp.ne.s32.totalorder %s125, %s126
      %p135 = scmp.eq.s32.totalorder %s26, 0
      %p136 = por %p134, %p135
      %p137 = scmp.ne.s32.totalorder %s125, %s126
      %p138 = scmp.eq.s32.totalorder %s27, 1
      %p139 = por %p137, %p138
      %p141 = scmp.ne.s32.totalorder %s126, %s140
      %p142 = scmp.eq.s32.totalorder %s27, 0
      %p143 = por %p141, %p142
      %s145 = sadd.s32 %s144, 1
      %p148 = scmp.eq.s32.totalorder %s21, 1
      %p149 = scmp.ne.s32.totalorder %s144, %s146
      %p150 = scmp.eq.s32.totalorder %s21, 0
      %p151 = por %p149, %p150
      %p152 = scmp.ne.s32.totalorder %s144, %s146
      %p153 = scmp.eq.s32.totalorder %s26, 1
      %p154 = por %p152, %p153
      %p155 = scmp.ne.s32.totalorder %s146, %s147
      %p156 = scmp.eq.s32.totalorder %s26, 0
      %p157 = por %p155, %p156
      %p158 = scmp.ne.s32.totalorder %s146, %s147
      %p159 = scmp.eq.s32.totalorder %s27, 1
      %p160 = por %p158, %p159
      %p162 = scmp.ne.s32.totalorder %s147, %s161
      %p163 = scmp.eq.s32.totalorder %s27, 0
      %p164 = por %p162, %p163
      %s166 = sadd.s32 %s165, 1
      %p169 = scmp.eq.s32.totalorder %s21, 1
      %p170 = scmp.ne.s32.totalorder %s165, %s167
      %p171 = scmp.eq.s32.totalorder %s21, 0
      %p172 = por %p170, %p171
      %p173 = scmp.ne.s32.totalorder %s165, %s167
      %p174 = scmp.eq.s32.totalorder %s26, 1
      %p175 = por %p173, %p174
      %p176 = scmp.ne.s32.totalorder %s167, %s168
      %p177 = scmp.eq.s32.totalorder %s26, 0
      %p178 = por %p176, %p177
      %p179 = scmp.ne.s32.totalorder %s167, %s168
      %p180 = scmp.eq.s32.totalorder %s27, 1
      %p181 = por %p179, %p180
      %p183 = scmp.ne.s32.totalorder %s168, %s182
      %p184 = scmp.eq.s32.totalorder %s27, 0
      %p185 = por %p183, %p184
      %s187 = sadd.s32 %s186, 1
      %p190 = scmp.eq.s32.totalorder %s21, 1
      %p191 = scmp.ne.s32.totalorder %s186, %s188
      %p192 = scmp.eq.s32.totalorder %s21, 0
      %p193 = por %p191, %p192
      %p194 = scmp.ne.s32.totalorder %s186, %s188
      %p195 = scmp.eq.s32.totalorder %s26, 1
      %p196 = por %p194, %p195
      %p197 = scmp.ne.s32.totalorder %s188, %s189
      %p198 = scmp.eq.s32.totalorder %s26, 0
      %p199 = por %p197, %p198
      %p200 = scmp.ne.s32.totalorder %s188, %s189
      %p201 = scmp.eq.s32.totalorder %s27, 1
      %p202 = por %p200, %p201
      %p204 = scmp.ne.s32.totalorder %s189, %s203
      %p205 = scmp.eq.s32.totalorder %s27, 0
      %p206 = por %p204, %p205
      %s208 = sadd.s32 %s207, 1
      %p211 = scmp.eq.s32.totalorder %s21, 1
      %p212 = scmp.ne.s32.totalorder %s207, %s209
      %p213 = scmp.eq.s32.totalorder %s21, 0
      %p214 = por %p212, %p213
      %p215 = scmp.ne.s32.totalorder %s207, %s209
      %p216 = scmp.eq.s32.totalorder %s26, 1
      %p217 = por %p215, %p216
      %p218 = scmp.ne.s32.totalorder %s209, %s210
      %p219 = scmp.eq.s32.totalorder %s26, 0
      %p220 = por %p218, %p219
      %p221 = scmp.ne.s32.totalorder %s209, %s210
      %p222 = scmp.eq.s32.totalorder %s27, 1
      %p223 = por %p221, %p222
      %p225 = scmp.ne.s32.totalorder %s210, %s224
      %p226 = scmp.eq.s32.totalorder %s27, 0
      %p227 = por %p225, %p226
      %s229 = sadd.s32 %s228, 1
      %p232 = scmp.eq.s32.totalorder %s21, 1
      %p233 = scmp.ne.s32.totalorder %s228, %s230
      %p234 = scmp.eq.s32.totalorder %s21, 0
      %p235 = por %p233, %p234
      %p236 = scmp.ne.s32.totalorder %s228, %s230
      %p237 = scmp.eq.s32.totalorder %s26, 1
      %p238 = por %p236, %p237
      %p239 = scmp.ne.s32.totalorder %s230, %s231
      %p240 = scmp.eq.s32.totalorder %s26, 0
      %p241 = por %p239, %p240
      %p242 = scmp.ne.s32.totalorder %s230, %s231
      %p243 = scmp.eq.s32.totalorder %s27, 1
      %p244 = por %p242, %p243
      %p246 = scmp.ne.s32.totalorder %s231, %s245
      %p247 = scmp.eq.s32.totalorder %s27, 0
      %p248 = por %p246, %p247
      %s250 = sadd.s32 %s249, 1
      %p253 = scmp.eq.s32.totalorder %s21, 1
      %p254 = scmp.ne.s32.totalorder %s249, %s251
      %p255 = scmp.eq.s32.totalorder %s21, 0
      %p256 = por %p254, %p255
      %p257 = scmp.ne.s32.totalorder %s249, %s251
      %p258 = scmp.eq.s32.totalorder %s26, 1
      %p259 = por %p257, %p258
      %p260 = scmp.ne.s32.totalorder %s251, %s252
      %p261 = scmp.eq.s32.totalorder %s26, 0
      %p262 = por %p260, %p261
      %p263 = scmp.ne.s32.totalorder %s251, %s252
      %p264 = scmp.eq.s32.totalorder %s27, 1
      %p265 = por %p263, %p264
      %p267 = scmp.ne.s32.totalorder %s252, %s266
      %p268 = scmp.eq.s32.totalorder %s27, 0
      %p269 = por %p267, %p268
      %s270 = ssub.s32 %s21, %s28
      %p271 = scmp.eq.s32.totalorder %s270, 0
      %s273 = sadd.s32 %s272, 1
      %s274 = scalar_select %p271, %s272, %s273
      %p277 = pneg %p271
      %p278 = scmp.eq.s32.totalorder %s21, 1
      %p279 = por %p277, %p278
      %p280 = scmp.ne.s32.totalorder %s272, %s275
      %p281 = scmp.eq.s32.totalorder %s21, 0
      %p282 = por %p280, %p281
      %p283 = scmp.ne.s32.totalorder %s272, %s275
      %p284 = scmp.eq.s32.totalorder %s26, 1
      %p285 = por %p283, %p284
      %p286 = scmp.ne.s32.totalorder %s275, %s276
      %p287 = scmp.eq.s32.totalorder %s26, 0
      %p288 = por %p286, %p287
      %p289 = scmp.ne.s32.totalorder %s275, %s276
      %p290 = scmp.eq.s32.totalorder %s27, 1
      %p291 = por %p289, %p290
      %p293 = scmp.ne.s32.totalorder %s276, %s292
      %p294 = scmp.eq.s32.totalorder %s27, 0
      %p295 = por %p293, %p294
      %p296 = scmp.le.s32.totalorder 1, %s21
      %p297 = scmp.lt.s32.totalorder %s21, 3
      %p298 = pnand %p296, %p297
      %p299 = pneg %p298
      // Predicated region
      $region9: #{tpu_custom_call.1} parent=5 // pred_check
        _
      $region10: #{tpu_custom_call.1} parent=5 // pred_check_branch
        %301 = sbr.rel (%p298) target = $region12
      $region11: #{tpu_custom_call.1} parent=5 // pred_region
        %s302 = ssub.s32 %s21, 1
        // Predicated region
        $region13: #{tpu_custom_call.1} parent=11 // pred_check
          %p303 = pneg %p94
        $region14: #{tpu_custom_call.1} parent=11 // pred_check_branch
          %305 = sbr.rel (%p303) target = $region16
        $region15: #{tpu_custom_call.1} parent=11 // pred_region
          _
        $region16: #{tpu_custom_call.1} parent=11 // pred_fallthru
          _
        // Predicated region
        $region17: #{tpu_custom_call.1} parent=11 // pred_check
          %p306 = pneg %p115
        $region18: #{tpu_custom_call.1} parent=11 // pred_check_branch
          %308 = sbr.rel (%p306) target = $region20
        $region19: #{tpu_custom_call.1} parent=11 // pred_region
          _
        $region20: #{tpu_custom_call.1} parent=11 // pred_fallthru
          _
        // Predicated region
        $region21: #{tpu_custom_call.1} parent=11 // pred_check
          %p309 = pneg %p136
        $region22: #{tpu_custom_call.1} parent=11 // pred_check_branch
          %311 = sbr.rel (%p309) target = $region24
        $region23: #{tpu_custom_call.1} parent=11 // pred_region
          _
        $region24: #{tpu_custom_call.1} parent=11 // pred_fallthru
          _
        // Predicated region
        $region25: #{tpu_custom_call.1} parent=11 // pred_check
          %p312 = pneg %p157
        $region26: #{tpu_custom_call.1} parent=11 // pred_check_branch
          %314 = sbr.rel (%p312) target = $region28
        $region27: #{tpu_custom_call.1} parent=11 // pred_region
          _
        $region28: #{tpu_custom_call.1} parent=11 // pred_fallthru
          _
        // Predicated region
        $region29: #{tpu_custom_call.1} parent=11 // pred_check
          %p315 = pneg %p178
        $region30: #{tpu_custom_call.1} parent=11 // pred_check_branch
          %317 = sbr.rel (%p315) target = $region32
        $region31: #{tpu_custom_call.1} parent=11 // pred_region
          _
        $region32: #{tpu_custom_call.1} parent=11 // pred_fallthru
          _
        // Predicated region
        $region33: #{tpu_custom_call.1} parent=11 // pred_check
          %p318 = pneg %p199
        $region34: #{tpu_custom_call.1} parent=11 // pred_check_branch
          %320 = sbr.rel (%p318) target = $region36
        $region35: #{tpu_custom_call.1} parent=11 // pred_region
          _
        $region36: #{tpu_custom_call.1} parent=11 // pred_fallthru
          _
        // Predicated region
        $region37: #{tpu_custom_call.1} parent=11 // pred_check
          %p321 = pneg %p220
        $region38: #{tpu_custom_call.1} parent=11 // pred_check_branch
          %323 = sbr.rel (%p321) target = $region40
        $region39: #{tpu_custom_call.1} parent=11 // pred_region
          _
        $region40: #{tpu_custom_call.1} parent=11 // pred_fallthru
          _
        // Predicated region
        $region41: #{tpu_custom_call.1} parent=11 // pred_check
          %p324 = pneg %p241
        $region42: #{tpu_custom_call.1} parent=11 // pred_check_branch
          %326 = sbr.rel (%p324) target = $region44
        $region43: #{tpu_custom_call.1} parent=11 // pred_region
          %328 = vsyncadd [#allocation5], 0
          %s329 = sshll.u32 %s9, 4
          %s330 = int_to_ptr.hbm [resolvable:$true] %s329
          %s331 = sshll.u32 [#allocation4], 4
          %s332 = int_to_ptr.vmem [resolvable:$true] %s331
          %337 = dma.hbm_to_vmem [thread:$0]  %s330, 256, %s332, [#allocation5], 128, 128, 8
        $region44: #{tpu_custom_call.1} parent=11 // pred_fallthru
          _
        // Predicated region
        $region45: #{tpu_custom_call.1} parent=11 // pred_check
          %p338 = pneg %p262
        $region46: #{tpu_custom_call.1} parent=11 // pred_check_branch
          %340 = sbr.rel (%p338) target = $region48
        $region47: #{tpu_custom_call.1} parent=11 // pred_region
          _
        $region48: #{tpu_custom_call.1} parent=11 // pred_fallthru
          _
      $region12: #{tpu_custom_call.1} parent=5 // pred_fallthru
        _
      %p341 = scmp.lt.s32.totalorder %s21, 2
      // Predicated region
      $region49: #{tpu_custom_call.1} parent=5 // pred_check
        %p342 = pneg %p341
      $region50: #{tpu_custom_call.1} parent=5 // pred_check_branch
        %344 = sbr.rel (%p342) target = $region52
      $region51: #{tpu_custom_call.1} parent=5 // pred_region
        // Predicated region
        $region53: #{tpu_custom_call.1} parent=51 // pred_check
          %p345 = pneg %p41
        $region54: #{tpu_custom_call.1} parent=51 // pred_check_branch
          %347 = sbr.rel (%p345) target = $region56
        $region55: #{tpu_custom_call.1} parent=51 // pred_region
          %s348 = smul.u32 4, %s21
          %p349 = scmp.lt.s32.totalorder %s348, 7
          %s350 = scalar_select %p349, %s348, 7
          %s351 = smul.addr %s350, 8
          %s352 = scalar_lea.vmem %s0, %s351
          %s353 = smul.u32 4, %s21
        $region56: #{tpu_custom_call.1} parent=51 // pred_fallthru
          _
        // Predicated region
        $region57: #{tpu_custom_call.1} parent=51 // pred_check
          %p354 = pneg %p67
        $region58: #{tpu_custom_call.1} parent=51 // pred_check_branch
          %356 = sbr.rel (%p354) target = $region60
        $region59: #{tpu_custom_call.1} parent=51 // pred_region
          %s357 = sand.u32 %s57, 1
          %s358 = scalar_lea.sflag [#allocation3], %s357
          %s359 = sand.u32 %s57, 1
          %s360 = scalar_lea.vmem [#allocation2], %s359
          %362 = vsyncadd %s358, 0
          %s363 = scalar_lea.hbm %s1, %s21
          %s365 = sshll.u32 %s363, 4
          %s366 = int_to_ptr.hbm [resolvable:$true] %s365
          %s367 = sshll.u32 %s360, 4
          %s368 = int_to_ptr.vmem [resolvable:$true] %s367
          %370 = dma.hbm_to_vmem [thread:$0]  %s366, 16, %s368, %s358
        $region60: #{tpu_custom_call.1} parent=51 // pred_fallthru
          _
      $region52: #{tpu_custom_call.1} parent=5 // pred_fallthru
        _
      %p371 = scmp.le.s32.totalorder 1, %s21
      %p372 = scmp.lt.s32.totalorder %s21, 3
      %p373 = pnand %p371, %p372
      %p374 = pneg %p373
      // Predicated region
      $region61: #{tpu_custom_call.1} parent=5 // pred_check
        _
      $region62: #{tpu_custom_call.1} parent=5 // pred_check_branch
        %376 = sbr.rel (%p373) target = $region64
      $region63: #{tpu_custom_call.1} parent=5 // pred_region
        %s377 = ssub.s32 %s21, 1
        %s378 = sand.u32 %s60, 1
        %s379 = scalar_lea.sflag [#allocation3], %s378
        %s380 = sand.u32 %s60, 1
        %s381 = scalar_lea.vmem [#allocation2], %s380
        // Predicated region
        $region65: #{tpu_custom_call.1} parent=63 // pred_check
          %p382 = pneg %p73
        $region66: #{tpu_custom_call.1} parent=63 // pred_check_branch
          %384 = sbr.rel (%p382) target = $region68
        $region67: #{tpu_custom_call.1} parent=63 // pred_region
          %386 = dma.done %s379, 16
        $region68: #{tpu_custom_call.1} parent=63 // pred_fallthru
          _
        // Predicated region
        $region69: #{tpu_custom_call.1} parent=63 // pred_check
          %p387 = pneg %p241
        $region70: #{tpu_custom_call.1} parent=63 // pred_check_branch
          %389 = sbr.rel (%p387) target = $region72
        $region71: #{tpu_custom_call.1} parent=63 // pred_region
          %391 = dma.done [#allocation5], 256
        $region72: #{tpu_custom_call.1} parent=63 // pred_fallthru
          _
        %s392 = smul.u32 4, %s26
        %p393 = scmp.lt.s32.totalorder %s392, 7
        %s394 = scalar_select %p393, %s392, 7
        %s395 = smul.addr %s394, 8
        %s396 = scalar_lea.vmem %s0, %s395
        %p397 = pneg %p47
        %p398 = pneg %p44
        %s399 = sand.u32 %s60, 1
        %s400 = scalar_lea.sflag [#allocation3], %s399
        %s401 = sand.u32 %s60, 1
        %s402 = scalar_lea.vmem [#allocation2], %s401
        %p403 = pneg %p73
        %p404 = pneg %p70
        %p405 = pneg %p94
        %p406 = pneg %p91
        %p407 = pneg %p115
        %p408 = pneg %p112
        %p409 = pneg %p136
        %p410 = pneg %p133
        %p411 = pneg %p157
        %p412 = pneg %p154
        %p413 = pneg %p178
        %p414 = pneg %p175
        %p415 = pneg %p199
        %p416 = pneg %p196
        %p417 = pneg %p220
        %p418 = pneg %p217
        %p419 = pneg %p241
        %p420 = pneg %p238
        %p421 = pneg %p262
        %p422 = pneg %p259
        %p423 = pneg %p288
        %p424 = pneg %p285
        %s425 = smul.u32 4, %s26
        %p426 = scmp.lt.s32.totalorder %s425, 7
        %s427 = scalar_select %p426, %s425, 7
        %s428 = smul.addr %s427, 8
        %s429 = scalar_lea.vmem %s11, %s428
        %s430 = smul.u32 4, %s26
        %p431 = scmp.lt.s32.totalorder %s430, 7
        %s432 = scalar_select %p431, %s430, 7
        %s433 = smul.addr %s432, 8
        %s434 = scalar_lea.vmem %s0, %s433
        %s435 = smul.u32 4, %s26
        %s436 = smul.u32 4, %s26
        %p437 = scmp.lt.s32.totalorder %s436, 7
        %s438 = scalar_select %p437, %s436, 7
        %s439 = smul.addr %s438, 8
        %s440 = scalar_lea.vmem %s11, %s439
        %s441 = smul.u32 4, %s26
        %v443 = vld [vmem:[%s434] sm:$0xff]
        %v444 = vld [vmem:[%s434 + $0x8] sm:$0xff]
        %v445 = vld [vmem:[%s434 + $0x10] sm:$0xff]
        %v446 = vld [vmem:[%s434 + $0x18] sm:$0xff]
        %v447 = vld [vmem:[%s2] sm:$0xff]
        %v448 = vld [vmem:[%s2 + $0x8] sm:$0xff]
        %v449 = vld [vmem:[%s2 + $0x10] sm:$0xff]
        %v450 = vld [vmem:[%s2 + $0x18] sm:$0xff]
        %v451 = vld [vmem:[%s381] sm:$0x1]
        %v453 = vperm.slane %v451, 0
        %v455 = vadd.f32 %v447, %v453
        %v456 = vadd.f32 %v448, %v453
        %v457 = vadd.f32 %v449, %v453
        %v458 = vadd.f32 %v450, %v453
        %v459 = vld [vmem:[#allocation4] sm:$0xff]
        %v460 = vld [vmem:[#allocation4 + $0x8] sm:$0x1]
        %v461 = vld [vmem:[%s10] sm:$0x1]
        %v462 = vpack.c.bf16 %v444, %v443
        %v463 = vpack.c.bf16 %v446, %v445
        %v464 = vld [vmem:[%s3] sm:$0xf]
        %v465 = vld [vmem:[%s3 + $0x4] sm:$0xf]
        %v466 = vld [vmem:[%s3 + $0x8] sm:$0xf]
        %v467 = vld [vmem:[%s3 + $0xc] sm:$0xf]
        %v468 = vperm.slane %v459, 0
        %v473 = vunpack.c.l.b16 %v464
        %v474 = vunpack.c.l.b16 %v465
        %v475 = vunpack.c.l.b16 %v466
        %v476 = vunpack.c.l.b16 %v467
        %v477 = vpack.c.b16 %v474, %v473
        %v478 = vpack.c.b16 %v476, %v475
        %vm481 = vcmask 261120
        %v483 = vsel %vm481, %v462, 0
        %v486 = vsel %vm481, %v463, 0
        %488 = vmatpush.bf16.msra.mxu0 0
        %489 = vmatpush.bf16.msra.mxu0 0
        %490 = vmatpush.bf16.msra.mxu0 0
        %491 = vmatpush.bf16.msra.mxu0 0
        %492 = vmatpush.bf16.msra.mxu0 0
        %493 = vmatpush.bf16.msra.mxu0 0
        %494 = vmatpush.bf16.msra.mxu0 %v478
        %495 = vmatpush.bf16.msra.mxu0 %v477
        %496 = vmatmul.bf16.gmra.mxu0 %v483
        %v497 = vpop.f32.mrf.mxu0
        %v498 = vadd.f32 %v468, %v497
        %v499 = vpop.f32.mrf.mxu0
        %v500 = vadd.f32 %v468, %v499
        %501 = vmatmul.bf16.gmra.mxu0 %v486
        %v502 = vpop.f32.mrf.mxu0
        %v503 = vadd.f32 %v468, %v502
        %v504 = vpop.f32.mrf.mxu0
        %v505 = vadd.f32 %v468, %v504
        %506 = vdwg.mxu0
        %v507 = vld [vmem:[%s4] sm:$0xf]
        %v508 = vld [vmem:[%s4 + $0x4] sm:$0xf]
        %v509 = vld [vmem:[%s4 + $0x8] sm:$0xf]
        %v510 = vld [vmem:[%s4 + $0xc] sm:$0xf]
        %v511 = vperm.slane %v459, 1
        %v516 = vunpack.c.l.b16 %v507
        %v517 = vunpack.c.l.b16 %v508
        %v518 = vunpack.c.l.b16 %v509
        %v519 = vunpack.c.l.b16 %v510
        %v520 = vpack.c.b16 %v517, %v516
        %v521 = vpack.c.b16 %v519, %v518
        %524 = vmatpush.bf16.msra.mxu0 0
        %525 = vmatpush.bf16.msra.mxu0 0
        %526 = vmatpush.bf16.msra.mxu0 0
        %527 = vmatpush.bf16.msra.mxu0 0
        %528 = vmatpush.bf16.msra.mxu0 0
        %529 = vmatpush.bf16.msra.mxu0 0
        %530 = vmatpush.bf16.msra.mxu0 %v521
        %531 = vmatpush.bf16.msra.mxu0 %v520
        %532 = vmatmul.bf16.gmra.mxu0 %v483
        %v533 = vpop.f32.mrf.mxu0
        %v534 = vadd.f32 %v511, %v533
        %v535 = vpop.f32.mrf.mxu0
        %v536 = vadd.f32 %v511, %v535
        %537 = vmatmul.bf16.gmra.mxu0 %v486
        %v538 = vpop.f32.mrf.mxu0
        %v539 = vadd.f32 %v511, %v538
        %v540 = vpop.f32.mrf.mxu0
        %v541 = vadd.f32 %v511, %v540
        %542 = vdwg.mxu0
        %v543 = vld [vmem:[%s5] sm:$0xf]
        %v544 = vld [vmem:[%s5 + $0x4] sm:$0xf]
        %v545 = vld [vmem:[%s5 + $0x8] sm:$0xf]
        %v546 = vld [vmem:[%s5 + $0xc] sm:$0xf]
        %v547 = vperm.slane %v459, 2
        %v552 = vunpack.c.l.b16 %v543
        %v553 = vunpack.c.l.b16 %v544
        %v554 = vunpack.c.l.b16 %v545
        %v555 = vunpack.c.l.b16 %v546
        %v556 = vpack.c.b16 %v553, %v552
        %v557 = vpack.c.b16 %v555, %v554
        %560 = vmatpush.bf16.msra.mxu0 0
        %561 = vmatpush.bf16.msra.mxu0 0
        %562 = vmatpush.bf16.msra.mxu0 0
        %563 = vmatpush.bf16.msra.mxu0 0
        %564 = vmatpush.bf16.msra.mxu0 0
        %565 = vmatpush.bf16.msra.mxu0 0
        %566 = vmatpush.bf16.msra.mxu0 %v557
        %567 = vmatpush.bf16.msra.mxu0 %v556
        %568 = vmatmul.bf16.gmra.mxu0 %v483
        %v569 = vpop.f32.mrf.mxu0
        %v570 = vadd.f32 %v547, %v569
        %v571 = vpop.f32.mrf.mxu0
        %v572 = vadd.f32 %v547, %v571
        %573 = vmatmul.bf16.gmra.mxu0 %v486
        %v574 = vpop.f32.mrf.mxu0
        %v575 = vadd.f32 %v547, %v574
        %v576 = vpop.f32.mrf.mxu0
        %v577 = vadd.f32 %v547, %v576
        %578 = vdwg.mxu0
        %v579 = vld [vmem:[%s6] sm:$0xf]
        %v580 = vld [vmem:[%s6 + $0x4] sm:$0xf]
        %v581 = vld [vmem:[%s6 + $0x8] sm:$0xf]
        %v582 = vld [vmem:[%s6 + $0xc] sm:$0xf]
        %v583 = vpack.c.bf16 %v500, %v498
        %v584 = vpack.c.bf16 %v505, %v503
        %v585 = vpack.c.bf16 %v536, %v534
        %v586 = vpack.c.bf16 %v541, %v539
        %v587 = vpack.c.bf16 %v572, %v570
        %v588 = vpack.c.bf16 %v577, %v575
        %vm589 = vcmask 130048
        %v591 = vsel %vm589, %v583, 0
        %v594 = vsel %vm589, %v584, 0
        %v597 = vsel %vm589, %v585, 0
        %v600 = vsel %vm589, %v586, 0
        %602 = vmatpush.bf16.xpose.msra.mxu0 0
        %603 = vmatpush.bf16.xpose.msra.mxu0 0
        %604 = vmatpush.bf16.xpose.msra.mxu0 0
        %605 = vmatpush.bf16.xpose.msra.mxu0 0
        %606 = vmatpush.bf16.xpose.msra.mxu0 0
        %607 = vmatpush.bf16.xpose.msra.mxu0 0
        %608 = vmatpush.bf16.xpose.msra.mxu0 %v600
        %609 = vmatpush.bf16.xpose.msra.mxu0 %v597
        %610 = vmatmul.bf16.gmra.mxu0 %v591
        %v611 = vpop.f32.mrf.mxu0
        %v612 = vadd.f32 %v455, %v611
        %v613 = vpop.f32.mrf.mxu0
        %v614 = vadd.f32 %v456, %v613
        %615 = vmatmul.bf16.gmra.mxu0 %v594
        %v616 = vpop.f32.mrf.mxu0
        %v617 = vadd.f32 %v457, %v616
        %v618 = vpop.f32.mrf.mxu0
        %v619 = vadd.f32 %v458, %v618
        %620 = vdwg.mxu0
        %v621 = vsel %vm481, %v612, -inf
        %622 = vmax.xlane.f32.xlu0 %v621
        %v623 = vpop.xlane.xlu0 %622
        %v624 = vsel %vm481, %v614, -inf
        %625 = vmax.xlane.f32.xlu0 %v624
        %v626 = vpop.xlane.xlu0 %625
        %v627 = vsel %vm481, %v617, -inf
        %628 = vmax.xlane.f32.xlu0 %v627
        %v629 = vpop.xlane.xlu0 %628
        %v630 = vsel %vm481, %v619, -inf
        %631 = vmax.xlane.f32.xlu0 %v630
        %v632 = vpop.xlane.xlu0 %631
        %v633 = vsub.f32 %v612, %v623
        %v634 = vsub.f32 %v614, %v626
        %v635 = vsub.f32 %v617, %v629
        %v636 = vsub.f32 %v619, %v632
        %v637 = vmul.f32 %v633, 1.442695
        %v638 = vpow.pop %v637
        %v639 = vmul.f32 %v634, 1.442695
        %v640 = vpow.pop %v639
        %v641 = vmul.f32 %v635, 1.442695
        %v642 = vpow.pop %v641
        %v643 = vmul.f32 %v636, 1.442695
        %v644 = vpow.pop %v643
        %v645 = vsel %vm481, %v638, 0.0
        %646 = vadd.xlane.f32.xlu0 %v645
        %v647 = vpop.xlane.xlu0 %646
        %v648 = vsel %vm481, %v640, 0.0
        %649 = vadd.xlane.f32.xlu0 %v648
        %v650 = vpop.xlane.xlu0 %649
        %v651 = vsel %vm481, %v642, 0.0
        %652 = vadd.xlane.f32.xlu0 %v651
        %v653 = vpop.xlane.xlu0 %652
        %v654 = vsel %vm481, %v644, 0.0
        %655 = vadd.xlane.f32.xlu0 %v654
        %v656 = vpop.xlane.xlu0 %655
        %v657 = vrcp.pop %v647
        %v658 = vrcp.pop %v650
        %v659 = vrcp.pop %v653
        %v660 = vrcp.pop %v656
        %v661 = vmul.f32 %v638, %v657
        %v662 = vmul.f32 %v640, %v658
        %v663 = vmul.f32 %v642, %v659
        %v664 = vmul.f32 %v644, %v660
        %v665 = vpack.c.bf16 %v662, %v661
        %v666 = vpack.c.bf16 %v664, %v663
        %v668 = vsel %vm481, %v665, 0
        %v671 = vsel %vm481, %v666, 0
        %673 = vmatpush.bf16.msra.mxu0 0
        %674 = vmatpush.bf16.msra.mxu0 0
        %675 = vmatpush.bf16.msra.mxu0 0
        %676 = vmatpush.bf16.msra.mxu0 0
        %677 = vmatpush.bf16.msra.mxu0 0
        %678 = vmatpush.bf16.msra.mxu0 0
        %679 = vmatpush.bf16.msra.mxu0 %v588
        %680 = vmatpush.bf16.msra.mxu0 %v587
        %681 = vmatmul.bf16.gmra.mxu0 %v668
        %v682 = vpop.f32.mrf.mxu0
        %v683 = vadd.f32 0.0, %v682
        %v684 = vpop.f32.mrf.mxu0
        %v685 = vadd.f32 0.0, %v684
        %686 = vmatmul.bf16.gmra.mxu0 %v671
        %v687 = vpop.f32.mrf.mxu0
        %v688 = vadd.f32 0.0, %v687
        %v689 = vpop.f32.mrf.mxu0
        %v690 = vadd.f32 0.0, %v689
        %691 = vdwg.mxu0
        %v692 = vpack.c.bf16 %v685, %v683
        %v693 = vpack.c.bf16 %v690, %v688
        %696 = vrot.lane.b32.xlu0 %v583, 112
        %v697 = vpop.permute.xlu0 %696
        %698 = vrot.lane.b32.xlu0 %v584, 112
        %v699 = vpop.permute.xlu0 %698
        %702 = vrot.lane.b32.xlu0 %v585, 112
        %v703 = vpop.permute.xlu0 %702
        %704 = vrot.lane.b32.xlu0 %v586, 112
        %v705 = vpop.permute.xlu0 %704
        %v707 = vsel %vm589, %v697, 0
        %v710 = vsel %vm589, %v699, 0
        %v713 = vsel %vm589, %v703, 0
        %v716 = vsel %vm589, %v705, 0
        %718 = vmatpush.bf16.xpose.msra.mxu0 0
        %719 = vmatpush.bf16.xpose.msra.mxu0 0
        %720 = vmatpush.bf16.xpose.msra.mxu0 0
        %721 = vmatpush.bf16.xpose.msra.mxu0 0
        %722 = vmatpush.bf16.xpose.msra.mxu0 0
        %723 = vmatpush.bf16.xpose.msra.mxu0 0
        %724 = vmatpush.bf16.xpose.msra.mxu0 %v716
        %725 = vmatpush.bf16.xpose.msra.mxu0 %v713
        %726 = vmatmul.bf16.gmra.mxu0 %v707
        %v727 = vpop.f32.mrf.mxu0
        %v728 = vadd.f32 %v455, %v727
        %v729 = vpop.f32.mrf.mxu0
        %v730 = vadd.f32 %v456, %v729
        %731 = vmatmul.bf16.gmra.mxu0 %v710
        %v732 = vpop.f32.mrf.mxu0
        %v733 = vadd.f32 %v457, %v732
        %v734 = vpop.f32.mrf.mxu0
        %v735 = vadd.f32 %v458, %v734
        %736 = vdwg.mxu0
        %v737 = vsel %vm481, %v728, -inf
        %738 = vmax.xlane.f32.xlu0 %v737
        %v739 = vpop.xlane.xlu0 %738
        %v740 = vsel %vm481, %v730, -inf
        %741 = vmax.xlane.f32.xlu0 %v740
        %v742 = vpop.xlane.xlu0 %741
        %v743 = vsel %vm481, %v733, -inf
        %744 = vmax.xlane.f32.xlu0 %v743
        %v745 = vpop.xlane.xlu0 %744
        %v746 = vsel %vm481, %v735, -inf
        %747 = vmax.xlane.f32.xlu0 %v746
        %v748 = vpop.xlane.xlu0 %747
        %v749 = vsub.f32 %v728, %v739
        %v750 = vsub.f32 %v730, %v742
        %v751 = vsub.f32 %v733, %v745
        %v752 = vsub.f32 %v735, %v748
        %v753 = vmul.f32 %v749, 1.442695
        %v754 = vpow.pop %v753
        %v755 = vmul.f32 %v750, 1.442695
        %v756 = vpow.pop %v755
        %v757 = vmul.f32 %v751, 1.442695
        %v758 = vpow.pop %v757
        %v759 = vmul.f32 %v752, 1.442695
        %v760 = vpow.pop %v759
        %v761 = vsel %vm481, %v754, 0.0
        %762 = vadd.xlane.f32.xlu0 %v761
        %v763 = vpop.xlane.xlu0 %762
        %v764 = vsel %vm481, %v756, 0.0
        %765 = vadd.xlane.f32.xlu0 %v764
        %v766 = vpop.xlane.xlu0 %765
        %v767 = vsel %vm481, %v758, 0.0
        %768 = vadd.xlane.f32.xlu0 %v767
        %v769 = vpop.xlane.xlu0 %768
        %v770 = vsel %vm481, %v760, 0.0
        %771 = vadd.xlane.f32.xlu0 %v770
        %v772 = vpop.xlane.xlu0 %771
        %v773 = vrcp.pop %v763
        %v774 = vrcp.pop %v766
        %v775 = vrcp.pop %v769
        %v776 = vrcp.pop %v772
        %v777 = vmul.f32 %v754, %v773
        %v778 = vmul.f32 %v756, %v774
        %v779 = vmul.f32 %v758, %v775
        %v780 = vmul.f32 %v760, %v776
        %v781 = vpack.c.bf16 %v778, %v777
        %v782 = vpack.c.bf16 %v780, %v779
        %785 = vrot.lane.b32.xlu0 %v587, 112
        %v786 = vpop.permute.xlu0 %785
        %787 = vrot.lane.b32.xlu0 %v588, 112
        %v788 = vpop.permute.xlu0 %787
        %v792 = vsel %vm481, %v781, 0
        %v795 = vsel %vm481, %v782, 0
        %797 = vmatpush.bf16.msra.mxu0 0
        %798 = vmatpush.bf16.msra.mxu0 0
        %799 = vmatpush.bf16.msra.mxu0 0
        %800 = vmatpush.bf16.msra.mxu0 0
        %801 = vmatpush.bf16.msra.mxu0 0
        %802 = vmatpush.bf16.msra.mxu0 0
        %803 = vmatpush.bf16.msra.mxu0 %v788
        %804 = vmatpush.bf16.msra.mxu0 %v786
        %805 = vmatmul.bf16.gmra.mxu0 %v792
        %v806 = vpop.f32.mrf.mxu0
        %v807 = vadd.f32 0.0, %v806
        %v808 = vpop.f32.mrf.mxu0
        %v809 = vadd.f32 0.0, %v808
        %810 = vmatmul.bf16.gmra.mxu0 %v795
        %v811 = vpop.f32.mrf.mxu0
        %v812 = vadd.f32 0.0, %v811
        %v813 = vpop.f32.mrf.mxu0
        %v814 = vadd.f32 0.0, %v813
        %815 = vdwg.mxu0
        %v816 = vpack.c.bf16 %v809, %v807
        %v817 = vpack.c.bf16 %v814, %v812
        %v820 = vunpack.c.l.b16 %v581
        %v821 = vunpack.c.l.b16 %v582
        %v822 = vpack.c.b16 %v821, %v820
        %v825 = vsel %vm589, %v816, 0
        %v828 = vsel %vm589, %v817, 0
        %830 = vmatpush.bf16.msra.mxu0 0
        %831 = vmatpush.bf16.msra.mxu0 0
        %832 = vmatpush.bf16.msra.mxu0 0
        %833 = vmatpush.bf16.msra.mxu0 0
        %834 = vmatpush.bf16.msra.mxu0 0
        %835 = vmatpush.bf16.msra.mxu0 0
        %836 = vmatpush.bf16.msra.mxu0 0
        %837 = vmatpush.bf16.msra.mxu0 %v822
        %838 = vmatmul.bf16.gmra.mxu0 %v825
        %v839 = vpop.f32.mrf.mxu0
        %v840 = vadd.f32 0.0, %v839
        %v841 = vpop.f32.mrf.mxu0
        %v842 = vadd.f32 0.0, %v841
        %843 = vmatmul.bf16.gmra.mxu0 %v828
        %v844 = vpop.f32.mrf.mxu0
        %v845 = vadd.f32 0.0, %v844
        %v846 = vpop.f32.mrf.mxu0
        %v847 = vadd.f32 0.0, %v846
        %848 = vdwg.mxu0
        %v851 = vunpack.c.l.b16 %v579
        %v852 = vunpack.c.l.b16 %v580
        %v853 = vpack.c.b16 %v852, %v851
        %v856 = vsel %vm589, %v692, 0
        %v859 = vsel %vm589, %v693, 0
        %861 = vmatpush.bf16.msra.mxu0 0
        %862 = vmatpush.bf16.msra.mxu0 0
        %863 = vmatpush.bf16.msra.mxu0 0
        %864 = vmatpush.bf16.msra.mxu0 0
        %865 = vmatpush.bf16.msra.mxu0 0
        %866 = vmatpush.bf16.msra.mxu0 0
        %867 = vmatpush.bf16.msra.mxu0 0
        %868 = vmatpush.bf16.msra.mxu0 %v853
        %869 = vmatmul.bf16.gmra.mxu0 %v856
        %v870 = vpop.f32.mrf.mxu0
        %v871 = vadd.f32 %v840, %v870
        %v872 = vpop.f32.mrf.mxu0
        %v873 = vadd.f32 %v842, %v872
        %874 = vmatmul.bf16.gmra.mxu0 %v859
        %v875 = vpop.f32.mrf.mxu0
        %v876 = vadd.f32 %v845, %v875
        %v877 = vpop.f32.mrf.mxu0
        %v878 = vadd.f32 %v847, %v877
        %879 = vdwg.mxu0
        %v880 = vperm.slane %v459, 3
        %v881 = vadd.f32 %v871, %v880
        %v882 = vadd.f32 %v873, %v880
        %v883 = vadd.f32 %v876, %v880
        %v884 = vadd.f32 %v878, %v880
        %v885 = vadd.f32 %v881, %v443
        %v886 = vadd.f32 %v882, %v444
        %v887 = vadd.f32 %v883, %v445
        %v888 = vadd.f32 %v884, %v446
        %v889 = vsel %vm481, %v885, 0.0
        %890 = vadd.xlane.f32.xlu0 %v889
        %v891 = vpop.xlane.xlu0 %890
        %v892 = vsel %vm481, %v886, 0.0
        %893 = vadd.xlane.f32.xlu0 %v892
        %v894 = vpop.xlane.xlu0 %893
        %v895 = vsel %vm481, %v887, 0.0
        %896 = vadd.xlane.f32.xlu0 %v895
        %v897 = vpop.xlane.xlu0 %896
        %v898 = vsel %vm481, %v888, 0.0
        %899 = vadd.xlane.f32.xlu0 %v898
        %v900 = vpop.xlane.xlu0 %899
        %v901 = vrcp.pop 32.0
        %v902 = vmul.f32 32.0, %v901
        %v903 = vsub.f32 1.0, %v902
        %v904 = vmul.f32 %v901, %v903
        %v905 = vadd.f32 %v901, %v904
        %vm906 = vweird.f32 %v901
        %v907 = vsel %vm906, %v901, %v905
        %v908 = vmul.f32 %v891, %v907
        %v909 = vmul.f32 %v894, %v907
        %v910 = vmul.f32 %v897, %v907
        %v911 = vmul.f32 %v900, %v907
        %v912 = vsub.f32 %v885, %v908
        %v913 = vsub.f32 %v886, %v909
        %v914 = vsub.f32 %v887, %v910
        %v915 = vsub.f32 %v888, %v911
        %v916 = vmul.f32 %v912, %v912
        %v917 = vmul.f32 %v913, %v913
        %v918 = vmul.f32 %v914, %v914
        %v919 = vmul.f32 %v915, %v915
        %v920 = vsel %vm481, %v916, 0.0
        %921 = vadd.xlane.f32.xlu0 %v920
        %v922 = vpop.xlane.xlu0 %921
        %v923 = vsel %vm481, %v917, 0.0
        %924 = vadd.xlane.f32.xlu0 %v923
        %v925 = vpop.xlane.xlu0 %924
        %v926 = vsel %vm481, %v918, 0.0
        %927 = vadd.xlane.f32.xlu0 %v926
        %v928 = vpop.xlane.xlu0 %927
        %v929 = vsel %vm481, %v919, 0.0
        %930 = vadd.xlane.f32.xlu0 %v929
        %v931 = vpop.xlane.xlu0 %930
        %v932 = vmul.f32 %v922, %v907
        %v933 = vmul.f32 %v925, %v907
        %v934 = vmul.f32 %v928, %v907
        %v935 = vmul.f32 %v931, %v907
        %v936 = vadd.f32 %v932, 1e-12
        %v937 = vadd.f32 %v933, 1e-12
        %v938 = vadd.f32 %v934, 1e-12
        %v939 = vadd.f32 %v935, 1e-12
        %v940 = vrsqrt.pop %v936
        %v941 = vmul.f32 %v940, %v936
        %v942 = vmul.f32 %v941, %v940
        %v943 = vmul.f32 0.5, %v942
        %v944 = vsub.f32 1.5, %v943
        %v945 = vmul.f32 %v940, %v944
        %vm946 = vweird.f32 %v936
        %vm947 = vweird.f32 %v940
        %vm948 = vmor %vm946, %vm947
        %v949 = vsel %vm948, %v940, %v945
        %v950 = vrsqrt.pop %v937
        %v951 = vmul.f32 %v950, %v937
        %v952 = vmul.f32 %v951, %v950
        %v953 = vmul.f32 0.5, %v952
        %v954 = vsub.f32 1.5, %v953
        %v955 = vmul.f32 %v950, %v954
        %vm956 = vweird.f32 %v937
        %vm957 = vweird.f32 %v950
        %vm958 = vmor %vm956, %vm957
        %v959 = vsel %vm958, %v950, %v955
        %v960 = vrsqrt.pop %v938
        %v961 = vmul.f32 %v960, %v938
        %v962 = vmul.f32 %v961, %v960
        %v963 = vmul.f32 0.5, %v962
        %v964 = vsub.f32 1.5, %v963
        %v965 = vmul.f32 %v960, %v964
        %vm966 = vweird.f32 %v938
        %vm967 = vweird.f32 %v960
        %vm968 = vmor %vm966, %vm967
        %v969 = vsel %vm968, %v960, %v965
        %v970 = vrsqrt.pop %v939
        %v971 = vmul.f32 %v970, %v939
        %v972 = vmul.f32 %v971, %v970
        %v973 = vmul.f32 0.5, %v972
        %v974 = vsub.f32 1.5, %v973
        %v975 = vmul.f32 %v970, %v974
        %vm976 = vweird.f32 %v939
        %vm977 = vweird.f32 %v970
        %vm978 = vmor %vm976, %vm977
        %v979 = vsel %vm978, %v970, %v975
        %v980 = vmul.f32 %v912, %v949
        %v981 = vmul.f32 %v913, %v959
        %v982 = vmul.f32 %v914, %v969
        %v983 = vmul.f32 %v915, %v979
        %v984 = vperm.slane %v459, 4
        %v985 = vmul.f32 %v980, %v984
        %v986 = vmul.f32 %v981, %v984
        %v987 = vmul.f32 %v982, %v984
        %v988 = vmul.f32 %v983, %v984
        %v989 = vperm.slane %v459, 5
        %v990 = vadd.f32 %v985, %v989
        %v991 = vadd.f32 %v986, %v989
        %v992 = vadd.f32 %v987, %v989
        %v993 = vadd.f32 %v988, %v989
        %v994 = vpack.c.bf16 %v991, %v990
        %v995 = vpack.c.bf16 %v993, %v992
        %v996 = vld [vmem:[%s7] sm:$0xf]
        %v997 = vld [vmem:[%s7 + $0x4] sm:$0xf]
        %v998 = vld [vmem:[%s7 + $0x8] sm:$0xf]
        %v999 = vld [vmem:[%s7 + $0xc] sm:$0xf]
        %v1001 = vperm.slane %v461, 0
        %v1007 = vunpack.c.l.b16 %v996
        %v1008 = vunpack.c.l.b16 %v997
        %v1009 = vunpack.c.l.b16 %v998
        %v1010 = vunpack.c.l.b16 %v999
        %v1011 = vpack.c.b16 %v1008, %v1007
        %v1012 = vpack.c.b16 %v1010, %v1009
        %v1016 = vsel %vm481, %v994, 0
        %v1019 = vsel %vm481, %v995, 0
        %1021 = vmatpush.bf16.msra.mxu0 0
        %1022 = vmatpush.bf16.msra.mxu0 0
        %1023 = vmatpush.bf16.msra.mxu0 0
        %1024 = vmatpush.bf16.msra.mxu0 0
        %1025 = vmatpush.bf16.msra.mxu0 0
        %1026 = vmatpush.bf16.msra.mxu0 0
        %1027 = vmatpush.bf16.msra.mxu0 %v1012
        %1028 = vmatpush.bf16.msra.mxu0 %v1011
        %1029 = vmatmul.bf16.gmra.mxu0 %v1016
        %v1030 = vpop.f32.mrf.mxu0
        %v1031 = vadd.f32 %v1001, %v1030
        %v1032 = vpop.f32.mrf.mxu0
        %v1033 = vadd.f32 %v1001, %v1032
        %1034 = vmatmul.bf16.gmra.mxu0 %v1019
        %v1035 = vpop.f32.mrf.mxu0
        %v1036 = vadd.f32 %v1001, %v1035
        %v1037 = vpop.f32.mrf.mxu0
        %v1038 = vadd.f32 %v1001, %v1037
        %1039 = vdwg.mxu0
        %v1040 = vmul.f32 %v1031, 0.5
        %v1041 = vmul.f32 %v1033, 0.5
        %v1042 = vmul.f32 %v1036, 0.5
        %v1043 = vmul.f32 %v1038, 0.5
        %v1044 = vmul.f32 %v1031, 0.044715
        %v1045 = vmul.f32 %v1033, 0.044715
        %v1046 = vmul.f32 %v1036, 0.044715
        %v1047 = vmul.f32 %v1038, 0.044715
        %v1048 = vmul.f32 %v1044, %v1031
        %v1049 = vmul.f32 %v1045, %v1033
        %v1050 = vmul.f32 %v1046, %v1036
        %v1051 = vmul.f32 %v1047, %v1038
        %v1052 = vmul.f32 %v1048, %v1031
        %v1053 = vmul.f32 %v1049, %v1033
        %v1054 = vmul.f32 %v1050, %v1036
        %v1055 = vmul.f32 %v1051, %v1038
        %v1056 = vadd.f32 %v1031, %v1052
        %v1057 = vadd.f32 %v1033, %v1053
        %v1058 = vadd.f32 %v1036, %v1054
        %v1059 = vadd.f32 %v1038, %v1055
        %v1060 = vmul.f32 %v1056, 0.7978846
        %v1061 = vmul.f32 %v1057, 0.7978846
        %v1062 = vmul.f32 %v1058, 0.7978846
        %v1063 = vmul.f32 %v1059, 0.7978846
        %v1064 = vtanh.pop %v1060
        %v1065 = vtanh.pop %v1061
        %v1066 = vtanh.pop %v1062
        %v1067 = vtanh.pop %v1063
        %v1068 = vadd.f32 %v1064, 1.0
        %v1069 = vadd.f32 %v1065, 1.0
        %v1070 = vadd.f32 %v1066, 1.0
        %v1071 = vadd.f32 %v1067, 1.0
        %v1072 = vmul.f32 %v1040, %v1068
        %v1073 = vmul.f32 %v1041, %v1069
        %v1074 = vmul.f32 %v1042, %v1070
        %v1075 = vmul.f32 %v1043, %v1071
        %v1076 = vpack.c.bf16 %v1073, %v1072
        %v1077 = vpack.c.bf16 %v1075, %v1074
        %v1078 = vld [vmem:[%s8] sm:$0xf]
        %v1079 = vld [vmem:[%s8 + $0x4] sm:$0xf]
        %v1080 = vld [vmem:[%s8 + $0x8] sm:$0xf]
        %v1081 = vld [vmem:[%s8 + $0xc] sm:$0xf]
        %v1082 = vld [vmem:[%s8 + $0x10] sm:$0xf]
        %v1083 = vld [vmem:[%s8 + $0x14] sm:$0xf]
        %v1084 = vld [vmem:[%s8 + $0x18] sm:$0xf]
        %v1085 = vld [vmem:[%s8 + $0x1c] sm:$0xf]
        %v1086 = vperm.slane %v459, 6
        %v1095 = vunpack.c.l.b16 %v1078
        %v1096 = vunpack.c.l.b16 %v1079
        %v1097 = vunpack.c.l.b16 %v1080
        %v1098 = vunpack.c.l.b16 %v1081
        %v1099 = vunpack.c.l.b16 %v1082
        %v1100 = vunpack.c.l.b16 %v1083
        %v1101 = vunpack.c.l.b16 %v1084
        %v1102 = vunpack.c.l.b16 %v1085
        %v1103 = vpack.c.b16 %v1096, %v1095
        %v1104 = vpack.c.b16 %v1098, %v1097
        %v1105 = vpack.c.b16 %v1100, %v1099
        %v1106 = vpack.c.b16 %v1102, %v1101
        %vm1111 = vcmask 523264
        %v1113 = vsel %vm1111, %v1076, 0
        %v1116 = vsel %vm1111, %v1077, 0
        %1118 = vmatpush.bf16.msra.mxu0 0
        %1119 = vmatpush.bf16.msra.mxu0 0
        %1120 = vmatpush.bf16.msra.mxu0 0
        %1121 = vmatpush.bf16.msra.mxu0 0
        %1122 = vmatpush.bf16.msra.mxu0 %v1106
        %1123 = vmatpush.bf16.msra.mxu0 %v1105
        %1124 = vmatpush.bf16.msra.mxu0 %v1104
        %1125 = vmatpush.bf16.msra.mxu0 %v1103
        %1126 = vmatmul.bf16.gmra.mxu0 %v1113
        %v1127 = vpop.f32.mrf.mxu0
        %v1128 = vadd.f32 %v1086, %v1127
        %v1129 = vpop.f32.mrf.mxu0
        %v1130 = vadd.f32 %v1086, %v1129
        %1131 = vmatmul.bf16.gmra.mxu0 %v1116
        %v1132 = vpop.f32.mrf.mxu0
        %v1133 = vadd.f32 %v1086, %v1132
        %v1134 = vpop.f32.mrf.mxu0
        %v1135 = vadd.f32 %v1086, %v1134
        %1136 = vdwg.mxu0
        %v1137 = vadd.f32 %v1128, %v990
        %v1138 = vadd.f32 %v1130, %v991
        %v1139 = vadd.f32 %v1133, %v992
        %v1140 = vadd.f32 %v1135, %v993
        %v1141 = vsel %vm481, %v1137, 0.0
        %1142 = vadd.xlane.f32.xlu0 %v1141
        %v1143 = vpop.xlane.xlu0 %1142
        %v1144 = vsel %vm481, %v1138, 0.0
        %1145 = vadd.xlane.f32.xlu0 %v1144
        %v1146 = vpop.xlane.xlu0 %1145
        %v1147 = vsel %vm481, %v1139, 0.0
        %1148 = vadd.xlane.f32.xlu0 %v1147
        %v1149 = vpop.xlane.xlu0 %1148
        %v1150 = vsel %vm481, %v1140, 0.0
        %1151 = vadd.xlane.f32.xlu0 %v1150
        %v1152 = vpop.xlane.xlu0 %1151
        %v1153 = vmul.f32 %v1143, %v907
        %v1154 = vmul.f32 %v1146, %v907
        %v1155 = vmul.f32 %v1149, %v907
        %v1156 = vmul.f32 %v1152, %v907
        %v1157 = vsub.f32 %v1137, %v1153
        %v1158 = vsub.f32 %v1138, %v1154
        %v1159 = vsub.f32 %v1139, %v1155
        %v1160 = vsub.f32 %v1140, %v1156
        %v1161 = vmul.f32 %v1157, %v1157
        %v1162 = vmul.f32 %v1158, %v1158
        %v1163 = vmul.f32 %v1159, %v1159
        %v1164 = vmul.f32 %v1160, %v1160
        %v1165 = vsel %vm481, %v1161, 0.0
        %1166 = vadd.xlane.f32.xlu0 %v1165
        %v1167 = vpop.xlane.xlu0 %1166
        %v1168 = vsel %vm481, %v1162, 0.0
        %1169 = vadd.xlane.f32.xlu0 %v1168
        %v1170 = vpop.xlane.xlu0 %1169
        %v1171 = vsel %vm481, %v1163, 0.0
        %1172 = vadd.xlane.f32.xlu0 %v1171
        %v1173 = vpop.xlane.xlu0 %1172
        %v1174 = vsel %vm481, %v1164, 0.0
        %1175 = vadd.xlane.f32.xlu0 %v1174
        %v1176 = vpop.xlane.xlu0 %1175
        %v1177 = vmul.f32 %v1167, %v907
        %v1178 = vmul.f32 %v1170, %v907
        %v1179 = vmul.f32 %v1173, %v907
        %v1180 = vmul.f32 %v1176, %v907
        %v1181 = vadd.f32 %v1177, 1e-12
        %v1182 = vadd.f32 %v1178, 1e-12
        %v1183 = vadd.f32 %v1179, 1e-12
        %v1184 = vadd.f32 %v1180, 1e-12
        %v1185 = vrsqrt.pop %v1181
        %v1186 = vmul.f32 %v1185, %v1181
        %v1187 = vmul.f32 %v1186, %v1185
        %v1188 = vmul.f32 0.5, %v1187
        %v1189 = vsub.f32 1.5, %v1188
        %v1190 = vmul.f32 %v1185, %v1189
        %vm1191 = vweird.f32 %v1181
        %vm1192 = vweird.f32 %v1185
        %vm1193 = vmor %vm1191, %vm1192
        %v1194 = vsel %vm1193, %v1185, %v1190
        %v1195 = vrsqrt.pop %v1182
        %v1196 = vmul.f32 %v1195, %v1182
        %v1197 = vmul.f32 %v1196, %v1195
        %v1198 = vmul.f32 0.5, %v1197
        %v1199 = vsub.f32 1.5, %v1198
        %v1200 = vmul.f32 %v1195, %v1199
        %vm1201 = vweird.f32 %v1182
        %vm1202 = vweird.f32 %v1195
        %vm1203 = vmor %vm1201, %vm1202
        %v1204 = vsel %vm1203, %v1195, %v1200
        %v1205 = vrsqrt.pop %v1183
        %v1206 = vmul.f32 %v1205, %v1183
        %v1207 = vmul.f32 %v1206, %v1205
        %v1208 = vmul.f32 0.5, %v1207
        %v1209 = vsub.f32 1.5, %v1208
        %v1210 = vmul.f32 %v1205, %v1209
        %vm1211 = vweird.f32 %v1183
        %vm1212 = vweird.f32 %v1205
        %vm1213 = vmor %vm1211, %vm1212
        %v1214 = vsel %vm1213, %v1205, %v1210
        %v1215 = vrsqrt.pop %v1184
        %v1216 = vmul.f32 %v1215, %v1184
        %v1217 = vmul.f32 %v1216, %v1215
        %v1218 = vmul.f32 0.5, %v1217
        %v1219 = vsub.f32 1.5, %v1218
        %v1220 = vmul.f32 %v1215, %v1219
        %vm1221 = vweird.f32 %v1184
        %vm1222 = vweird.f32 %v1215
        %vm1223 = vmor %vm1221, %vm1222
        %v1224 = vsel %vm1223, %v1215, %v1220
        %v1225 = vmul.f32 %v1157, %v1194
        %v1226 = vmul.f32 %v1158, %v1204
        %v1227 = vmul.f32 %v1159, %v1214
        %v1228 = vmul.f32 %v1160, %v1224
        %v1229 = vperm.slane %v459, 7
        %v1230 = vmul.f32 %v1225, %v1229
        %v1231 = vmul.f32 %v1226, %v1229
        %v1232 = vmul.f32 %v1227, %v1229
        %v1233 = vmul.f32 %v1228, %v1229
        %v1234 = vperm.slane %v460, 0
        %v1235 = vadd.f32 %v1230, %v1234
        %v1236 = vadd.f32 %v1231, %v1234
        %v1237 = vadd.f32 %v1232, %v1234
        %v1238 = vadd.f32 %v1233, %v1234
        %1239 = vst.msk [vmem:[%s440] sm:$0xff] %vm481, %v1235
        %1240 = vst.msk [vmem:[%s440 + $0x8] sm:$0xff] %vm481, %v1236
        %1241 = vst.msk [vmem:[%s440 + $0x10] sm:$0xff] %vm481, %v1237
        %1242 = vst.msk [vmem:[%s440 + $0x18] sm:$0xff] %vm481, %v1238
        %s1243 = smul.u32 4, %s26
        %p1244 = scmp.lt.s32.totalorder %s1243, 7
        %s1245 = scalar_select %p1244, %s1243, 7
        %s1246 = smul.addr %s1245, 8
        %s1247 = scalar_lea.vmem %s11, %s1246
        // Predicated region
        $region73: #{tpu_custom_call.1} parent=63 // pred_check
          %p1248 = pneg %p285
        $region74: #{tpu_custom_call.1} parent=63 // pred_check_branch
          %1250 = sbr.rel (%p1248) target = $region76
        $region75: #{tpu_custom_call.1} parent=63 // pred_region
          %s1251 = smul.u32 4, %s26
        $region76: #{tpu_custom_call.1} parent=63 // pred_fallthru
          _
      $region64: #{tpu_custom_call.1} parent=5 // pred_fallthru
        _
      %p1252 = scmp.le.s32.totalorder 2, %s21
      // Predicated region
      $region77: #{tpu_custom_call.1} parent=5 // pred_check
        %p1253 = pneg %p1252
      $region78: #{tpu_custom_call.1} parent=5 // pred_check_branch
        %1255 = sbr.rel (%p1253) target = $region80
      $region79: #{tpu_custom_call.1} parent=5 // pred_region
        %s1256 = ssub.s32 %s21, 2
        // Predicated region
        $region81: #{tpu_custom_call.1} parent=79 // pred_check
          %p1257 = pneg %p291
        $region82: #{tpu_custom_call.1} parent=79 // pred_check_branch
          %1259 = sbr.rel (%p1257) target = $region84
        $region83: #{tpu_custom_call.1} parent=79 // pred_region
          %s1260 = smul.u32 4, %s27
          %p1261 = scmp.lt.s32.totalorder %s1260, 7
          %s1262 = scalar_select %p1261, %s1260, 7
          %s1263 = smul.addr %s1262, 8
          %s1264 = scalar_lea.vmem %s11, %s1263
        $region84: #{tpu_custom_call.1} parent=79 // pred_fallthru
          _
      $region80: #{tpu_custom_call.1} parent=5 // pred_fallthru
        _
    $region6: #{tpu_custom_call.1} parent=1 // loop_footer
      %s25 = sadd.s32 1, %s21
    $region7: #{tpu_custom_call.1} parent=1 // loop_footer_branch
      %20 = sbr.rel target = $region3
    $region8: #{tpu_custom_call.1} parent=1 // loop_exit
      _
    %1265 = vsyncpa [#allocation3], 1
    %s1266 = scalar_lea.sflag [#allocation3], 1
    %1267 = vsyncpa %s1266, 1
    %1268 = vsyncpa [#allocation5], 1

</llo_original>
